<compile_context>
chip_gen: v6e
topology: v6e:2x2x1
jax: 0.10.0
libtpu: 0.0.40
codegen_flags: <defaults>
</compile_context>

<pallas_src>
import functools

import jax
import jax.numpy as jnp
from jax import lax
from jax.experimental import pallas as pl
from jax.experimental.pallas import tpu as pltpu


def _round_up(a, b):
    return (a + b - 1) // b * b


def _cdiv(a, b):
    return (a + b - 1) // b


def _conv_stats_kernel(x_ref, w_ref, y_ref, stat_ref, *,
                       cin, cout, ksize, stride, wout, nh, tile, lane_chunk):
    """One lane-tile of the flattened (n, h) axis: conv + BN partial statistics.

    x_ref:    (Cin*S, Wq, T)  VMEM. Stride-split input:
                              x_ref[ci*S + r, wq, m] = x[n, ci, h, wq*S + r].
                              Tail lanes (m >= valid) are exactly ZERO; the
                              statistics below rely on this and on no bias
                              being added in-kernel.
    w_ref:    (Cout, Cin*K)   SMEM. Conv weights, read as scalars.
    y_ref:    (Cout, Wout, T) VMEM. Conv output tile (pre-BN).
    stat_ref: (1, Cout, 2)    VMEM. [..., 0] = per-channel sum over real
                              elements, [..., 1] = per-channel centered
                              sum of squares (exact, per-tile mean).
    """
    i = pl.program_id(0)
    valid = jnp.minimum(nh - i * tile, tile).astype(jnp.float32)
    cnt = valid * wout                        # real elements per channel here
    pad_cnt = float(tile * wout) - cnt        # zero-padded elements per channel

    for co in range(cout):
        # Hoist this channel's 12-ish weights once (cheap SMEM scalar reads).
        wv = [w_ref[co, j] for j in range(cin * ksize)]

        # ---- convolution, lane-chunked so the accumulator lives in vregs -----
        tsum = jnp.zeros((1, 1), jnp.float32)
        for off in range(0, tile, lane_chunk):
            lc = min(lane_chunk, tile - off)
            acc = jnp.zeros((wout, lc), jnp.float32)
            for ci in range(cin):
                for k in range(ksize):
                    q, r = divmod(k, stride)
                    tap = x_ref[ci * stride + r, q:q + wout, off:off + lc]
                    acc = acc + wv[ci * ksize + k] * tap
            y_ref[co, :, off:off + lc] = acc
            tsum = tsum + jnp.sum(acc, keepdims=True)

        # ---- BN partial stats: exact centered SS, padded lanes corrected ------
        # (tsum needs no mask: padded lanes of acc are exactly 0.)
        mu = tsum / cnt
        css = jnp.zeros((1, 1), jnp.float32)
        for off in range(0, tile, lane_chunk):
            lc = min(lane_chunk, tile - off)
            d = y_ref[co, :, off:off + lc] - mu
            css = css + jnp.sum(d * d, keepdims=True)
        css = css - pad_cnt * mu * mu          # padded lanes added (0 - mu)^2 each

        stat_ref[0, co:co + 1, 0:1] = tsum
        stat_ref[0, co:co + 1, 1:2] = css


@functools.partial(jax.jit,
                   static_argnames=("kernel_size", "stride", "eps", "tile_nh"))
def spatial_block(x, weight, bias, gamma, beta, *, kernel_size, stride,
                  eps=1e-5, tile_nh=2048):
    """SpatialBlock forward. x: (N, Cin, H, W) f32 -> (N, Cout, H, Wout) f32.

    `bias` is accepted for interface parity with nn.Conv2d but is unused:
    training-mode BatchNorm subtracts the batch mean, which cancels a
    per-channel conv bias exactly.  (The in-kernel statistics additionally
    rely on zero-padded tail lanes producing exactly-zero conv outputs, which
    holds only because no bias is added in-kernel.)
    """
    del bias
    N, Cin, H, W = x.shape
    Cout = weight.shape[0]
    K, S = kernel_size, stride
    assert W >= K
    Wout = (W - K) // S + 1
    Wq = _cdiv(W, S)
    NH = N * H

    # ---- lane-tile sizing --------------------------------------------------
    # Keep the double-buffered working set well under v7x's 64 MiB VMEM/TC and
    # keep ntiles >= 2 when possible so the "parallel" grid axis feeds both
    # v7x TensorCores.  (On v5e/v6e, 128 MiB VMEM means this is conservative;
    # larger tiles give diminishing returns once the ~0.35us/step overhead is
    # amortized, which T >= 1024 already achieves on realistic NH.)
    bytes_per_lane = (Cin * S * Wq + Cout * Wout) * 4 * 2   # x2: double buffering
    ws_budget = 20 * 1024 * 1024
    t_budget = max(128, (ws_budget // bytes_per_lane) // 128 * 128)
    NH128 = _round_up(NH, 128)
    T = min(max(128, tile_nh // 128 * 128), t_budget, NH128)
    if NH128 >= 256:                                        # ensure ntiles >= 2
        T = min(T, _round_up(_cdiv(NH, 2), 128))
    NH_pad = _round_up(NH, T)
    ntiles = NH_pad // T
    # <=512-lane sub-chunks keep the (Wout, lc) accumulator comfortably in vregs.
    lane_chunk = min(T, 512, max(128, (64 * 1024 // (Wout * 4)) // 128 * 128))

    ws = bytes_per_lane * T
    vmem_limit = int(min(100 * 2**20, max(32 * 2**20, ws + ws // 2)))

    # ---- layout glue: ONE transpose of the input (stride-split W axis) ------
    # x_r[ci*S + r, wq, n*H + h] == x[n, ci, h, wq*S + r]; tails zero-padded.
    xp = x.astype(jnp.float32)
    if Wq * S != W:
        xp = jnp.pad(xp, ((0, 0), (0, 0), (0, 0), (0, Wq * S - W)))
    x_r = (xp.reshape(N, Cin, H, Wq, S)
             .transpose(1, 4, 3, 0, 2)                      # (Cin, S, Wq, N, H)
             .reshape(Cin * S, Wq, NH))
    if NH_pad != NH:
        x_r = jnp.pad(x_r, ((0, 0), (0, 0), (0, NH_pad - NH)))

    w2 = weight[:, :, 0, :].reshape(Cout, Cin * K).astype(jnp.float32)

    kern = functools.partial(
        _conv_stats_kernel, cin=Cin, cout=Cout, ksize=K, stride=S,
        wout=Wout, nh=NH, tile=T, lane_chunk=lane_chunk)

    # ---- pass 1 (only Pallas pass): conv tiles + per-tile BN partial stats --
    y_all, stats = pl.pallas_call(
        kern,
        grid=(ntiles,),
        in_specs=[
            pl.BlockSpec((Cin * S, Wq, T), lambda i: (0, 0, i)),
            pl.BlockSpec(memory_space=pltpu.MemorySpace.SMEM),   # weights: scalars
        ],
        out_specs=[
            pl.BlockSpec((Cout, Wout, T), lambda i: (0, 0, i)),
            pl.BlockSpec((1, Cout, 2), lambda i: (i, 0, 0)),
        ],
        out_shape=[
            jax.ShapeDtypeStruct((Cout, Wout, NH_pad), jnp.float32),
            jax.ShapeDtypeStruct((ntiles, Cout, 2), jnp.float32),
        ],
        compiler_params=pltpu.CompilerParams(
            dimension_semantics=("parallel",),
            vmem_limit_bytes=vmem_limit),
    )(x_r, w2)

    # ---- exact combine of per-tile stats (parallel variance), fold BN -------
    cnts = jnp.asarray([min(T, NH - i * T) * Wout for i in range(ntiles)],
                       dtype=jnp.float32)[:, None]                # (ntiles, 1)
    tsum = stats[:, :, 0]                                         # (ntiles, Cout)
    tcss = stats[:, :, 1]
    m_total = float(NH * Wout)
    mean = jnp.sum(tsum, axis=0) / m_total                        # (Cout,)
    tile_mean = tsum / cnts
    var = (jnp.sum(tcss, axis=0)
           + jnp.sum(cnts * jnp.square(tile_mean - mean[None, :]), axis=0)
           ) / m_total                                            # biased (BN train)
    scale_c = gamma.astype(jnp.float32) * lax.rsqrt(var + eps)    # (Cout,)
    shift_c = beta.astype(jnp.float32) - mean * scale_c

    # ---- BN apply + ReLU: plain JAX, fused by XLA into the output transpose --
    y = y_all[:, :, :NH]
    out = jnp.maximum(y * scale_c[:, None, None] + shift_c[:, None, None], 0.0)
    return jnp.transpose(out.reshape(Cout, Wout, N, H), (2, 0, 3, 1))


if __name__ == "__main__":
    # Small EEG-like shapes: (batch, in_channels, electrodes, time).
    # N*H = 144 -> two 128-lane tiles (exercises tiling, the zero-pad stats
    # correction on the tail tile, and the parallel-variance combine).
    N, Cin, H, W = 3, 4, 48, 16
    Cout, K, S = 8, 3, 2

    key = jax.random.PRNGKey(0)
    k_x, k_w, k_b = jax.random.split(key, 3)

    x = jax.random.normal(k_x, (N, Cin, H, W), dtype=jnp.float32)

    fan_in = Cin * 1 * K
    bound = 1.0 / float(fan_in) ** 0.5
    weight = jax.random.uniform(k_w, (Cout, Cin, 1, K), dtype=jnp.float32,
                                minval=-bound, maxval=bound)
    bias = jax.random.uniform(k_b, (Cout,), dtype=jnp.float32,
                              minval=-bound, maxval=bound)
    gamma = jnp.ones((Cout,), dtype=jnp.float32)   # fresh BatchNorm2d weight
    beta = jnp.zeros((Cout,), dtype=jnp.float32)   # fresh BatchNorm2d bias

    out = spatial_block(x, weight, bias, gamma, beta, kernel_size=K, stride=S)
    out = jax.block_until_ready(out)

    Wout = (W - K) // S + 1
    assert out.shape == (N, Cout, H, Wout), out.shape

    # Pure-JAX reference of the PyTorch forward (training-mode BatchNorm2d).
    def reference(x, weight, bias, gamma, beta):
        taps = jnp.stack(
            [x[:, :, :, k:k + (Wout - 1) * S + 1:S] for k in range(K)], axis=-1)
        y = jnp.einsum("nchwk,ock->nohw", taps, weight[:, :, 0, :])
        y = y + bias[None, :, None, None]
        mean = jnp.mean(y, axis=(0, 2, 3), keepdims=True)
        var = jnp.mean(jnp.square(y - mean), axis=(0, 2, 3), keepdims=True)
        y = (y - mean) * lax.rsqrt(var + 1e-5)
        y = gamma[None, :, None, None] * y + beta[None, :, None, None]
        return jnp.maximum(y, 0.0)

    ref = reference(x, weight, bias, gamma, beta)
    err = float(jnp.max(jnp.abs(out - ref)))
    assert err < 1e-3, f"max abs error {err}"
    print("KERNEL_OK")
</pallas_src>

<mosaic_0001>
module attributes {stable_mosaic.version = 11 : i64} {
  func.func @_conv_stats_kernel(%arg0: i32, %arg1: memref<8x8x128xf32, #tpu.memory_space<vmem>>, %arg2: memref<8x12xf32, #tpu.memory_space<smem>>, %arg3: memref<8x7x128xf32, #tpu.memory_space<vmem>>, %arg4: memref<1x8x2xf32, #tpu.memory_space<vmem>>) attributes {dimension_semantics = [#tpu.dimension_semantics<parallel>], iteration_bounds = array<i64: 2>, scalar_prefetch = 0 : i64, scratch_operands = 0 : i64, tpu.core_type = #tpu.core_type<tc>, window_params = [{transform_indices = @transform_0, window_bounds = array<i64: 8, 8, 128>}, {transform_indices = @transform_1, window_bounds = array<i64: 8, 12>}, {transform_indices = @transform_2, window_bounds = array<i64: 8, 7, 128>}, {transform_indices = @transform_3, window_bounds = array<i64: 1, 8, 2>}]} {
    %c128_i32 = arith.constant 128 : i32
    %0 = arith.muli %arg0, %c128_i32 : i32
    %c144_i32 = arith.constant 144 : i32
    %1 = arith.subi %c144_i32, %0 : i32
    %c128_i32_0 = arith.constant 128 : i32
    %2 = arith.minsi %1, %c128_i32_0 : i32
    %3 = arith.sitofp %2 : i32 to f32
    %cst = arith.constant 7.000000e+00 : f32
    %4 = arith.mulf %3, %cst : f32
    %cst_1 = arith.constant 8.960000e+02 : f32
    %5 = arith.subf %cst_1, %4 : f32
    %c0 = arith.constant 0 : index
    %c0_2 = arith.constant 0 : index
    %6 = memref.load %arg2[%c0, %c0_2] : memref<8x12xf32, #tpu.memory_space<smem>>
    %c0_3 = arith.constant 0 : index
    %c1 = arith.constant 1 : index
    %7 = memref.load %arg2[%c0_3, %c1] : memref<8x12xf32, #tpu.memory_space<smem>>
    %c0_4 = arith.constant 0 : index
    %c2 = arith.constant 2 : index
    %8 = memref.load %arg2[%c0_4, %c2] : memref<8x12xf32, #tpu.memory_space<smem>>
    %c0_5 = arith.constant 0 : index
    %c3 = arith.constant 3 : index
    %9 = memref.load %arg2[%c0_5, %c3] : memref<8x12xf32, #tpu.memory_space<smem>>
    %c0_6 = arith.constant 0 : index
    %c4 = arith.constant 4 : index
    %10 = memref.load %arg2[%c0_6, %c4] : memref<8x12xf32, #tpu.memory_space<smem>>
    %c0_7 = arith.constant 0 : index
    %c5 = arith.constant 5 : index
    %11 = memref.load %arg2[%c0_7, %c5] : memref<8x12xf32, #tpu.memory_space<smem>>
    %c0_8 = arith.constant 0 : index
    %c6 = arith.constant 6 : index
    %12 = memref.load %arg2[%c0_8, %c6] : memref<8x12xf32, #tpu.memory_space<smem>>
    %c0_9 = arith.constant 0 : index
    %c7 = arith.constant 7 : index
    %13 = memref.load %arg2[%c0_9, %c7] : memref<8x12xf32, #tpu.memory_space<smem>>
    %c0_10 = arith.constant 0 : index
    %c8 = arith.constant 8 : index
    %14 = memref.load %arg2[%c0_10, %c8] : memref<8x12xf32, #tpu.memory_space<smem>>
    %c0_11 = arith.constant 0 : index
    %c9 = arith.constant 9 : index
    %15 = memref.load %arg2[%c0_11, %c9] : memref<8x12xf32, #tpu.memory_space<smem>>
    %c0_12 = arith.constant 0 : index
    %c10 = arith.constant 10 : index
    %16 = memref.load %arg2[%c0_12, %c10] : memref<8x12xf32, #tpu.memory_space<smem>>
    %c0_13 = arith.constant 0 : index
    %c11 = arith.constant 11 : index
    %17 = memref.load %arg2[%c0_13, %c11] : memref<8x12xf32, #tpu.memory_space<smem>>
    %cst_14 = arith.constant 0.000000e+00 : f32
    %18 = vector.broadcast %cst_14 : f32 to vector<1x1xf32>
    %cst_15 = arith.constant 0.000000e+00 : f32
    %19 = vector.broadcast %cst_15 : f32 to vector<7x128xf32>
    %c0_16 = arith.constant 0 : index
    %c0_17 = arith.constant 0 : index
    %c0_18 = arith.constant 0 : index
    %20 = vector.load %arg1[%c0_16, %c0_17, %c0_18] : memref<8x8x128xf32, #tpu.memory_space<vmem>>, vector<1x7x128xf32>
    %21 = vector.shape_cast %20 : vector<1x7x128xf32> to vector<7x128xf32>
    %22 = vector.broadcast %6 : f32 to vector<7x128xf32>
    %23 = arith.mulf %22, %21 : vector<7x128xf32>
    %24 = arith.addf %19, %23 : vector<7x128xf32>
    %c1_19 = arith.constant 1 : index
    %c0_20 = arith.constant 0 : index
    %c0_21 = arith.constant 0 : index
    %25 = vector.load %arg1[%c1_19, %c0_20, %c0_21] : memref<8x8x128xf32, #tpu.memory_space<vmem>>, vector<1x7x128xf32>
    %26 = vector.shape_cast %25 : vector<1x7x128xf32> to vector<7x128xf32>
    %27 = vector.broadcast %7 : f32 to vector<7x128xf32>
    %28 = arith.mulf %27, %26 : vector<7x128xf32>
    %29 = arith.addf %24, %28 : vector<7x128xf32>
    %c0_22 = arith.constant 0 : index
    %c1_23 = arith.constant 1 : index
    %c0_24 = arith.constant 0 : index
    %30 = vector.load %arg1[%c0_22, %c1_23, %c0_24] : memref<8x8x128xf32, #tpu.memory_space<vmem>>, vector<1x7x128xf32>
    %31 = vector.shape_cast %30 : vector<1x7x128xf32> to vector<7x128xf32>
    %32 = vector.broadcast %8 : f32 to vector<7x128xf32>
    %33 = arith.mulf %32, %31 : vector<7x128xf32>
    %34 = arith.addf %29, %33 : vector<7x128xf32>
    %c2_25 = arith.constant 2 : index
    %c0_26 = arith.constant 0 : index
    %c0_27 = arith.constant 0 : index
    %35 = vector.load %arg1[%c2_25, %c0_26, %c0_27] : memref<8x8x128xf32, #tpu.memory_space<vmem>>, vector<1x7x128xf32>
    %36 = vector.shape_cast %35 : vector<1x7x128xf32> to vector<7x128xf32>
    %37 = vector.broadcast %9 : f32 to vector<7x128xf32>
    %38 = arith.mulf %37, %36 : vector<7x128xf32>
    %39 = arith.addf %34, %38 : vector<7x128xf32>
    %c3_28 = arith.constant 3 : index
    %c0_29 = arith.constant 0 : index
    %c0_30 = arith.constant 0 : index
    %40 = vector.load %arg1[%c3_28, %c0_29, %c0_30] : memref<8x8x128xf32, #tpu.memory_space<vmem>>, vector<1x7x128xf32>
    %41 = vector.shape_cast %40 : vector<1x7x128xf32> to vector<7x128xf32>
    %42 = vector.broadcast %10 : f32 to vector<7x128xf32>
    %43 = arith.mulf %42, %41 : vector<7x128xf32>
    %44 = arith.addf %39, %43 : vector<7x128xf32>
    %c2_31 = arith.constant 2 : index
    %c1_32 = arith.constant 1 : index
    %c0_33 = arith.constant 0 : index
    %45 = vector.load %arg1[%c2_31, %c1_32, %c0_33] : memref<8x8x128xf32, #tpu.memory_space<vmem>>, vector<1x7x128xf32>
    %46 = vector.shape_cast %45 : vector<1x7x128xf32> to vector<7x128xf32>
    %47 = vector.broadcast %11 : f32 to vector<7x128xf32>
    %48 = arith.mulf %47, %46 : vector<7x128xf32>
    %49 = arith.addf %44, %48 : vector<7x128xf32>
    %c4_34 = arith.constant 4 : index
    %c0_35 = arith.constant 0 : index
    %c0_36 = arith.constant 0 : index
    %50 = vector.load %arg1[%c4_34, %c0_35, %c0_36] : memref<8x8x128xf32, #tpu.memory_space<vmem>>, vector<1x7x128xf32>
    %51 = vector.shape_cast %50 : vector<1x7x128xf32> to vector<7x128xf32>
    %52 = vector.broadcast %12 : f32 to vector<7x128xf32>
    %53 = arith.mulf %52, %51 : vector<7x128xf32>
    %54 = arith.addf %49, %53 : vector<7x128xf32>
    %c5_37 = arith.constant 5 : index
    %c0_38 = arith.constant 0 : index
    %c0_39 = arith.constant 0 : index
    %55 = vector.load %arg1[%c5_37, %c0_38, %c0_39] : memref<8x8x128xf32, #tpu.memory_space<vmem>>, vector<1x7x128xf32>
    %56 = vector.shape_cast %55 : vector<1x7x128xf32> to vector<7x128xf32>
    %57 = vector.broadcast %13 : f32 to vector<7x128xf32>
    %58 = arith.mulf %57, %56 : vector<7x128xf32>
    %59 = arith.addf %54, %58 : vector<7x128xf32>
    %c4_40 = arith.constant 4 : index
    %c1_41 = arith.constant 1 : index
    %c0_42 = arith.constant 0 : index
    %60 = vector.load %arg1[%c4_40, %c1_41, %c0_42] : memref<8x8x128xf32, #tpu.memory_space<vmem>>, vector<1x7x128xf32>
    %61 = vector.shape_cast %60 : vector<1x7x128xf32> to vector<7x128xf32>
    %62 = vector.broadcast %14 : f32 to vector<7x128xf32>
    %63 = arith.mulf %62, %61 : vector<7x128xf32>
    %64 = arith.addf %59, %63 : vector<7x128xf32>
    %c6_43 = arith.constant 6 : index
    %c0_44 = arith.constant 0 : index
    %c0_45 = arith.constant 0 : index
    %65 = vector.load %arg1[%c6_43, %c0_44, %c0_45] : memref<8x8x128xf32, #tpu.memory_space<vmem>>, vector<1x7x128xf32>
    %66 = vector.shape_cast %65 : vector<1x7x128xf32> to vector<7x128xf32>
    %67 = vector.broadcast %15 : f32 to vector<7x128xf32>
    %68 = arith.mulf %67, %66 : vector<7x128xf32>
    %69 = arith.addf %64, %68 : vector<7x128xf32>
    %c7_46 = arith.constant 7 : index
    %c0_47 = arith.constant 0 : index
    %c0_48 = arith.constant 0 : index
    %70 = vector.load %arg1[%c7_46, %c0_47, %c0_48] : memref<8x8x128xf32, #tpu.memory_space<vmem>>, vector<1x7x128xf32>
    %71 = vector.shape_cast %70 : vector<1x7x128xf32> to vector<7x128xf32>
    %72 = vector.broadcast %16 : f32 to vector<7x128xf32>
    %73 = arith.mulf %72, %71 : vector<7x128xf32>
    %74 = arith.addf %69, %73 : vector<7x128xf32>
    %c6_49 = arith.constant 6 : index
    %c1_50 = arith.constant 1 : index
    %c0_51 = arith.constant 0 : index
    %75 = vector.load %arg1[%c6_49, %c1_50, %c0_51] : memref<8x8x128xf32, #tpu.memory_space<vmem>>, vector<1x7x128xf32>
    %76 = vector.shape_cast %75 : vector<1x7x128xf32> to vector<7x128xf32>
    %77 = vector.broadcast %17 : f32 to vector<7x128xf32>
    %78 = arith.mulf %77, %76 : vector<7x128xf32>
    %79 = arith.addf %74, %78 : vector<7x128xf32>
    %c0_52 = arith.constant 0 : index
    %c0_53 = arith.constant 0 : index
    %c0_54 = arith.constant 0 : index
    %80 = vector.load %arg3[%c0_52, %c0_53, %c0_54] : memref<8x7x128xf32, #tpu.memory_space<vmem>>, vector<1x7x128xf32>
    %81 = vector.shape_cast %80 : vector<1x7x128xf32> to vector<7x128xf32>
    %82 = vector.shape_cast %79 : vector<7x128xf32> to vector<1x7x128xf32>
    tpu.vector_store %arg3[%c0_52, %c0_53, %c0_54], %82 {strides = array<i32>} : memref<8x7x128xf32, #tpu.memory_space<vmem>>, vector<1x7x128xf32>,
    %83 = vector.shape_cast %79 : vector<7x128xf32> to vector<1x7x128xf32>
    %cst_55 = arith.constant dense<0.000000e+00> : vector<1xf32>
    %84 = vector.multi_reduction <add>, %83, %cst_55 [1, 2] : vector<1x7x128xf32> to vector<1xf32>
    %85 = vector.shape_cast %84 : vector<1xf32> to vector<1x1x1xf32>
    %86 = vector.extract %85[0, 0, 0] : f32 from vector<1x1x1xf32>
    %87 = vector.broadcast %86 : f32 to vector<1x1xf32>
    %88 = arith.addf %18, %87 : vector<1x1xf32>
    %89 = vector.broadcast %4 : f32 to vector<1x1xf32>
    %90 = arith.divf %88, %89 : vector<1x1xf32>
    %cst_56 = arith.constant 0.000000e+00 : f32
    %91 = vector.broadcast %cst_56 : f32 to vector<1x1xf32>
    %c0_57 = arith.constant 0 : index
    %c0_58 = arith.constant 0 : index
    %c0_59 = arith.constant 0 : index
    %92 = vector.load %arg3[%c0_57, %c0_58, %c0_59] : memref<8x7x128xf32, #tpu.memory_space<vmem>>, vector<1x7x128xf32>
    %93 = vector.shape_cast %92 : vector<1x7x128xf32> to vector<7x128xf32>
    %94 = vector.broadcast %90 : vector<1x1xf32> to vector<7x128xf32>
    %95 = arith.subf %93, %94 : vector<7x128xf32>
    %96 = arith.mulf %95, %95 : vector<7x128xf32>
    %97 = vector.shape_cast %96 : vector<7x128xf32> to vector<1x7x128xf32>
    %cst_60 = arith.constant dense<0.000000e+00> : vector<1xf32>
    %98 = vector.multi_reduction <add>, %97, %cst_60 [1, 2] : vector<1x7x128xf32> to vector<1xf32>
    %99 = vector.shape_cast %98 : vector<1xf32> to vector<1x1x1xf32>
    %100 = vector.extract %99[0, 0, 0] : f32 from vector<1x1x1xf32>
    %101 = vector.broadcast %100 : f32 to vector<1x1xf32>
    %102 = arith.addf %91, %101 : vector<1x1xf32>
    %103 = vector.broadcast %5 : f32 to vector<1x1xf32>
    %104 = arith.mulf %103, %90 : vector<1x1xf32>
    %105 = arith.mulf %104, %90 : vector<1x1xf32>
    %106 = arith.subf %102, %105 : vector<1x1xf32>
    %c0_61 = arith.constant 0 : index
    %c0_62 = arith.constant 0 : index
    %c0_63 = arith.constant 0 : index
    %107 = vector.load %arg4[%c0_61, %c0_62, %c0_63] : memref<1x8x2xf32, #tpu.memory_space<vmem>>, vector<1x1x1xf32>
    %108 = vector.shape_cast %107 : vector<1x1x1xf32> to vector<1x1xf32>
    %109 = vector.shape_cast %88 : vector<1x1xf32> to vector<1x1x1xf32>
    tpu.vector_store %arg4[%c0_61, %c0_62, %c0_63], %109 {strides = array<i32>} : memref<1x8x2xf32, #tpu.memory_space<vmem>>, vector<1x1x1xf32>,
    %c0_64 = arith.constant 0 : index
    %c0_65 = arith.constant 0 : index
    %c1_66 = arith.constant 1 : index
    %110 = vector.load %arg4[%c0_64, %c0_65, %c1_66] : memref<1x8x2xf32, #tpu.memory_space<vmem>>, vector<1x1x1xf32>
    %111 = vector.shape_cast %110 : vector<1x1x1xf32> to vector<1x1xf32>
    %112 = vector.shape_cast %106 : vector<1x1xf32> to vector<1x1x1xf32>
    tpu.vector_store %arg4[%c0_64, %c0_65, %c1_66], %112 {strides = array<i32>} : memref<1x8x2xf32, #tpu.memory_space<vmem>>, vector<1x1x1xf32>,
    %c1_67 = arith.constant 1 : index
    %c0_68 = arith.constant 0 : index
    %113 = memref.load %arg2[%c1_67, %c0_68] : memref<8x12xf32, #tpu.memory_space<smem>>
    %c1_69 = arith.constant 1 : index
    %c1_70 = arith.constant 1 : index
    %114 = memref.load %arg2[%c1_69, %c1_70] : memref<8x12xf32, #tpu.memory_space<smem>>
    %c1_71 = arith.constant 1 : index
    %c2_72 = arith.constant 2 : index
    %115 = memref.load %arg2[%c1_71, %c2_72] : memref<8x12xf32, #tpu.memory_space<smem>>
    %c1_73 = arith.constant 1 : index
    %c3_74 = arith.constant 3 : index
    %116 = memref.load %arg2[%c1_73, %c3_74] : memref<8x12xf32, #tpu.memory_space<smem>>
    %c1_75 = arith.constant 1 : index
    %c4_76 = arith.constant 4 : index
    %117 = memref.load %arg2[%c1_75, %c4_76] : memref<8x12xf32, #tpu.memory_space<smem>>
    %c1_77 = arith.constant 1 : index
    %c5_78 = arith.constant 5 : index
    %118 = memref.load %arg2[%c1_77, %c5_78] : memref<8x12xf32, #tpu.memory_space<smem>>
    %c1_79 = arith.constant 1 : index
    %c6_80 = arith.constant 6 : index
    %119 = memref.load %arg2[%c1_79, %c6_80] : memref<8x12xf32, #tpu.memory_space<smem>>
    %c1_81 = arith.constant 1 : index
    %c7_82 = arith.constant 7 : index
    %120 = memref.load %arg2[%c1_81, %c7_82] : memref<8x12xf32, #tpu.memory_space<smem>>
    %c1_83 = arith.constant 1 : index
    %c8_84 = arith.constant 8 : index
    %121 = memref.load %arg2[%c1_83, %c8_84] : memref<8x12xf32, #tpu.memory_space<smem>>
    %c1_85 = arith.constant 1 : index
    %c9_86 = arith.constant 9 : index
    %122 = memref.load %arg2[%c1_85, %c9_86] : memref<8x12xf32, #tpu.memory_space<smem>>
    %c1_87 = arith.constant 1 : index
    %c10_88 = arith.constant 10 : index
    %123 = memref.load %arg2[%c1_87, %c10_88] : memref<8x12xf32, #tpu.memory_space<smem>>
    %c1_89 = arith.constant 1 : index
    %c11_90 = arith.constant 11 : index
    %124 = memref.load %arg2[%c1_89, %c11_90] : memref<8x12xf32, #tpu.memory_space<smem>>
    %cst_91 = arith.constant 0.000000e+00 : f32
    %125 = vector.broadcast %cst_91 : f32 to vector<1x1xf32>
    %cst_92 = arith.constant 0.000000e+00 : f32
    %126 = vector.broadcast %cst_92 : f32 to vector<7x128xf32>
    %c0_93 = arith.constant 0 : index
    %c0_94 = arith.constant 0 : index
    %c0_95 = arith.constant 0 : index
    %127 = vector.load %arg1[%c0_93, %c0_94, %c0_95] : memref<8x8x128xf32, #tpu.memory_space<vmem>>, vector<1x7x128xf32>
    %128 = vector.shape_cast %127 : vector<1x7x128xf32> to vector<7x128xf32>
    %129 = vector.broadcast %113 : f32 to vector<7x128xf32>
    %130 = arith.mulf %129, %128 : vector<7x128xf32>
    %131 = arith.addf %126, %130 : vector<7x128xf32>
    %c1_96 = arith.constant 1 : index
    %c0_97 = arith.constant 0 : index
    %c0_98 = arith.constant 0 : index
    %132 = vector.load %arg1[%c1_96, %c0_97, %c0_98] : memref<8x8x128xf32, #tpu.memory_space<vmem>>, vector<1x7x128xf32>
    %133 = vector.shape_cast %132 : vector<1x7x128xf32> to vector<7x128xf32>
    %134 = vector.broadcast %114 : f32 to vector<7x128xf32>
    %135 = arith.mulf %134, %133 : vector<7x128xf32>
    %136 = arith.addf %131, %135 : vector<7x128xf32>
    %c0_99 = arith.constant 0 : index
    %c1_100 = arith.constant 1 : index
    %c0_101 = arith.constant 0 : index
    %137 = vector.load %arg1[%c0_99, %c1_100, %c0_101] : memref<8x8x128xf32, #tpu.memory_space<vmem>>, vector<1x7x128xf32>
    %138 = vector.shape_cast %137 : vector<1x7x128xf32> to vector<7x128xf32>
    %139 = vector.broadcast %115 : f32 to vector<7x128xf32>
    %140 = arith.mulf %139, %138 : vector<7x128xf32>
    %141 = arith.addf %136, %140 : vector<7x128xf32>
    %c2_102 = arith.constant 2 : index
    %c0_103 = arith.constant 0 : index
    %c0_104 = arith.constant 0 : index
    %142 = vector.load %arg1[%c2_102, %c0_103, %c0_104] : memref<8x8x128xf32, #tpu.memory_space<vmem>>, vector<1x7x128xf32>
    %143 = vector.shape_cast %142 : vector<1x7x128xf32> to vector<7x128xf32>
    %144 = vector.broadcast %116 : f32 to vector<7x128xf32>
    %145 = arith.mulf %144, %143 : vector<7x128xf32>
    %146 = arith.addf %141, %145 : vector<7x128xf32>
    %c3_105 = arith.constant 3 : index
    %c0_106 = arith.constant 0 : index
    %c0_107 = arith.constant 0 : index
    %147 = vector.load %arg1[%c3_105, %c0_106, %c0_107] : memref<8x8x128xf32, #tpu.memory_space<vmem>>, vector<1x7x128xf32>
    %148 = vector.shape_cast %147 : vector<1x7x128xf32> to vector<7x128xf32>
    %149 = vector.broadcast %117 : f32 to vector<7x128xf32>
    %150 = arith.mulf %149, %148 : vector<7x128xf32>
    %151 = arith.addf %146, %150 : vector<7x128xf32>
    %c2_108 = arith.constant 2 : index
    %c1_109 = arith.constant 1 : index
    %c0_110 = arith.constant 0 : index
    %152 = vector.load %arg1[%c2_108, %c1_109, %c0_110] : memref<8x8x128xf32, #tpu.memory_space<vmem>>, vector<1x7x128xf32>
    %153 = vector.shape_cast %152 : vector<1x7x128xf32> to vector<7x128xf32>
    %154 = vector.broadcast %118 : f32 to vector<7x128xf32>
    %155 = arith.mulf %154, %153 : vector<7x128xf32>
    %156 = arith.addf %151, %155 : vector<7x128xf32>
    %c4_111 = arith.constant 4 : index
    %c0_112 = arith.constant 0 : index
    %c0_113 = arith.constant 0 : index
    %157 = vector.load %arg1[%c4_111, %c0_112, %c0_113] : memref<8x8x128xf32, #tpu.memory_space<vmem>>, vector<1x7x128xf32>
    %158 = vector.shape_cast %157 : vector<1x7x128xf32> to vector<7x128xf32>
    %159 = vector.broadcast %119 : f32 to vector<7x128xf32>
    %160 = arith.mulf %159, %158 : vector<7x128xf32>
    %161 = arith.addf %156, %160 : vector<7x128xf32>
    %c5_114 = arith.constant 5 : index
    %c0_115 = arith.constant 0 : index
    %c0_116 = arith.constant 0 : index
    %162 = vector.load %arg1[%c5_114, %c0_115, %c0_116] : memref<8x8x128xf32, #tpu.memory_space<vmem>>, vector<1x7x128xf32>
    %163 = vector.shape_cast %162 : vector<1x7x128xf32> to vector<7x128xf32>
    %164 = vector.broadcast %120 : f32 to vector<7x128xf32>
    %165 = arith.mulf %164, %163 : vector<7x128xf32>
    %166 = arith.addf %161, %165 : vector<7x128xf32>
    %c4_117 = arith.constant 4 : index
    %c1_118 = arith.constant 1 : index
    %c0_119 = arith.constant 0 : index
    %167 = vector.load %arg1[%c4_117, %c1_118, %c0_119] : memref<8x8x128xf32, #tpu.memory_space<vmem>>, vector<1x7x128xf32>
    %168 = vector.shape_cast %167 : vector<1x7x128xf32> to vector<7x128xf32>
    %169 = vector.broadcast %121 : f32 to vector<7x128xf32>
    %170 = arith.mulf %169, %168 : vector<7x128xf32>
    %171 = arith.addf %166, %170 : vector<7x128xf32>
    %c6_120 = arith.constant 6 : index
    %c0_121 = arith.constant 0 : index
    %c0_122 = arith.constant 0 : index
    %172 = vector.load %arg1[%c6_120, %c0_121, %c0_122] : memref<8x8x128xf32, #tpu.memory_space<vmem>>, vector<1x7x128xf32>
    %173 = vector.shape_cast %172 : vector<1x7x128xf32> to vector<7x128xf32>
    %174 = vector.broadcast %122 : f32 to vector<7x128xf32>
    %175 = arith.mulf %174, %173 : vector<7x128xf32>
    %176 = arith.addf %171, %175 : vector<7x128xf32>
    %c7_123 = arith.constant 7 : index
    %c0_124 = arith.constant 0 : index
    %c0_125 = arith.constant 0 : index
    %177 = vector.load %arg1[%c7_123, %c0_124, %c0_125] : memref<8x8x128xf32, #tpu.memory_space<vmem>>, vector<1x7x128xf32>
    %178 = vector.shape_cast %177 : vector<1x7x128xf32> to vector<7x128xf32>
    %179 = vector.broadcast %123 : f32 to vector<7x128xf32>
    %180 = arith.mulf %179, %178 : vector<7x128xf32>
    %181 = arith.addf %176, %180 : vector<7x128xf32>
    %c6_126 = arith.constant 6 : index
    %c1_127 = arith.constant 1 : index
    %c0_128 = arith.constant 0 : index
    %182 = vector.load %arg1[%c6_126, %c1_127, %c0_128] : memref<8x8x128xf32, #tpu.memory_space<vmem>>, vector<1x7x128xf32>
    %183 = vector.shape_cast %182 : vector<1x7x128xf32> to vector<7x128xf32>
    %184 = vector.broadcast %124 : f32 to vector<7x128xf32>
    %185 = arith.mulf %184, %183 : vector<7x128xf32>
    %186 = arith.addf %181, %185 : vector<7x128xf32>
    %c1_129 = arith.constant 1 : index
    %c0_130 = arith.constant 0 : index
    %c0_131 = arith.constant 0 : index
    %187 = vector.load %arg3[%c1_129, %c0_130, %c0_131] : memref<8x7x128xf32, #tpu.memory_space<vmem>>, vector<1x7x128xf32>
    %188 = vector.shape_cast %187 : vector<1x7x128xf32> to vector<7x128xf32>
    %189 = vector.shape_cast %186 : vector<7x128xf32> to vector<1x7x128xf32>
    tpu.vector_store %arg3[%c1_129, %c0_130, %c0_131], %189 {strides = array<i32>} : memref<8x7x128xf32, #tpu.memory_space<vmem>>, vector<1x7x128xf32>,
    %190 = vector.shape_cast %186 : vector<7x128xf32> to vector<1x7x128xf32>
    %cst_132 = arith.constant dense<0.000000e+00> : vector<1xf32>
    %191 = vector.multi_reduction <add>, %190, %cst_132 [1, 2] : vector<1x7x128xf32> to vector<1xf32>
    %192 = vector.shape_cast %191 : vector<1xf32> to vector<1x1x1xf32>
    %193 = vector.extract %192[0, 0, 0] : f32 from vector<1x1x1xf32>
    %194 = vector.broadcast %193 : f32 to vector<1x1xf32>
    %195 = arith.addf %125, %194 : vector<1x1xf32>
    %196 = vector.broadcast %4 : f32 to vector<1x1xf32>
    %197 = arith.divf %195, %196 : vector<1x1xf32>
    %cst_133 = arith.constant 0.000000e+00 : f32
    %198 = vector.broadcast %cst_133 : f32 to vector<1x1xf32>
    %c1_134 = arith.constant 1 : index
    %c0_135 = arith.constant 0 : index
    %c0_136 = arith.constant 0 : index
    %199 = vector.load %arg3[%c1_134, %c0_135, %c0_136] : memref<8x7x128xf32, #tpu.memory_space<vmem>>, vector<1x7x128xf32>
    %200 = vector.shape_cast %199 : vector<1x7x128xf32> to vector<7x128xf32>
    %201 = vector.broadcast %197 : vector<1x1xf32> to vector<7x128xf32>
    %202 = arith.subf %200, %201 : vector<7x128xf32>
    %203 = arith.mulf %202, %202 : vector<7x128xf32>
    %204 = vector.shape_cast %203 : vector<7x128xf32> to vector<1x7x128xf32>
    %cst_137 = arith.constant dense<0.000000e+00> : vector<1xf32>
    %205 = vector.multi_reduction <add>, %204, %cst_137 [1, 2] : vector<1x7x128xf32> to vector<1xf32>
    %206 = vector.shape_cast %205 : vector<1xf32> to vector<1x1x1xf32>
    %207 = vector.extract %206[0, 0, 0] : f32 from vector<1x1x1xf32>
    %208 = vector.broadcast %207 : f32 to vector<1x1xf32>
    %209 = arith.addf %198, %208 : vector<1x1xf32>
    %210 = vector.broadcast %5 : f32 to vector<1x1xf32>
    %211 = arith.mulf %210, %197 : vector<1x1xf32>
    %212 = arith.mulf %211, %197 : vector<1x1xf32>
    %213 = arith.subf %209, %212 : vector<1x1xf32>
    %c0_138 = arith.constant 0 : index
    %c1_139 = arith.constant 1 : index
    %c0_140 = arith.constant 0 : index
    %214 = vector.load %arg4[%c0_138, %c1_139, %c0_140] : memref<1x8x2xf32, #tpu.memory_space<vmem>>, vector<1x1x1xf32>
    %215 = vector.shape_cast %214 : vector<1x1x1xf32> to vector<1x1xf32>
    %216 = vector.shape_cast %195 : vector<1x1xf32> to vector<1x1x1xf32>
    tpu.vector_store %arg4[%c0_138, %c1_139, %c0_140], %216 {strides = array<i32>} : memref<1x8x2xf32, #tpu.memory_space<vmem>>, vector<1x1x1xf32>,
    %c0_141 = arith.constant 0 : index
    %c1_142 = arith.constant 1 : index
    %c1_143 = arith.constant 1 : index
    %217 = vector.load %arg4[%c0_141, %c1_142, %c1_143] : memref<1x8x2xf32, #tpu.memory_space<vmem>>, vector<1x1x1xf32>
    %218 = vector.shape_cast %217 : vector<1x1x1xf32> to vector<1x1xf32>
    %219 = vector.shape_cast %213 : vector<1x1xf32> to vector<1x1x1xf32>
    tpu.vector_store %arg4[%c0_141, %c1_142, %c1_143], %219 {strides = array<i32>} : memref<1x8x2xf32, #tpu.memory_space<vmem>>, vector<1x1x1xf32>,
    %c2_144 = arith.constant 2 : index
    %c0_145 = arith.constant 0 : index
    %220 = memref.load %arg2[%c2_144, %c0_145] : memref<8x12xf32, #tpu.memory_space<smem>>
    %c2_146 = arith.constant 2 : index
    %c1_147 = arith.constant 1 : index
    %221 = memref.load %arg2[%c2_146, %c1_147] : memref<8x12xf32, #tpu.memory_space<smem>>
    %c2_148 = arith.constant 2 : index
    %c2_149 = arith.constant 2 : index
    %222 = memref.load %arg2[%c2_148, %c2_149] : memref<8x12xf32, #tpu.memory_space<smem>>
    %c2_150 = arith.constant 2 : index
    %c3_151 = arith.constant 3 : index
    %223 = memref.load %arg2[%c2_150, %c3_151] : memref<8x12xf32, #tpu.memory_space<smem>>
    %c2_152 = arith.constant 2 : index
    %c4_153 = arith.constant 4 : index
    %224 = memref.load %arg2[%c2_152, %c4_153] : memref<8x12xf32, #tpu.memory_space<smem>>
    %c2_154 = arith.constant 2 : index
    %c5_155 = arith.constant 5 : index
    %225 = memref.load %arg2[%c2_154, %c5_155] : memref<8x12xf32, #tpu.memory_space<smem>>
    %c2_156 = arith.constant 2 : index
    %c6_157 = arith.constant 6 : index
    %226 = memref.load %arg2[%c2_156, %c6_157] : memref<8x12xf32, #tpu.memory_space<smem>>
    %c2_158 = arith.constant 2 : index
    %c7_159 = arith.constant 7 : index
    %227 = memref.load %arg2[%c2_158, %c7_159] : memref<8x12xf32, #tpu.memory_space<smem>>
    %c2_160 = arith.constant 2 : index
    %c8_161 = arith.constant 8 : index
    %228 = memref.load %arg2[%c2_160, %c8_161] : memref<8x12xf32, #tpu.memory_space<smem>>
    %c2_162 = arith.constant 2 : index
    %c9_163 = arith.constant 9 : index
    %229 = memref.load %arg2[%c2_162, %c9_163] : memref<8x12xf32, #tpu.memory_space<smem>>
    %c2_164 = arith.constant 2 : index
    %c10_165 = arith.constant 10 : index
    %230 = memref.load %arg2[%c2_164, %c10_165] : memref<8x12xf32, #tpu.memory_space<smem>>
    %c2_166 = arith.constant 2 : index
    %c11_167 = arith.constant 11 : index
    %231 = memref.load %arg2[%c2_166, %c11_167] : memref<8x12xf32, #tpu.memory_space<smem>>
    %cst_168 = arith.constant 0.000000e+00 : f32
    %232 = vector.broadcast %cst_168 : f32 to vector<1x1xf32>
    %cst_169 = arith.constant 0.000000e+00 : f32
    %233 = vector.broadcast %cst_169 : f32 to vector<7x128xf32>
    %c0_170 = arith.constant 0 : index
    %c0_171 = arith.constant 0 : index
    %c0_172 = arith.constant 0 : index
    %234 = vector.load %arg1[%c0_170, %c0_171, %c0_172] : memref<8x8x128xf32, #tpu.memory_space<vmem>>, vector<1x7x128xf32>
    %235 = vector.shape_cast %234 : vector<1x7x128xf32> to vector<7x128xf32>
    %236 = vector.broadcast %220 : f32 to vector<7x128xf32>
    %237 = arith.mulf %236, %235 : vector<7x128xf32>
    %238 = arith.addf %233, %237 : vector<7x128xf32>
    %c1_173 = arith.constant 1 : index
    %c0_174 = arith.constant 0 : index
    %c0_175 = arith.constant 0 : index
    %239 = vector.load %arg1[%c1_173, %c0_174, %c0_175] : memref<8x8x128xf32, #tpu.memory_space<vmem>>, vector<1x7x128xf32>
    %240 = vector.shape_cast %239 : vector<1x7x128xf32> to vector<7x128xf32>
    %241 = vector.broadcast %221 : f32 to vector<7x128xf32>
    %242 = arith.mulf %241, %240 : vector<7x128xf32>
    %243 = arith.addf %238, %242 : vector<7x128xf32>
    %c0_176 = arith.constant 0 : index
    %c1_177 = arith.constant 1 : index
    %c0_178 = arith.constant 0 : index
    %244 = vector.load %arg1[%c0_176, %c1_177, %c0_178] : memref<8x8x128xf32, #tpu.memory_space<vmem>>, vector<1x7x128xf32>
    %245 = vector.shape_cast %244 : vector<1x7x128xf32> to vector<7x128xf32>
    %246 = vector.broadcast %222 : f32 to vector<7x128xf32>
    %247 = arith.mulf %246, %245 : vector<7x128xf32>
    %248 = arith.addf %243, %247 : vector<7x128xf32>
    %c2_179 = arith.constant 2 : index
    %c0_180 = arith.constant 0 : index
    %c0_181 = arith.constant 0 : index
    %249 = vector.load %arg1[%c2_179, %c0_180, %c0_181] : memref<8x8x128xf32, #tpu.memory_space<vmem>>, vector<1x7x128xf32>
    %250 = vector.shape_cast %249 : vector<1x7x128xf32> to vector<7x128xf32>
    %251 = vector.broadcast %223 : f32 to vector<7x128xf32>
    %252 = arith.mulf %251, %250 : vector<7x128xf32>
    %253 = arith.addf %248, %252 : vector<7x128xf32>
    %c3_182 = arith.constant 3 : index
    %c0_183 = arith.constant 0 : index
    %c0_184 = arith.constant 0 : index
    %254 = vector.load %arg1[%c3_182, %c0_183, %c0_184] : memref<8x8x128xf32, #tpu.memory_space<vmem>>, vector<1x7x128xf32>
    %255 = vector.shape_cast %254 : vector<1x7x128xf32> to vector<7x128xf32>
    %256 = vector.broadcast %224 : f32 to vector<7x128xf32>
    %257 = arith.mulf %256, %255 : vector<7x128xf32>
    %258 = arith.addf %253, %257 : vector<7x128xf32>
    %c2_185 = arith.constant 2 : index
    %c1_186 = arith.constant 1 : index
    %c0_187 = arith.constant 0 : index
    %259 = vector.load %arg1[%c2_185, %c1_186, %c0_187] : memref<8x8x128xf32, #tpu.memory_space<vmem>>, vector<1x7x128xf32>
    %260 = vector.shape_cast %259 : vector<1x7x128xf32> to vector<7x128xf32>
    %261 = vector.broadcast %225 : f32 to vector<7x128xf32>
    %262 = arith.mulf %261, %260 : vector<7x128xf32>
    %263 = arith.addf %258, %262 : vector<7x128xf32>
    %c4_188 = arith.constant 4 : index
    %c0_189 = arith.constant 0 : index
    %c0_190 = arith.constant 0 : index
    %264 = vector.load %arg1[%c4_188, %c0_189, %c0_190] : memref<8x8x128xf32, #tpu.memory_space<vmem>>, vector<1x7x128xf32>
    %265 = vector.shape_cast %264 : vector<1x7x128xf32> to vector<7x128xf32>
    %266 = vector.broadcast %226 : f32 to vector<7x128xf32>
    %267 = arith.mulf %266, %265 : vector<7x128xf32>
    %268 = arith.addf %263, %267 : vector<7x128xf32>
    %c5_191 = arith.constant 5 : index
    %c0_192 = arith.constant 0 : index
    %c0_193 = arith.constant 0 : index
    %269 = vector.load %arg1[%c5_191, %c0_192, %c0_193] : memref<8x8x128xf32, #tpu.memory_space<vmem>>, vector<1x7x128xf32>
    %270 = vector.shape_cast %269 : vector<1x7x128xf32> to vector<7x128xf32>
    %271 = vector.broadcast %227 : f32 to vector<7x128xf32>
    %272 = arith.mulf %271, %270 : vector<7x128xf32>
    %273 = arith.addf %268, %272 : vector<7x128xf32>
    %c4_194 = arith.constant 4 : index
    %c1_195 = arith.constant 1 : index
    %c0_196 = arith.constant 0 : index
    %274 = vector.load %arg1[%c4_194, %c1_195, %c0_196] : memref<8x8x128xf32, #tpu.memory_space<vmem>>, vector<1x7x128xf32>
    %275 = vector.shape_cast %274 : vector<1x7x128xf32> to vector<7x128xf32>
    %276 = vector.broadcast %228 : f32 to vector<7x128xf32>
    %277 = arith.mulf %276, %275 : vector<7x128xf32>
    %278 = arith.addf %273, %277 : vector<7x128xf32>
    %c6_197 = arith.constant 6 : index
    %c0_198 = arith.constant 0 : index
    %c0_199 = arith.constant 0 : index
    %279 = vector.load %arg1[%c6_197, %c0_198, %c0_199] : memref<8x8x128xf32, #tpu.memory_space<vmem>>, vector<1x7x128xf32>
    %280 = vector.shape_cast %279 : vector<1x7x128xf32> to vector<7x128xf32>
    %281 = vector.broadcast %229 : f32 to vector<7x128xf32>
    %282 = arith.mulf %281, %280 : vector<7x128xf32>
    %283 = arith.addf %278, %282 : vector<7x128xf32>
    %c7_200 = arith.constant 7 : index
    %c0_201 = arith.constant 0 : index
    %c0_202 = arith.constant 0 : index
    %284 = vector.load %arg1[%c7_200, %c0_201, %c0_202] : memref<8x8x128xf32, #tpu.memory_space<vmem>>, vector<1x7x128xf32>
    %285 = vector.shape_cast %284 : vector<1x7x128xf32> to vector<7x128xf32>
    %286 = vector.broadcast %230 : f32 to vector<7x128xf32>
    %287 = arith.mulf %286, %285 : vector<7x128xf32>
    %288 = arith.addf %283, %287 : vector<7x128xf32>
    %c6_203 = arith.constant 6 : index
    %c1_204 = arith.constant 1 : index
    %c0_205 = arith.constant 0 : index
    %289 = vector.load %arg1[%c6_203, %c1_204, %c0_205] : memref<8x8x128xf32, #tpu.memory_space<vmem>>, vector<1x7x128xf32>
    %290 = vector.shape_cast %289 : vector<1x7x128xf32> to vector<7x128xf32>
    %291 = vector.broadcast %231 : f32 to vector<7x128xf32>
    %292 = arith.mulf %291, %290 : vector<7x128xf32>
    %293 = arith.addf %288, %292 : vector<7x128xf32>
    %c2_206 = arith.constant 2 : index
    %c0_207 = arith.constant 0 : index
    %c0_208 = arith.constant 0 : index
    %294 = vector.load %arg3[%c2_206, %c0_207, %c0_208] : memref<8x7x128xf32, #tpu.memory_space<vmem>>, vector<1x7x128xf32>
    %295 = vector.shape_cast %294 : vector<1x7x128xf32> to vector<7x128xf32>
    %296 = vector.shape_cast %293 : vector<7x128xf32> to vector<1x7x128xf32>
    tpu.vector_store %arg3[%c2_206, %c0_207, %c0_208], %296 {strides = array<i32>} : memref<8x7x128xf32, #tpu.memory_space<vmem>>, vector<1x7x128xf32>,
    %297 = vector.shape_cast %293 : vector<7x128xf32> to vector<1x7x128xf32>
    %cst_209 = arith.constant dense<0.000000e+00> : vector<1xf32>
    %298 = vector.multi_reduction <add>, %297, %cst_209 [1, 2] : vector<1x7x128xf32> to vector<1xf32>
    %299 = vector.shape_cast %298 : vector<1xf32> to vector<1x1x1xf32>
    %300 = vector.extract %299[0, 0, 0] : f32 from vector<1x1x1xf32>
    %301 = vector.broadcast %300 : f32 to vector<1x1xf32>
    %302 = arith.addf %232, %301 : vector<1x1xf32>
    %303 = vector.broadcast %4 : f32 to vector<1x1xf32>
    %304 = arith.divf %302, %303 : vector<1x1xf32>
    %cst_210 = arith.constant 0.000000e+00 : f32
    %305 = vector.broadcast %cst_210 : f32 to vector<1x1xf32>
    %c2_211 = arith.constant 2 : index
    %c0_212 = arith.constant 0 : index
    %c0_213 = arith.constant 0 : index
    %306 = vector.load %arg3[%c2_211, %c0_212, %c0_213] : memref<8x7x128xf32, #tpu.memory_space<vmem>>, vector<1x7x128xf32>
    %307 = vector.shape_cast %306 : vector<1x7x128xf32> to vector<7x128xf32>
    %308 = vector.broadcast %304 : vector<1x1xf32> to vector<7x128xf32>
    %309 = arith.subf %307, %308 : vector<7x128xf32>
    %310 = arith.mulf %309, %309 : vector<7x128xf32>
    %311 = vector.shape_cast %310 : vector<7x128xf32> to vector<1x7x128xf32>
    %cst_214 = arith.constant dense<0.000000e+00> : vector<1xf32>
    %312 = vector.multi_reduction <add>, %311, %cst_214 [1, 2] : vector<1x7x128xf32> to vector<1xf32>
    %313 = vector.shape_cast %312 : vector<1xf32> to vector<1x1x1xf32>
    %314 = vector.extract %313[0, 0, 0] : f32 from vector<1x1x1xf32>
    %315 = vector.broadcast %314 : f32 to vector<1x1xf32>
    %316 = arith.addf %305, %315 : vector<1x1xf32>
    %317 = vector.broadcast %5 : f32 to vector<1x1xf32>
    %318 = arith.mulf %317, %304 : vector<1x1xf32>
    %319 = arith.mulf %318, %304 : vector<1x1xf32>
    %320 = arith.subf %316, %319 : vector<1x1xf32>
    %c0_215 = arith.constant 0 : index
    %c2_216 = arith.constant 2 : index
    %c0_217 = arith.constant 0 : index
    %321 = vector.load %arg4[%c0_215, %c2_216, %c0_217] : memref<1x8x2xf32, #tpu.memory_space<vmem>>, vector<1x1x1xf32>
    %322 = vector.shape_cast %321 : vector<1x1x1xf32> to vector<1x1xf32>
    %323 = vector.shape_cast %302 : vector<1x1xf32> to vector<1x1x1xf32>
    tpu.vector_store %arg4[%c0_215, %c2_216, %c0_217], %323 {strides = array<i32>} : memref<1x8x2xf32, #tpu.memory_space<vmem>>, vector<1x1x1xf32>,
    %c0_218 = arith.constant 0 : index
    %c2_219 = arith.constant 2 : index
    %c1_220 = arith.constant 1 : index
    %324 = vector.load %arg4[%c0_218, %c2_219, %c1_220] : memref<1x8x2xf32, #tpu.memory_space<vmem>>, vector<1x1x1xf32>
    %325 = vector.shape_cast %324 : vector<1x1x1xf32> to vector<1x1xf32>
    %326 = vector.shape_cast %320 : vector<1x1xf32> to vector<1x1x1xf32>
    tpu.vector_store %arg4[%c0_218, %c2_219, %c1_220], %326 {strides = array<i32>} : memref<1x8x2xf32, #tpu.memory_space<vmem>>, vector<1x1x1xf32>,
    %c3_221 = arith.constant 3 : index
    %c0_222 = arith.constant 0 : index
    %327 = memref.load %arg2[%c3_221, %c0_222] : memref<8x12xf32, #tpu.memory_space<smem>>
    %c3_223 = arith.constant 3 : index
    %c1_224 = arith.constant 1 : index
    %328 = memref.load %arg2[%c3_223, %c1_224] : memref<8x12xf32, #tpu.memory_space<smem>>
    %c3_225 = arith.constant 3 : index
    %c2_226 = arith.constant 2 : index
    %329 = memref.load %arg2[%c3_225, %c2_226] : memref<8x12xf32, #tpu.memory_space<smem>>
    %c3_227 = arith.constant 3 : index
    %c3_228 = arith.constant 3 : index
    %330 = memref.load %arg2[%c3_227, %c3_228] : memref<8x12xf32, #tpu.memory_space<smem>>
    %c3_229 = arith.constant 3 : index
    %c4_230 = arith.constant 4 : index
    %331 = memref.load %arg2[%c3_229, %c4_230] : memref<8x12xf32, #tpu.memory_space<smem>>
    %c3_231 = arith.constant 3 : index
    %c5_232 = arith.constant 5 : index
    %332 = memref.load %arg2[%c3_231, %c5_232] : memref<8x12xf32, #tpu.memory_space<smem>>
    %c3_233 = arith.constant 3 : index
    %c6_234 = arith.constant 6 : index
    %333 = memref.load %arg2[%c3_233, %c6_234] : memref<8x12xf32, #tpu.memory_space<smem>>
    %c3_235 = arith.constant 3 : index
    %c7_236 = arith.constant 7 : index
    %334 = memref.load %arg2[%c3_235, %c7_236] : memref<8x12xf32, #tpu.memory_space<smem>>
    %c3_237 = arith.constant 3 : index
    %c8_238 = arith.constant 8 : index
    %335 = memref.load %arg2[%c3_237, %c8_238] : memref<8x12xf32, #tpu.memory_space<smem>>
    %c3_239 = arith.constant 3 : index
    %c9_240 = arith.constant 9 : index
    %336 = memref.load %arg2[%c3_239, %c9_240] : memref<8x12xf32, #tpu.memory_space<smem>>
    %c3_241 = arith.constant 3 : index
    %c10_242 = arith.constant 10 : index
    %337 = memref.load %arg2[%c3_241, %c10_242] : memref<8x12xf32, #tpu.memory_space<smem>>
    %c3_243 = arith.constant 3 : index
    %c11_244 = arith.constant 11 : index
    %338 = memref.load %arg2[%c3_243, %c11_244] : memref<8x12xf32, #tpu.memory_space<smem>>
    %cst_245 = arith.constant 0.000000e+00 : f32
    %339 = vector.broadcast %cst_245 : f32 to vector<1x1xf32>
    %cst_246 = arith.constant 0.000000e+00 : f32
    %340 = vector.broadcast %cst_246 : f32 to vector<7x128xf32>
    %c0_247 = arith.constant 0 : index
    %c0_248 = arith.constant 0 : index
    %c0_249 = arith.constant 0 : index
    %341 = vector.load %arg1[%c0_247, %c0_248, %c0_249] : memref<8x8x128xf32, #tpu.memory_space<vmem>>, vector<1x7x128xf32>
    %342 = vector.shape_cast %341 : vector<1x7x128xf32> to vector<7x128xf32>
    %343 = vector.broadcast %327 : f32 to vector<7x128xf32>
    %344 = arith.mulf %343, %342 : vector<7x128xf32>
    %345 = arith.addf %340, %344 : vector<7x128xf32>
    %c1_250 = arith.constant 1 : index
    %c0_251 = arith.constant 0 : index
    %c0_252 = arith.constant 0 : index
    %346 = vector.load %arg1[%c1_250, %c0_251, %c0_252] : memref<8x8x128xf32, #tpu.memory_space<vmem>>, vector<1x7x128xf32>
    %347 = vector.shape_cast %346 : vector<1x7x128xf32> to vector<7x128xf32>
    %348 = vector.broadcast %328 : f32 to vector<7x128xf32>
    %349 = arith.mulf %348, %347 : vector<7x128xf32>
    %350 = arith.addf %345, %349 : vector<7x128xf32>
    %c0_253 = arith.constant 0 : index
    %c1_254 = arith.constant 1 : index
    %c0_255 = arith.constant 0 : index
    %351 = vector.load %arg1[%c0_253, %c1_254, %c0_255] : memref<8x8x128xf32, #tpu.memory_space<vmem>>, vector<1x7x128xf32>
    %352 = vector.shape_cast %351 : vector<1x7x128xf32> to vector<7x128xf32>
    %353 = vector.broadcast %329 : f32 to vector<7x128xf32>
    %354 = arith.mulf %353, %352 : vector<7x128xf32>
    %355 = arith.addf %350, %354 : vector<7x128xf32>
    %c2_256 = arith.constant 2 : index
    %c0_257 = arith.constant 0 : index
    %c0_258 = arith.constant 0 : index
    %356 = vector.load %arg1[%c2_256, %c0_257, %c0_258] : memref<8x8x128xf32, #tpu.memory_space<vmem>>, vector<1x7x128xf32>
    %357 = vector.shape_cast %356 : vector<1x7x128xf32> to vector<7x128xf32>
    %358 = vector.broadcast %330 : f32 to vector<7x128xf32>
    %359 = arith.mulf %358, %357 : vector<7x128xf32>
    %360 = arith.addf %355, %359 : vector<7x128xf32>
    %c3_259 = arith.constant 3 : index
    %c0_260 = arith.constant 0 : index
    %c0_261 = arith.constant 0 : index
    %361 = vector.load %arg1[%c3_259, %c0_260, %c0_261] : memref<8x8x128xf32, #tpu.memory_space<vmem>>, vector<1x7x128xf32>
    %362 = vector.shape_cast %361 : vector<1x7x128xf32> to vector<7x128xf32>
    %363 = vector.broadcast %331 : f32 to vector<7x128xf32>
    %364 = arith.mulf %363, %362 : vector<7x128xf32>
    %365 = arith.addf %360, %364 : vector<7x128xf32>
    %c2_262 = arith.constant 2 : index
    %c1_263 = arith.constant 1 : index
    %c0_264 = arith.constant 0 : index
    %366 = vector.load %arg1[%c2_262, %c1_263, %c0_264] : memref<8x8x128xf32, #tpu.memory_space<vmem>>, vector<1x7x128xf32>
    %367 = vector.shape_cast %366 : vector<1x7x128xf32> to vector<7x128xf32>
    %368 = vector.broadcast %332 : f32 to vector<7x128xf32>
    %369 = arith.mulf %368, %367 : vector<7x128xf32>
    %370 = arith.addf %365, %369 : vector<7x128xf32>
    %c4_265 = arith.constant 4 : index
    %c0_266 = arith.constant 0 : index
    %c0_267 = arith.constant 0 : index
    %371 = vector.load %arg1[%c4_265, %c0_266, %c0_267] : memref<8x8x128xf32, #tpu.memory_space<vmem>>, vector<1x7x128xf32>
    %372 = vector.shape_cast %371 : vector<1x7x128xf32> to vector<7x128xf32>
    %373 = vector.broadcast %333 : f32 to vector<7x128xf32>
    %374 = arith.mulf %373, %372 : vector<7x128xf32>
    %375 = arith.addf %370, %374 : vector<7x128xf32>
    %c5_268 = arith.constant 5 : index
    %c0_269 = arith.constant 0 : index
    %c0_270 = arith.constant 0 : index
    %376 = vector.load %arg1[%c5_268, %c0_269, %c0_270] : memref<8x8x128xf32, #tpu.memory_space<vmem>>, vector<1x7x128xf32>
    %377 = vector.shape_cast %376 : vector<1x7x128xf32> to vector<7x128xf32>
    %378 = vector.broadcast %334 : f32 to vector<7x128xf32>
    %379 = arith.mulf %378, %377 : vector<7x128xf32>
    %380 = arith.addf %375, %379 : vector<7x128xf32>
    %c4_271 = arith.constant 4 : index
    %c1_272 = arith.constant 1 : index
    %c0_273 = arith.constant 0 : index
    %381 = vector.load %arg1[%c4_271, %c1_272, %c0_273] : memref<8x8x128xf32, #tpu.memory_space<vmem>>, vector<1x7x128xf32>
    %382 = vector.shape_cast %381 : vector<1x7x128xf32> to vector<7x128xf32>
    %383 = vector.broadcast %335 : f32 to vector<7x128xf32>
    %384 = arith.mulf %383, %382 : vector<7x128xf32>
    %385 = arith.addf %380, %384 : vector<7x128xf32>
    %c6_274 = arith.constant 6 : index
    %c0_275 = arith.constant 0 : index
    %c0_276 = arith.constant 0 : index
    %386 = vector.load %arg1[%c6_274, %c0_275, %c0_276] : memref<8x8x128xf32, #tpu.memory_space<vmem>>, vector<1x7x128xf32>
    %387 = vector.shape_cast %386 : vector<1x7x128xf32> to vector<7x128xf32>
    %388 = vector.broadcast %336 : f32 to vector<7x128xf32>
    %389 = arith.mulf %388, %387 : vector<7x128xf32>
    %390 = arith.addf %385, %389 : vector<7x128xf32>
    %c7_277 = arith.constant 7 : index
    %c0_278 = arith.constant 0 : index
    %c0_279 = arith.constant 0 : index
    %391 = vector.load %arg1[%c7_277, %c0_278, %c0_279] : memref<8x8x128xf32, #tpu.memory_space<vmem>>, vector<1x7x128xf32>
    %392 = vector.shape_cast %391 : vector<1x7x128xf32> to vector<7x128xf32>
    %393 = vector.broadcast %337 : f32 to vector<7x128xf32>
    %394 = arith.mulf %393, %392 : vector<7x128xf32>
    %395 = arith.addf %390, %394 : vector<7x128xf32>
    %c6_280 = arith.constant 6 : index
    %c1_281 = arith.constant 1 : index
    %c0_282 = arith.constant 0 : index
    %396 = vector.load %arg1[%c6_280, %c1_281, %c0_282] : memref<8x8x128xf32, #tpu.memory_space<vmem>>, vector<1x7x128xf32>
    %397 = vector.shape_cast %396 : vector<1x7x128xf32> to vector<7x128xf32>
    %398 = vector.broadcast %338 : f32 to vector<7x128xf32>
    %399 = arith.mulf %398, %397 : vector<7x128xf32>
    %400 = arith.addf %395, %399 : vector<7x128xf32>
    %c3_283 = arith.constant 3 : index
    %c0_284 = arith.constant 0 : index
    %c0_285 = arith.constant 0 : index
    %401 = vector.load %arg3[%c3_283, %c0_284, %c0_285] : memref<8x7x128xf32, #tpu.memory_space<vmem>>, vector<1x7x128xf32>
    %402 = vector.shape_cast %401 : vector<1x7x128xf32> to vector<7x128xf32>
    %403 = vector.shape_cast %400 : vector<7x128xf32> to vector<1x7x128xf32>
    tpu.vector_store %arg3[%c3_283, %c0_284, %c0_285], %403 {strides = array<i32>} : memref<8x7x128xf32, #tpu.memory_space<vmem>>, vector<1x7x128xf32>,
    %404 = vector.shape_cast %400 : vector<7x128xf32> to vector<1x7x128xf32>
    %cst_286 = arith.constant dense<0.000000e+00> : vector<1xf32>
    %405 = vector.multi_reduction <add>, %404, %cst_286 [1, 2] : vector<1x7x128xf32> to vector<1xf32>
    %406 = vector.shape_cast %405 : vector<1xf32> to vector<1x1x1xf32>
    %407 = vector.extract %406[0, 0, 0] : f32 from vector<1x1x1xf32>
    %408 = vector.broadcast %407 : f32 to vector<1x1xf32>
    %409 = arith.addf %339, %408 : vector<1x1xf32>
    %410 = vector.broadcast %4 : f32 to vector<1x1xf32>
    %411 = arith.divf %409, %410 : vector<1x1xf32>
    %cst_287 = arith.constant 0.000000e+00 : f32
    %412 = vector.broadcast %cst_287 : f32 to vector<1x1xf32>
    %c3_288 = arith.constant 3 : index
    %c0_289 = arith.constant 0 : index
    %c0_290 = arith.constant 0 : index
    %413 = vector.load %arg3[%c3_288, %c0_289, %c0_290] : memref<8x7x128xf32, #tpu.memory_space<vmem>>, vector<1x7x128xf32>
    %414 = vector.shape_cast %413 : vector<1x7x128xf32> to vector<7x128xf32>
    %415 = vector.broadcast %411 : vector<1x1xf32> to vector<7x128xf32>
    %416 = arith.subf %414, %415 : vector<7x128xf32>
    %417 = arith.mulf %416, %416 : vector<7x128xf32>
    %418 = vector.shape_cast %417 : vector<7x128xf32> to vector<1x7x128xf32>
    %cst_291 = arith.constant dense<0.000000e+00> : vector<1xf32>
    %419 = vector.multi_reduction <add>, %418, %cst_291 [1, 2] : vector<1x7x128xf32> to vector<1xf32>
    %420 = vector.shape_cast %419 : vector<1xf32> to vector<1x1x1xf32>
    %421 = vector.extract %420[0, 0, 0] : f32 from vector<1x1x1xf32>
    %422 = vector.broadcast %421 : f32 to vector<1x1xf32>
    %423 = arith.addf %412, %422 : vector<1x1xf32>
    %424 = vector.broadcast %5 : f32 to vector<1x1xf32>
    %425 = arith.mulf %424, %411 : vector<1x1xf32>
    %426 = arith.mulf %425, %411 : vector<1x1xf32>
    %427 = arith.subf %423, %426 : vector<1x1xf32>
    %c0_292 = arith.constant 0 : index
    %c3_293 = arith.constant 3 : index
    %c0_294 = arith.constant 0 : index
    %428 = vector.load %arg4[%c0_292, %c3_293, %c0_294] : memref<1x8x2xf32, #tpu.memory_space<vmem>>, vector<1x1x1xf32>
    %429 = vector.shape_cast %428 : vector<1x1x1xf32> to vector<1x1xf32>
    %430 = vector.shape_cast %409 : vector<1x1xf32> to vector<1x1x1xf32>
    tpu.vector_store %arg4[%c0_292, %c3_293, %c0_294], %430 {strides = array<i32>} : memref<1x8x2xf32, #tpu.memory_space<vmem>>, vector<1x1x1xf32>,
    %c0_295 = arith.constant 0 : index
    %c3_296 = arith.constant 3 : index
    %c1_297 = arith.constant 1 : index
    %431 = vector.load %arg4[%c0_295, %c3_296, %c1_297] : memref<1x8x2xf32, #tpu.memory_space<vmem>>, vector<1x1x1xf32>
    %432 = vector.shape_cast %431 : vector<1x1x1xf32> to vector<1x1xf32>
    %433 = vector.shape_cast %427 : vector<1x1xf32> to vector<1x1x1xf32>
    tpu.vector_store %arg4[%c0_295, %c3_296, %c1_297], %433 {strides = array<i32>} : memref<1x8x2xf32, #tpu.memory_space<vmem>>, vector<1x1x1xf32>,
    %c4_298 = arith.constant 4 : index
    %c0_299 = arith.constant 0 : index
    %434 = memref.load %arg2[%c4_298, %c0_299] : memref<8x12xf32, #tpu.memory_space<smem>>
    %c4_300 = arith.constant 4 : index
    %c1_301 = arith.constant 1 : index
    %435 = memref.load %arg2[%c4_300, %c1_301] : memref<8x12xf32, #tpu.memory_space<smem>>
    %c4_302 = arith.constant 4 : index
    %c2_303 = arith.constant 2 : index
    %436 = memref.load %arg2[%c4_302, %c2_303] : memref<8x12xf32, #tpu.memory_space<smem>>
    %c4_304 = arith.constant 4 : index
    %c3_305 = arith.constant 3 : index
    %437 = memref.load %arg2[%c4_304, %c3_305] : memref<8x12xf32, #tpu.memory_space<smem>>
    %c4_306 = arith.constant 4 : index
    %c4_307 = arith.constant 4 : index
    %438 = memref.load %arg2[%c4_306, %c4_307] : memref<8x12xf32, #tpu.memory_space<smem>>
    %c4_308 = arith.constant 4 : index
    %c5_309 = arith.constant 5 : index
    %439 = memref.load %arg2[%c4_308, %c5_309] : memref<8x12xf32, #tpu.memory_space<smem>>
    %c4_310 = arith.constant 4 : index
    %c6_311 = arith.constant 6 : index
    %440 = memref.load %arg2[%c4_310, %c6_311] : memref<8x12xf32, #tpu.memory_space<smem>>
    %c4_312 = arith.constant 4 : index
    %c7_313 = arith.constant 7 : index
    %441 = memref.load %arg2[%c4_312, %c7_313] : memref<8x12xf32, #tpu.memory_space<smem>>
    %c4_314 = arith.constant 4 : index
    %c8_315 = arith.constant 8 : index
    %442 = memref.load %arg2[%c4_314, %c8_315] : memref<8x12xf32, #tpu.memory_space<smem>>
    %c4_316 = arith.constant 4 : index
    %c9_317 = arith.constant 9 : index
    %443 = memref.load %arg2[%c4_316, %c9_317] : memref<8x12xf32, #tpu.memory_space<smem>>
    %c4_318 = arith.constant 4 : index
    %c10_319 = arith.constant 10 : index
    %444 = memref.load %arg2[%c4_318, %c10_319] : memref<8x12xf32, #tpu.memory_space<smem>>
    %c4_320 = arith.constant 4 : index
    %c11_321 = arith.constant 11 : index
    %445 = memref.load %arg2[%c4_320, %c11_321] : memref<8x12xf32, #tpu.memory_space<smem>>
    %cst_322 = arith.constant 0.000000e+00 : f32
    %446 = vector.broadcast %cst_322 : f32 to vector<1x1xf32>
    %cst_323 = arith.constant 0.000000e+00 : f32
    %447 = vector.broadcast %cst_323 : f32 to vector<7x128xf32>
    %c0_324 = arith.constant 0 : index
    %c0_325 = arith.constant 0 : index
    %c0_326 = arith.constant 0 : index
    %448 = vector.load %arg1[%c0_324, %c0_325, %c0_326] : memref<8x8x128xf32, #tpu.memory_space<vmem>>, vector<1x7x128xf32>
    %449 = vector.shape_cast %448 : vector<1x7x128xf32> to vector<7x128xf32>
    %450 = vector.broadcast %434 : f32 to vector<7x128xf32>
    %451 = arith.mulf %450, %449 : vector<7x128xf32>
    %452 = arith.addf %447, %451 : vector<7x128xf32>
    %c1_327 = arith.constant 1 : index
    %c0_328 = arith.constant 0 : index
    %c0_329 = arith.constant 0 : index
    %453 = vector.load %arg1[%c1_327, %c0_328, %c0_329] : memref<8x8x128xf32, #tpu.memory_space<vmem>>, vector<1x7x128xf32>
    %454 = vector.shape_cast %453 : vector<1x7x128xf32> to vector<7x128xf32>
    %455 = vector.broadcast %435 : f32 to vector<7x128xf32>
    %456 = arith.mulf %455, %454 : vector<7x128xf32>
    %457 = arith.addf %452, %456 : vector<7x128xf32>
    %c0_330 = arith.constant 0 : index
    %c1_331 = arith.constant 1 : index
    %c0_332 = arith.constant 0 : index
    %458 = vector.load %arg1[%c0_330, %c1_331, %c0_332] : memref<8x8x128xf32, #tpu.memory_space<vmem>>, vector<1x7x128xf32>
    %459 = vector.shape_cast %458 : vector<1x7x128xf32> to vector<7x128xf32>
    %460 = vector.broadcast %436 : f32 to vector<7x128xf32>
    %461 = arith.mulf %460, %459 : vector<7x128xf32>
    %462 = arith.addf %457, %461 : vector<7x128xf32>
    %c2_333 = arith.constant 2 : index
    %c0_334 = arith.constant 0 : index
    %c0_335 = arith.constant 0 : index
    %463 = vector.load %arg1[%c2_333, %c0_334, %c0_335] : memref<8x8x128xf32, #tpu.memory_space<vmem>>, vector<1x7x128xf32>
    %464 = vector.shape_cast %463 : vector<1x7x128xf32> to vector<7x128xf32>
    %465 = vector.broadcast %437 : f32 to vector<7x128xf32>
    %466 = arith.mulf %465, %464 : vector<7x128xf32>
    %467 = arith.addf %462, %466 : vector<7x128xf32>
    %c3_336 = arith.constant 3 : index
    %c0_337 = arith.constant 0 : index
    %c0_338 = arith.constant 0 : index
    %468 = vector.load %arg1[%c3_336, %c0_337, %c0_338] : memref<8x8x128xf32, #tpu.memory_space<vmem>>, vector<1x7x128xf32>
    %469 = vector.shape_cast %468 : vector<1x7x128xf32> to vector<7x128xf32>
    %470 = vector.broadcast %438 : f32 to vector<7x128xf32>
    %471 = arith.mulf %470, %469 : vector<7x128xf32>
    %472 = arith.addf %467, %471 : vector<7x128xf32>
    %c2_339 = arith.constant 2 : index
    %c1_340 = arith.constant 1 : index
    %c0_341 = arith.constant 0 : index
    %473 = vector.load %arg1[%c2_339, %c1_340, %c0_341] : memref<8x8x128xf32, #tpu.memory_space<vmem>>, vector<1x7x128xf32>
    %474 = vector.shape_cast %473 : vector<1x7x128xf32> to vector<7x128xf32>
    %475 = vector.broadcast %439 : f32 to vector<7x128xf32>
    %476 = arith.mulf %475, %474 : vector<7x128xf32>
    %477 = arith.addf %472, %476 : vector<7x128xf32>
    %c4_342 = arith.constant 4 : index
    %c0_343 = arith.constant 0 : index
    %c0_344 = arith.constant 0 : index
    %478 = vector.load %arg1[%c4_342, %c0_343, %c0_344] : memref<8x8x128xf32, #tpu.memory_space<vmem>>, vector<1x7x128xf32>
    %479 = vector.shape_cast %478 : vector<1x7x128xf32> to vector<7x128xf32>
    %480 = vector.broadcast %440 : f32 to vector<7x128xf32>
    %481 = arith.mulf %480, %479 : vector<7x128xf32>
    %482 = arith.addf %477, %481 : vector<7x128xf32>
    %c5_345 = arith.constant 5 : index
    %c0_346 = arith.constant 0 : index
    %c0_347 = arith.constant 0 : index
    %483 = vector.load %arg1[%c5_345, %c0_346, %c0_347] : memref<8x8x128xf32, #tpu.memory_space<vmem>>, vector<1x7x128xf32>
    %484 = vector.shape_cast %483 : vector<1x7x128xf32> to vector<7x128xf32>
    %485 = vector.broadcast %441 : f32 to vector<7x128xf32>
    %486 = arith.mulf %485, %484 : vector<7x128xf32>
    %487 = arith.addf %482, %486 : vector<7x128xf32>
    %c4_348 = arith.constant 4 : index
    %c1_349 = arith.constant 1 : index
    %c0_350 = arith.constant 0 : index
    %488 = vector.load %arg1[%c4_348, %c1_349, %c0_350] : memref<8x8x128xf32, #tpu.memory_space<vmem>>, vector<1x7x128xf32>
    %489 = vector.shape_cast %488 : vector<1x7x128xf32> to vector<7x128xf32>
    %490 = vector.broadcast %442 : f32 to vector<7x128xf32>
    %491 = arith.mulf %490, %489 : vector<7x128xf32>
    %492 = arith.addf %487, %491 : vector<7x128xf32>
    %c6_351 = arith.constant 6 : index
    %c0_352 = arith.constant 0 : index
    %c0_353 = arith.constant 0 : index
    %493 = vector.load %arg1[%c6_351, %c0_352, %c0_353] : memref<8x8x128xf32, #tpu.memory_space<vmem>>, vector<1x7x128xf32>
    %494 = vector.shape_cast %493 : vector<1x7x128xf32> to vector<7x128xf32>
    %495 = vector.broadcast %443 : f32 to vector<7x128xf32>
    %496 = arith.mulf %495, %494 : vector<7x128xf32>
    %497 = arith.addf %492, %496 : vector<7x128xf32>
    %c7_354 = arith.constant 7 : index
    %c0_355 = arith.constant 0 : index
    %c0_356 = arith.constant 0 : index
    %498 = vector.load %arg1[%c7_354, %c0_355, %c0_356] : memref<8x8x128xf32, #tpu.memory_space<vmem>>, vector<1x7x128xf32>
    %499 = vector.shape_cast %498 : vector<1x7x128xf32> to vector<7x128xf32>
    %500 = vector.broadcast %444 : f32 to vector<7x128xf32>
    %501 = arith.mulf %500, %499 : vector<7x128xf32>
    %502 = arith.addf %497, %501 : vector<7x128xf32>
    %c6_357 = arith.constant 6 : index
    %c1_358 = arith.constant 1 : index
    %c0_359 = arith.constant 0 : index
    %503 = vector.load %arg1[%c6_357, %c1_358, %c0_359] : memref<8x8x128xf32, #tpu.memory_space<vmem>>, vector<1x7x128xf32>
    %504 = vector.shape_cast %503 : vector<1x7x128xf32> to vector<7x128xf32>
    %505 = vector.broadcast %445 : f32 to vector<7x128xf32>
    %506 = arith.mulf %505, %504 : vector<7x128xf32>
    %507 = arith.addf %502, %506 : vector<7x128xf32>
    %c4_360 = arith.constant 4 : index
    %c0_361 = arith.constant 0 : index
    %c0_362 = arith.constant 0 : index
    %508 = vector.load %arg3[%c4_360, %c0_361, %c0_362] : memref<8x7x128xf32, #tpu.memory_space<vmem>>, vector<1x7x128xf32>
    %509 = vector.shape_cast %508 : vector<1x7x128xf32> to vector<7x128xf32>
    %510 = vector.shape_cast %507 : vector<7x128xf32> to vector<1x7x128xf32>
    tpu.vector_store %arg3[%c4_360, %c0_361, %c0_362], %510 {strides = array<i32>} : memref<8x7x128xf32, #tpu.memory_space<vmem>>, vector<1x7x128xf32>,
    %511 = vector.shape_cast %507 : vector<7x128xf32> to vector<1x7x128xf32>
    %cst_363 = arith.constant dense<0.000000e+00> : vector<1xf32>
    %512 = vector.multi_reduction <add>, %511, %cst_363 [1, 2] : vector<1x7x128xf32> to vector<1xf32>
    %513 = vector.shape_cast %512 : vector<1xf32> to vector<1x1x1xf32>
    %514 = vector.extract %513[0, 0, 0] : f32 from vector<1x1x1xf32>
    %515 = vector.broadcast %514 : f32 to vector<1x1xf32>
    %516 = arith.addf %446, %515 : vector<1x1xf32>
    %517 = vector.broadcast %4 : f32 to vector<1x1xf32>
    %518 = arith.divf %516, %517 : vector<1x1xf32>
    %cst_364 = arith.constant 0.000000e+00 : f32
    %519 = vector.broadcast %cst_364 : f32 to vector<1x1xf32>
    %c4_365 = arith.constant 4 : index
    %c0_366 = arith.constant 0 : index
    %c0_367 = arith.constant 0 : index
    %520 = vector.load %arg3[%c4_365, %c0_366, %c0_367] : memref<8x7x128xf32, #tpu.memory_space<vmem>>, vector<1x7x128xf32>
    %521 = vector.shape_cast %520 : vector<1x7x128xf32> to vector<7x128xf32>
    %522 = vector.broadcast %518 : vector<1x1xf32> to vector<7x128xf32>
    %523 = arith.subf %521, %522 : vector<7x128xf32>
    %524 = arith.mulf %523, %523 : vector<7x128xf32>
    %525 = vector.shape_cast %524 : vector<7x128xf32> to vector<1x7x128xf32>
    %cst_368 = arith.constant dense<0.000000e+00> : vector<1xf32>
    %526 = vector.multi_reduction <add>, %525, %cst_368 [1, 2] : vector<1x7x128xf32> to vector<1xf32>
    %527 = vector.shape_cast %526 : vector<1xf32> to vector<1x1x1xf32>
    %528 = vector.extract %527[0, 0, 0] : f32 from vector<1x1x1xf32>
    %529 = vector.broadcast %528 : f32 to vector<1x1xf32>
    %530 = arith.addf %519, %529 : vector<1x1xf32>
    %531 = vector.broadcast %5 : f32 to vector<1x1xf32>
    %532 = arith.mulf %531, %518 : vector<1x1xf32>
    %533 = arith.mulf %532, %518 : vector<1x1xf32>
    %534 = arith.subf %530, %533 : vector<1x1xf32>
    %c0_369 = arith.constant 0 : index
    %c4_370 = arith.constant 4 : index
    %c0_371 = arith.constant 0 : index
    %535 = vector.load %arg4[%c0_369, %c4_370, %c0_371] : memref<1x8x2xf32, #tpu.memory_space<vmem>>, vector<1x1x1xf32>
    %536 = vector.shape_cast %535 : vector<1x1x1xf32> to vector<1x1xf32>
    %537 = vector.shape_cast %516 : vector<1x1xf32> to vector<1x1x1xf32>
    tpu.vector_store %arg4[%c0_369, %c4_370, %c0_371], %537 {strides = array<i32>} : memref<1x8x2xf32, #tpu.memory_space<vmem>>, vector<1x1x1xf32>,
    %c0_372 = arith.constant 0 : index
    %c4_373 = arith.constant 4 : index
    %c1_374 = arith.constant 1 : index
    %538 = vector.load %arg4[%c0_372, %c4_373, %c1_374] : memref<1x8x2xf32, #tpu.memory_space<vmem>>, vector<1x1x1xf32>
    %539 = vector.shape_cast %538 : vector<1x1x1xf32> to vector<1x1xf32>
    %540 = vector.shape_cast %534 : vector<1x1xf32> to vector<1x1x1xf32>
    tpu.vector_store %arg4[%c0_372, %c4_373, %c1_374], %540 {strides = array<i32>} : memref<1x8x2xf32, #tpu.memory_space<vmem>>, vector<1x1x1xf32>,
    %c5_375 = arith.constant 5 : index
    %c0_376 = arith.constant 0 : index
    %541 = memref.load %arg2[%c5_375, %c0_376] : memref<8x12xf32, #tpu.memory_space<smem>>
    %c5_377 = arith.constant 5 : index
    %c1_378 = arith.constant 1 : index
    %542 = memref.load %arg2[%c5_377, %c1_378] : memref<8x12xf32, #tpu.memory_space<smem>>
    %c5_379 = arith.constant 5 : index
    %c2_380 = arith.constant 2 : index
    %543 = memref.load %arg2[%c5_379, %c2_380] : memref<8x12xf32, #tpu.memory_space<smem>>
    %c5_381 = arith.constant 5 : index
    %c3_382 = arith.constant 3 : index
    %544 = memref.load %arg2[%c5_381, %c3_382] : memref<8x12xf32, #tpu.memory_space<smem>>
    %c5_383 = arith.constant 5 : index
    %c4_384 = arith.constant 4 : index
    %545 = memref.load %arg2[%c5_383, %c4_384] : memref<8x12xf32, #tpu.memory_space<smem>>
    %c5_385 = arith.constant 5 : index
    %c5_386 = arith.constant 5 : index
    %546 = memref.load %arg2[%c5_385, %c5_386] : memref<8x12xf32, #tpu.memory_space<smem>>
    %c5_387 = arith.constant 5 : index
    %c6_388 = arith.constant 6 : index
    %547 = memref.load %arg2[%c5_387, %c6_388] : memref<8x12xf32, #tpu.memory_space<smem>>
    %c5_389 = arith.constant 5 : index
    %c7_390 = arith.constant 7 : index
    %548 = memref.load %arg2[%c5_389, %c7_390] : memref<8x12xf32, #tpu.memory_space<smem>>
    %c5_391 = arith.constant 5 : index
    %c8_392 = arith.constant 8 : index
    %549 = memref.load %arg2[%c5_391, %c8_392] : memref<8x12xf32, #tpu.memory_space<smem>>
    %c5_393 = arith.constant 5 : index
    %c9_394 = arith.constant 9 : index
    %550 = memref.load %arg2[%c5_393, %c9_394] : memref<8x12xf32, #tpu.memory_space<smem>>
    %c5_395 = arith.constant 5 : index
    %c10_396 = arith.constant 10 : index
    %551 = memref.load %arg2[%c5_395, %c10_396] : memref<8x12xf32, #tpu.memory_space<smem>>
    %c5_397 = arith.constant 5 : index
    %c11_398 = arith.constant 11 : index
    %552 = memref.load %arg2[%c5_397, %c11_398] : memref<8x12xf32, #tpu.memory_space<smem>>
    %cst_399 = arith.constant 0.000000e+00 : f32
    %553 = vector.broadcast %cst_399 : f32 to vector<1x1xf32>
    %cst_400 = arith.constant 0.000000e+00 : f32
    %554 = vector.broadcast %cst_400 : f32 to vector<7x128xf32>
    %c0_401 = arith.constant 0 : index
    %c0_402 = arith.constant 0 : index
    %c0_403 = arith.constant 0 : index
    %555 = vector.load %arg1[%c0_401, %c0_402, %c0_403] : memref<8x8x128xf32, #tpu.memory_space<vmem>>, vector<1x7x128xf32>
    %556 = vector.shape_cast %555 : vector<1x7x128xf32> to vector<7x128xf32>
    %557 = vector.broadcast %541 : f32 to vector<7x128xf32>
    %558 = arith.mulf %557, %556 : vector<7x128xf32>
    %559 = arith.addf %554, %558 : vector<7x128xf32>
    %c1_404 = arith.constant 1 : index
    %c0_405 = arith.constant 0 : index
    %c0_406 = arith.constant 0 : index
    %560 = vector.load %arg1[%c1_404, %c0_405, %c0_406] : memref<8x8x128xf32, #tpu.memory_space<vmem>>, vector<1x7x128xf32>
    %561 = vector.shape_cast %560 : vector<1x7x128xf32> to vector<7x128xf32>
    %562 = vector.broadcast %542 : f32 to vector<7x128xf32>
    %563 = arith.mulf %562, %561 : vector<7x128xf32>
    %564 = arith.addf %559, %563 : vector<7x128xf32>
    %c0_407 = arith.constant 0 : index
    %c1_408 = arith.constant 1 : index
    %c0_409 = arith.constant 0 : index
    %565 = vector.load %arg1[%c0_407, %c1_408, %c0_409] : memref<8x8x128xf32, #tpu.memory_space<vmem>>, vector<1x7x128xf32>
    %566 = vector.shape_cast %565 : vector<1x7x128xf32> to vector<7x128xf32>
    %567 = vector.broadcast %543 : f32 to vector<7x128xf32>
    %568 = arith.mulf %567, %566 : vector<7x128xf32>
    %569 = arith.addf %564, %568 : vector<7x128xf32>
    %c2_410 = arith.constant 2 : index
    %c0_411 = arith.constant 0 : index
    %c0_412 = arith.constant 0 : index
    %570 = vector.load %arg1[%c2_410, %c0_411, %c0_412] : memref<8x8x128xf32, #tpu.memory_space<vmem>>, vector<1x7x128xf32>
    %571 = vector.shape_cast %570 : vector<1x7x128xf32> to vector<7x128xf32>
    %572 = vector.broadcast %544 : f32 to vector<7x128xf32>
    %573 = arith.mulf %572, %571 : vector<7x128xf32>
    %574 = arith.addf %569, %573 : vector<7x128xf32>
    %c3_413 = arith.constant 3 : index
    %c0_414 = arith.constant 0 : index
    %c0_415 = arith.constant 0 : index
    %575 = vector.load %arg1[%c3_413, %c0_414, %c0_415] : memref<8x8x128xf32, #tpu.memory_space<vmem>>, vector<1x7x128xf32>
    %576 = vector.shape_cast %575 : vector<1x7x128xf32> to vector<7x128xf32>
    %577 = vector.broadcast %545 : f32 to vector<7x128xf32>
    %578 = arith.mulf %577, %576 : vector<7x128xf32>
    %579 = arith.addf %574, %578 : vector<7x128xf32>
    %c2_416 = arith.constant 2 : index
    %c1_417 = arith.constant 1 : index
    %c0_418 = arith.constant 0 : index
    %580 = vector.load %arg1[%c2_416, %c1_417, %c0_418] : memref<8x8x128xf32, #tpu.memory_space<vmem>>, vector<1x7x128xf32>
    %581 = vector.shape_cast %580 : vector<1x7x128xf32> to vector<7x128xf32>
    %582 = vector.broadcast %546 : f32 to vector<7x128xf32>
    %583 = arith.mulf %582, %581 : vector<7x128xf32>
    %584 = arith.addf %579, %583 : vector<7x128xf32>
    %c4_419 = arith.constant 4 : index
    %c0_420 = arith.constant 0 : index
    %c0_421 = arith.constant 0 : index
    %585 = vector.load %arg1[%c4_419, %c0_420, %c0_421] : memref<8x8x128xf32, #tpu.memory_space<vmem>>, vector<1x7x128xf32>
    %586 = vector.shape_cast %585 : vector<1x7x128xf32> to vector<7x128xf32>
    %587 = vector.broadcast %547 : f32 to vector<7x128xf32>
    %588 = arith.mulf %587, %586 : vector<7x128xf32>
    %589 = arith.addf %584, %588 : vector<7x128xf32>
    %c5_422 = arith.constant 5 : index
    %c0_423 = arith.constant 0 : index
    %c0_424 = arith.constant 0 : index
    %590 = vector.load %arg1[%c5_422, %c0_423, %c0_424] : memref<8x8x128xf32, #tpu.memory_space<vmem>>, vector<1x7x128xf32>
    %591 = vector.shape_cast %590 : vector<1x7x128xf32> to vector<7x128xf32>
    %592 = vector.broadcast %548 : f32 to vector<7x128xf32>
    %593 = arith.mulf %592, %591 : vector<7x128xf32>
    %594 = arith.addf %589, %593 : vector<7x128xf32>
    %c4_425 = arith.constant 4 : index
    %c1_426 = arith.constant 1 : index
    %c0_427 = arith.constant 0 : index
    %595 = vector.load %arg1[%c4_425, %c1_426, %c0_427] : memref<8x8x128xf32, #tpu.memory_space<vmem>>, vector<1x7x128xf32>
    %596 = vector.shape_cast %595 : vector<1x7x128xf32> to vector<7x128xf32>
    %597 = vector.broadcast %549 : f32 to vector<7x128xf32>
    %598 = arith.mulf %597, %596 : vector<7x128xf32>
    %599 = arith.addf %594, %598 : vector<7x128xf32>
    %c6_428 = arith.constant 6 : index
    %c0_429 = arith.constant 0 : index
    %c0_430 = arith.constant 0 : index
    %600 = vector.load %arg1[%c6_428, %c0_429, %c0_430] : memref<8x8x128xf32, #tpu.memory_space<vmem>>, vector<1x7x128xf32>
    %601 = vector.shape_cast %600 : vector<1x7x128xf32> to vector<7x128xf32>
    %602 = vector.broadcast %550 : f32 to vector<7x128xf32>
    %603 = arith.mulf %602, %601 : vector<7x128xf32>
    %604 = arith.addf %599, %603 : vector<7x128xf32>
    %c7_431 = arith.constant 7 : index
    %c0_432 = arith.constant 0 : index
    %c0_433 = arith.constant 0 : index
    %605 = vector.load %arg1[%c7_431, %c0_432, %c0_433] : memref<8x8x128xf32, #tpu.memory_space<vmem>>, vector<1x7x128xf32>
    %606 = vector.shape_cast %605 : vector<1x7x128xf32> to vector<7x128xf32>
    %607 = vector.broadcast %551 : f32 to vector<7x128xf32>
    %608 = arith.mulf %607, %606 : vector<7x128xf32>
    %609 = arith.addf %604, %608 : vector<7x128xf32>
    %c6_434 = arith.constant 6 : index
    %c1_435 = arith.constant 1 : index
    %c0_436 = arith.constant 0 : index
    %610 = vector.load %arg1[%c6_434, %c1_435, %c0_436] : memref<8x8x128xf32, #tpu.memory_space<vmem>>, vector<1x7x128xf32>
    %611 = vector.shape_cast %610 : vector<1x7x128xf32> to vector<7x128xf32>
    %612 = vector.broadcast %552 : f32 to vector<7x128xf32>
    %613 = arith.mulf %612, %611 : vector<7x128xf32>
    %614 = arith.addf %609, %613 : vector<7x128xf32>
    %c5_437 = arith.constant 5 : index
    %c0_438 = arith.constant 0 : index
    %c0_439 = arith.constant 0 : index
    %615 = vector.load %arg3[%c5_437, %c0_438, %c0_439] : memref<8x7x128xf32, #tpu.memory_space<vmem>>, vector<1x7x128xf32>
    %616 = vector.shape_cast %615 : vector<1x7x128xf32> to vector<7x128xf32>
    %617 = vector.shape_cast %614 : vector<7x128xf32> to vector<1x7x128xf32>
    tpu.vector_store %arg3[%c5_437, %c0_438, %c0_439], %617 {strides = array<i32>} : memref<8x7x128xf32, #tpu.memory_space<vmem>>, vector<1x7x128xf32>,
    %618 = vector.shape_cast %614 : vector<7x128xf32> to vector<1x7x128xf32>
    %cst_440 = arith.constant dense<0.000000e+00> : vector<1xf32>
    %619 = vector.multi_reduction <add>, %618, %cst_440 [1, 2] : vector<1x7x128xf32> to vector<1xf32>
    %620 = vector.shape_cast %619 : vector<1xf32> to vector<1x1x1xf32>
    %621 = vector.extract %620[0, 0, 0] : f32 from vector<1x1x1xf32>
    %622 = vector.broadcast %621 : f32 to vector<1x1xf32>
    %623 = arith.addf %553, %622 : vector<1x1xf32>
    %624 = vector.broadcast %4 : f32 to vector<1x1xf32>
    %625 = arith.divf %623, %624 : vector<1x1xf32>
    %cst_441 = arith.constant 0.000000e+00 : f32
    %626 = vector.broadcast %cst_441 : f32 to vector<1x1xf32>
    %c5_442 = arith.constant 5 : index
    %c0_443 = arith.constant 0 : index
    %c0_444 = arith.constant 0 : index
    %627 = vector.load %arg3[%c5_442, %c0_443, %c0_444] : memref<8x7x128xf32, #tpu.memory_space<vmem>>, vector<1x7x128xf32>
    %628 = vector.shape_cast %627 : vector<1x7x128xf32> to vector<7x128xf32>
    %629 = vector.broadcast %625 : vector<1x1xf32> to vector<7x128xf32>
    %630 = arith.subf %628, %629 : vector<7x128xf32>
    %631 = arith.mulf %630, %630 : vector<7x128xf32>
    %632 = vector.shape_cast %631 : vector<7x128xf32> to vector<1x7x128xf32>
    %cst_445 = arith.constant dense<0.000000e+00> : vector<1xf32>
    %633 = vector.multi_reduction <add>, %632, %cst_445 [1, 2] : vector<1x7x128xf32> to vector<1xf32>
    %634 = vector.shape_cast %633 : vector<1xf32> to vector<1x1x1xf32>
    %635 = vector.extract %634[0, 0, 0] : f32 from vector<1x1x1xf32>
    %636 = vector.broadcast %635 : f32 to vector<1x1xf32>
    %637 = arith.addf %626, %636 : vector<1x1xf32>
    %638 = vector.broadcast %5 : f32 to vector<1x1xf32>
    %639 = arith.mulf %638, %625 : vector<1x1xf32>
    %640 = arith.mulf %639, %625 : vector<1x1xf32>
    %641 = arith.subf %637, %640 : vector<1x1xf32>
    %c0_446 = arith.constant 0 : index
    %c5_447 = arith.constant 5 : index
    %c0_448 = arith.constant 0 : index
    %642 = vector.load %arg4[%c0_446, %c5_447, %c0_448] : memref<1x8x2xf32, #tpu.memory_space<vmem>>, vector<1x1x1xf32>
    %643 = vector.shape_cast %642 : vector<1x1x1xf32> to vector<1x1xf32>
    %644 = vector.shape_cast %623 : vector<1x1xf32> to vector<1x1x1xf32>
    tpu.vector_store %arg4[%c0_446, %c5_447, %c0_448], %644 {strides = array<i32>} : memref<1x8x2xf32, #tpu.memory_space<vmem>>, vector<1x1x1xf32>,
    %c0_449 = arith.constant 0 : index
    %c5_450 = arith.constant 5 : index
    %c1_451 = arith.constant 1 : index
    %645 = vector.load %arg4[%c0_449, %c5_450, %c1_451] : memref<1x8x2xf32, #tpu.memory_space<vmem>>, vector<1x1x1xf32>
    %646 = vector.shape_cast %645 : vector<1x1x1xf32> to vector<1x1xf32>
    %647 = vector.shape_cast %641 : vector<1x1xf32> to vector<1x1x1xf32>
    tpu.vector_store %arg4[%c0_449, %c5_450, %c1_451], %647 {strides = array<i32>} : memref<1x8x2xf32, #tpu.memory_space<vmem>>, vector<1x1x1xf32>,
    %c6_452 = arith.constant 6 : index
    %c0_453 = arith.constant 0 : index
    %648 = memref.load %arg2[%c6_452, %c0_453] : memref<8x12xf32, #tpu.memory_space<smem>>
    %c6_454 = arith.constant 6 : index
    %c1_455 = arith.constant 1 : index
    %649 = memref.load %arg2[%c6_454, %c1_455] : memref<8x12xf32, #tpu.memory_space<smem>>
    %c6_456 = arith.constant 6 : index
    %c2_457 = arith.constant 2 : index
    %650 = memref.load %arg2[%c6_456, %c2_457] : memref<8x12xf32, #tpu.memory_space<smem>>
    %c6_458 = arith.constant 6 : index
    %c3_459 = arith.constant 3 : index
    %651 = memref.load %arg2[%c6_458, %c3_459] : memref<8x12xf32, #tpu.memory_space<smem>>
    %c6_460 = arith.constant 6 : index
    %c4_461 = arith.constant 4 : index
    %652 = memref.load %arg2[%c6_460, %c4_461] : memref<8x12xf32, #tpu.memory_space<smem>>
    %c6_462 = arith.constant 6 : index
    %c5_463 = arith.constant 5 : index
    %653 = memref.load %arg2[%c6_462, %c5_463] : memref<8x12xf32, #tpu.memory_space<smem>>
    %c6_464 = arith.constant 6 : index
    %c6_465 = arith.constant 6 : index
    %654 = memref.load %arg2[%c6_464, %c6_465] : memref<8x12xf32, #tpu.memory_space<smem>>
    %c6_466 = arith.constant 6 : index
    %c7_467 = arith.constant 7 : index
    %655 = memref.load %arg2[%c6_466, %c7_467] : memref<8x12xf32, #tpu.memory_space<smem>>
    %c6_468 = arith.constant 6 : index
    %c8_469 = arith.constant 8 : index
    %656 = memref.load %arg2[%c6_468, %c8_469] : memref<8x12xf32, #tpu.memory_space<smem>>
    %c6_470 = arith.constant 6 : index
    %c9_471 = arith.constant 9 : index
    %657 = memref.load %arg2[%c6_470, %c9_471] : memref<8x12xf32, #tpu.memory_space<smem>>
    %c6_472 = arith.constant 6 : index
    %c10_473 = arith.constant 10 : index
    %658 = memref.load %arg2[%c6_472, %c10_473] : memref<8x12xf32, #tpu.memory_space<smem>>
    %c6_474 = arith.constant 6 : index
    %c11_475 = arith.constant 11 : index
    %659 = memref.load %arg2[%c6_474, %c11_475] : memref<8x12xf32, #tpu.memory_space<smem>>
    %cst_476 = arith.constant 0.000000e+00 : f32
    %660 = vector.broadcast %cst_476 : f32 to vector<1x1xf32>
    %cst_477 = arith.constant 0.000000e+00 : f32
    %661 = vector.broadcast %cst_477 : f32 to vector<7x128xf32>
    %c0_478 = arith.constant 0 : index
    %c0_479 = arith.constant 0 : index
    %c0_480 = arith.constant 0 : index
    %662 = vector.load %arg1[%c0_478, %c0_479, %c0_480] : memref<8x8x128xf32, #tpu.memory_space<vmem>>, vector<1x7x128xf32>
    %663 = vector.shape_cast %662 : vector<1x7x128xf32> to vector<7x128xf32>
    %664 = vector.broadcast %648 : f32 to vector<7x128xf32>
    %665 = arith.mulf %664, %663 : vector<7x128xf32>
    %666 = arith.addf %661, %665 : vector<7x128xf32>
    %c1_481 = arith.constant 1 : index
    %c0_482 = arith.constant 0 : index
    %c0_483 = arith.constant 0 : index
    %667 = vector.load %arg1[%c1_481, %c0_482, %c0_483] : memref<8x8x128xf32, #tpu.memory_space<vmem>>, vector<1x7x128xf32>
    %668 = vector.shape_cast %667 : vector<1x7x128xf32> to vector<7x128xf32>
    %669 = vector.broadcast %649 : f32 to vector<7x128xf32>
    %670 = arith.mulf %669, %668 : vector<7x128xf32>
    %671 = arith.addf %666, %670 : vector<7x128xf32>
    %c0_484 = arith.constant 0 : index
    %c1_485 = arith.constant 1 : index
    %c0_486 = arith.constant 0 : index
    %672 = vector.load %arg1[%c0_484, %c1_485, %c0_486] : memref<8x8x128xf32, #tpu.memory_space<vmem>>, vector<1x7x128xf32>
    %673 = vector.shape_cast %672 : vector<1x7x128xf32> to vector<7x128xf32>
    %674 = vector.broadcast %650 : f32 to vector<7x128xf32>
    %675 = arith.mulf %674, %673 : vector<7x128xf32>
    %676 = arith.addf %671, %675 : vector<7x128xf32>
    %c2_487 = arith.constant 2 : index
    %c0_488 = arith.constant 0 : index
    %c0_489 = arith.constant 0 : index
    %677 = vector.load %arg1[%c2_487, %c0_488, %c0_489] : memref<8x8x128xf32, #tpu.memory_space<vmem>>, vector<1x7x128xf32>
    %678 = vector.shape_cast %677 : vector<1x7x128xf32> to vector<7x128xf32>
    %679 = vector.broadcast %651 : f32 to vector<7x128xf32>
    %680 = arith.mulf %679, %678 : vector<7x128xf32>
    %681 = arith.addf %676, %680 : vector<7x128xf32>
    %c3_490 = arith.constant 3 : index
    %c0_491 = arith.constant 0 : index
    %c0_492 = arith.constant 0 : index
    %682 = vector.load %arg1[%c3_490, %c0_491, %c0_492] : memref<8x8x128xf32, #tpu.memory_space<vmem>>, vector<1x7x128xf32>
    %683 = vector.shape_cast %682 : vector<1x7x128xf32> to vector<7x128xf32>
    %684 = vector.broadcast %652 : f32 to vector<7x128xf32>
    %685 = arith.mulf %684, %683 : vector<7x128xf32>
    %686 = arith.addf %681, %685 : vector<7x128xf32>
    %c2_493 = arith.constant 2 : index
    %c1_494 = arith.constant 1 : index
    %c0_495 = arith.constant 0 : index
    %687 = vector.load %arg1[%c2_493, %c1_494, %c0_495] : memref<8x8x128xf32, #tpu.memory_space<vmem>>, vector<1x7x128xf32>
    %688 = vector.shape_cast %687 : vector<1x7x128xf32> to vector<7x128xf32>
    %689 = vector.broadcast %653 : f32 to vector<7x128xf32>
    %690 = arith.mulf %689, %688 : vector<7x128xf32>
    %691 = arith.addf %686, %690 : vector<7x128xf32>
    %c4_496 = arith.constant 4 : index
    %c0_497 = arith.constant 0 : index
    %c0_498 = arith.constant 0 : index
    %692 = vector.load %arg1[%c4_496, %c0_497, %c0_498] : memref<8x8x128xf32, #tpu.memory_space<vmem>>, vector<1x7x128xf32>
    %693 = vector.shape_cast %692 : vector<1x7x128xf32> to vector<7x128xf32>
    %694 = vector.broadcast %654 : f32 to vector<7x128xf32>
    %695 = arith.mulf %694, %693 : vector<7x128xf32>
    %696 = arith.addf %691, %695 : vector<7x128xf32>
    %c5_499 = arith.constant 5 : index
    %c0_500 = arith.constant 0 : index
    %c0_501 = arith.constant 0 : index
    %697 = vector.load %arg1[%c5_499, %c0_500, %c0_501] : memref<8x8x128xf32, #tpu.memory_space<vmem>>, vector<1x7x128xf32>
    %698 = vector.shape_cast %697 : vector<1x7x128xf32> to vector<7x128xf32>
    %699 = vector.broadcast %655 : f32 to vector<7x128xf32>
    %700 = arith.mulf %699, %698 : vector<7x128xf32>
    %701 = arith.addf %696, %700 : vector<7x128xf32>
    %c4_502 = arith.constant 4 : index
    %c1_503 = arith.constant 1 : index
    %c0_504 = arith.constant 0 : index
    %702 = vector.load %arg1[%c4_502, %c1_503, %c0_504] : memref<8x8x128xf32, #tpu.memory_space<vmem>>, vector<1x7x128xf32>
    %703 = vector.shape_cast %702 : vector<1x7x128xf32> to vector<7x128xf32>
    %704 = vector.broadcast %656 : f32 to vector<7x128xf32>
    %705 = arith.mulf %704, %703 : vector<7x128xf32>
    %706 = arith.addf %701, %705 : vector<7x128xf32>
    %c6_505 = arith.constant 6 : index
    %c0_506 = arith.constant 0 : index
    %c0_507 = arith.constant 0 : index
    %707 = vector.load %arg1[%c6_505, %c0_506, %c0_507] : memref<8x8x128xf32, #tpu.memory_space<vmem>>, vector<1x7x128xf32>
    %708 = vector.shape_cast %707 : vector<1x7x128xf32> to vector<7x128xf32>
    %709 = vector.broadcast %657 : f32 to vector<7x128xf32>
    %710 = arith.mulf %709, %708 : vector<7x128xf32>
    %711 = arith.addf %706, %710 : vector<7x128xf32>
    %c7_508 = arith.constant 7 : index
    %c0_509 = arith.constant 0 : index
    %c0_510 = arith.constant 0 : index
    %712 = vector.load %arg1[%c7_508, %c0_509, %c0_510] : memref<8x8x128xf32, #tpu.memory_space<vmem>>, vector<1x7x128xf32>
    %713 = vector.shape_cast %712 : vector<1x7x128xf32> to vector<7x128xf32>
    %714 = vector.broadcast %658 : f32 to vector<7x128xf32>
    %715 = arith.mulf %714, %713 : vector<7x128xf32>
    %716 = arith.addf %711, %715 : vector<7x128xf32>
    %c6_511 = arith.constant 6 : index
    %c1_512 = arith.constant 1 : index
    %c0_513 = arith.constant 0 : index
    %717 = vector.load %arg1[%c6_511, %c1_512, %c0_513] : memref<8x8x128xf32, #tpu.memory_space<vmem>>, vector<1x7x128xf32>
    %718 = vector.shape_cast %717 : vector<1x7x128xf32> to vector<7x128xf32>
    %719 = vector.broadcast %659 : f32 to vector<7x128xf32>
    %720 = arith.mulf %719, %718 : vector<7x128xf32>
    %721 = arith.addf %716, %720 : vector<7x128xf32>
    %c6_514 = arith.constant 6 : index
    %c0_515 = arith.constant 0 : index
    %c0_516 = arith.constant 0 : index
    %722 = vector.load %arg3[%c6_514, %c0_515, %c0_516] : memref<8x7x128xf32, #tpu.memory_space<vmem>>, vector<1x7x128xf32>
    %723 = vector.shape_cast %722 : vector<1x7x128xf32> to vector<7x128xf32>
    %724 = vector.shape_cast %721 : vector<7x128xf32> to vector<1x7x128xf32>
    tpu.vector_store %arg3[%c6_514, %c0_515, %c0_516], %724 {strides = array<i32>} : memref<8x7x128xf32, #tpu.memory_space<vmem>>, vector<1x7x128xf32>,
    %725 = vector.shape_cast %721 : vector<7x128xf32> to vector<1x7x128xf32>
    %cst_517 = arith.constant dense<0.000000e+00> : vector<1xf32>
    %726 = vector.multi_reduction <add>, %725, %cst_517 [1, 2] : vector<1x7x128xf32> to vector<1xf32>
    %727 = vector.shape_cast %726 : vector<1xf32> to vector<1x1x1xf32>
    %728 = vector.extract %727[0, 0, 0] : f32 from vector<1x1x1xf32>
    %729 = vector.broadcast %728 : f32 to vector<1x1xf32>
    %730 = arith.addf %660, %729 : vector<1x1xf32>
    %731 = vector.broadcast %4 : f32 to vector<1x1xf32>
    %732 = arith.divf %730, %731 : vector<1x1xf32>
    %cst_518 = arith.constant 0.000000e+00 : f32
    %733 = vector.broadcast %cst_518 : f32 to vector<1x1xf32>
    %c6_519 = arith.constant 6 : index
    %c0_520 = arith.constant 0 : index
    %c0_521 = arith.constant 0 : index
    %734 = vector.load %arg3[%c6_519, %c0_520, %c0_521] : memref<8x7x128xf32, #tpu.memory_space<vmem>>, vector<1x7x128xf32>
    %735 = vector.shape_cast %734 : vector<1x7x128xf32> to vector<7x128xf32>
    %736 = vector.broadcast %732 : vector<1x1xf32> to vector<7x128xf32>
    %737 = arith.subf %735, %736 : vector<7x128xf32>
    %738 = arith.mulf %737, %737 : vector<7x128xf32>
    %739 = vector.shape_cast %738 : vector<7x128xf32> to vector<1x7x128xf32>
    %cst_522 = arith.constant dense<0.000000e+00> : vector<1xf32>
    %740 = vector.multi_reduction <add>, %739, %cst_522 [1, 2] : vector<1x7x128xf32> to vector<1xf32>
    %741 = vector.shape_cast %740 : vector<1xf32> to vector<1x1x1xf32>
    %742 = vector.extract %741[0, 0, 0] : f32 from vector<1x1x1xf32>
    %743 = vector.broadcast %742 : f32 to vector<1x1xf32>
    %744 = arith.addf %733, %743 : vector<1x1xf32>
    %745 = vector.broadcast %5 : f32 to vector<1x1xf32>
    %746 = arith.mulf %745, %732 : vector<1x1xf32>
    %747 = arith.mulf %746, %732 : vector<1x1xf32>
    %748 = arith.subf %744, %747 : vector<1x1xf32>
    %c0_523 = arith.constant 0 : index
    %c6_524 = arith.constant 6 : index
    %c0_525 = arith.constant 0 : index
    %749 = vector.load %arg4[%c0_523, %c6_524, %c0_525] : memref<1x8x2xf32, #tpu.memory_space<vmem>>, vector<1x1x1xf32>
    %750 = vector.shape_cast %749 : vector<1x1x1xf32> to vector<1x1xf32>
    %751 = vector.shape_cast %730 : vector<1x1xf32> to vector<1x1x1xf32>
    tpu.vector_store %arg4[%c0_523, %c6_524, %c0_525], %751 {strides = array<i32>} : memref<1x8x2xf32, #tpu.memory_space<vmem>>, vector<1x1x1xf32>,
    %c0_526 = arith.constant 0 : index
    %c6_527 = arith.constant 6 : index
    %c1_528 = arith.constant 1 : index
    %752 = vector.load %arg4[%c0_526, %c6_527, %c1_528] : memref<1x8x2xf32, #tpu.memory_space<vmem>>, vector<1x1x1xf32>
    %753 = vector.shape_cast %752 : vector<1x1x1xf32> to vector<1x1xf32>
    %754 = vector.shape_cast %748 : vector<1x1xf32> to vector<1x1x1xf32>
    tpu.vector_store %arg4[%c0_526, %c6_527, %c1_528], %754 {strides = array<i32>} : memref<1x8x2xf32, #tpu.memory_space<vmem>>, vector<1x1x1xf32>,
    %c7_529 = arith.constant 7 : index
    %c0_530 = arith.constant 0 : index
    %755 = memref.load %arg2[%c7_529, %c0_530] : memref<8x12xf32, #tpu.memory_space<smem>>
    %c7_531 = arith.constant 7 : index
    %c1_532 = arith.constant 1 : index
    %756 = memref.load %arg2[%c7_531, %c1_532] : memref<8x12xf32, #tpu.memory_space<smem>>
    %c7_533 = arith.constant 7 : index
    %c2_534 = arith.constant 2 : index
    %757 = memref.load %arg2[%c7_533, %c2_534] : memref<8x12xf32, #tpu.memory_space<smem>>
    %c7_535 = arith.constant 7 : index
    %c3_536 = arith.constant 3 : index
    %758 = memref.load %arg2[%c7_535, %c3_536] : memref<8x12xf32, #tpu.memory_space<smem>>
    %c7_537 = arith.constant 7 : index
    %c4_538 = arith.constant 4 : index
    %759 = memref.load %arg2[%c7_537, %c4_538] : memref<8x12xf32, #tpu.memory_space<smem>>
    %c7_539 = arith.constant 7 : index
    %c5_540 = arith.constant 5 : index
    %760 = memref.load %arg2[%c7_539, %c5_540] : memref<8x12xf32, #tpu.memory_space<smem>>
    %c7_541 = arith.constant 7 : index
    %c6_542 = arith.constant 6 : index
    %761 = memref.load %arg2[%c7_541, %c6_542] : memref<8x12xf32, #tpu.memory_space<smem>>
    %c7_543 = arith.constant 7 : index
    %c7_544 = arith.constant 7 : index
    %762 = memref.load %arg2[%c7_543, %c7_544] : memref<8x12xf32, #tpu.memory_space<smem>>
    %c7_545 = arith.constant 7 : index
    %c8_546 = arith.constant 8 : index
    %763 = memref.load %arg2[%c7_545, %c8_546] : memref<8x12xf32, #tpu.memory_space<smem>>
    %c7_547 = arith.constant 7 : index
    %c9_548 = arith.constant 9 : index
    %764 = memref.load %arg2[%c7_547, %c9_548] : memref<8x12xf32, #tpu.memory_space<smem>>
    %c7_549 = arith.constant 7 : index
    %c10_550 = arith.constant 10 : index
    %765 = memref.load %arg2[%c7_549, %c10_550] : memref<8x12xf32, #tpu.memory_space<smem>>
    %c7_551 = arith.constant 7 : index
    %c11_552 = arith.constant 11 : index
    %766 = memref.load %arg2[%c7_551, %c11_552] : memref<8x12xf32, #tpu.memory_space<smem>>
    %cst_553 = arith.constant 0.000000e+00 : f32
    %767 = vector.broadcast %cst_553 : f32 to vector<1x1xf32>
    %cst_554 = arith.constant 0.000000e+00 : f32
    %768 = vector.broadcast %cst_554 : f32 to vector<7x128xf32>
    %c0_555 = arith.constant 0 : index
    %c0_556 = arith.constant 0 : index
    %c0_557 = arith.constant 0 : index
    %769 = vector.load %arg1[%c0_555, %c0_556, %c0_557] : memref<8x8x128xf32, #tpu.memory_space<vmem>>, vector<1x7x128xf32>
    %770 = vector.shape_cast %769 : vector<1x7x128xf32> to vector<7x128xf32>
    %771 = vector.broadcast %755 : f32 to vector<7x128xf32>
    %772 = arith.mulf %771, %770 : vector<7x128xf32>
    %773 = arith.addf %768, %772 : vector<7x128xf32>
    %c1_558 = arith.constant 1 : index
    %c0_559 = arith.constant 0 : index
    %c0_560 = arith.constant 0 : index
    %774 = vector.load %arg1[%c1_558, %c0_559, %c0_560] : memref<8x8x128xf32, #tpu.memory_space<vmem>>, vector<1x7x128xf32>
    %775 = vector.shape_cast %774 : vector<1x7x128xf32> to vector<7x128xf32>
    %776 = vector.broadcast %756 : f32 to vector<7x128xf32>
    %777 = arith.mulf %776, %775 : vector<7x128xf32>
    %778 = arith.addf %773, %777 : vector<7x128xf32>
    %c0_561 = arith.constant 0 : index
    %c1_562 = arith.constant 1 : index
    %c0_563 = arith.constant 0 : index
    %779 = vector.load %arg1[%c0_561, %c1_562, %c0_563] : memref<8x8x128xf32, #tpu.memory_space<vmem>>, vector<1x7x128xf32>
    %780 = vector.shape_cast %779 : vector<1x7x128xf32> to vector<7x128xf32>
    %781 = vector.broadcast %757 : f32 to vector<7x128xf32>
    %782 = arith.mulf %781, %780 : vector<7x128xf32>
    %783 = arith.addf %778, %782 : vector<7x128xf32>
    %c2_564 = arith.constant 2 : index
    %c0_565 = arith.constant 0 : index
    %c0_566 = arith.constant 0 : index
    %784 = vector.load %arg1[%c2_564, %c0_565, %c0_566] : memref<8x8x128xf32, #tpu.memory_space<vmem>>, vector<1x7x128xf32>
    %785 = vector.shape_cast %784 : vector<1x7x128xf32> to vector<7x128xf32>
    %786 = vector.broadcast %758 : f32 to vector<7x128xf32>
    %787 = arith.mulf %786, %785 : vector<7x128xf32>
    %788 = arith.addf %783, %787 : vector<7x128xf32>
    %c3_567 = arith.constant 3 : index
    %c0_568 = arith.constant 0 : index
    %c0_569 = arith.constant 0 : index
    %789 = vector.load %arg1[%c3_567, %c0_568, %c0_569] : memref<8x8x128xf32, #tpu.memory_space<vmem>>, vector<1x7x128xf32>
    %790 = vector.shape_cast %789 : vector<1x7x128xf32> to vector<7x128xf32>
    %791 = vector.broadcast %759 : f32 to vector<7x128xf32>
    %792 = arith.mulf %791, %790 : vector<7x128xf32>
    %793 = arith.addf %788, %792 : vector<7x128xf32>
    %c2_570 = arith.constant 2 : index
    %c1_571 = arith.constant 1 : index
    %c0_572 = arith.constant 0 : index
    %794 = vector.load %arg1[%c2_570, %c1_571, %c0_572] : memref<8x8x128xf32, #tpu.memory_space<vmem>>, vector<1x7x128xf32>
    %795 = vector.shape_cast %794 : vector<1x7x128xf32> to vector<7x128xf32>
    %796 = vector.broadcast %760 : f32 to vector<7x128xf32>
    %797 = arith.mulf %796, %795 : vector<7x128xf32>
    %798 = arith.addf %793, %797 : vector<7x128xf32>
    %c4_573 = arith.constant 4 : index
    %c0_574 = arith.constant 0 : index
    %c0_575 = arith.constant 0 : index
    %799 = vector.load %arg1[%c4_573, %c0_574, %c0_575] : memref<8x8x128xf32, #tpu.memory_space<vmem>>, vector<1x7x128xf32>
    %800 = vector.shape_cast %799 : vector<1x7x128xf32> to vector<7x128xf32>
    %801 = vector.broadcast %761 : f32 to vector<7x128xf32>
    %802 = arith.mulf %801, %800 : vector<7x128xf32>
    %803 = arith.addf %798, %802 : vector<7x128xf32>
    %c5_576 = arith.constant 5 : index
    %c0_577 = arith.constant 0 : index
    %c0_578 = arith.constant 0 : index
    %804 = vector.load %arg1[%c5_576, %c0_577, %c0_578] : memref<8x8x128xf32, #tpu.memory_space<vmem>>, vector<1x7x128xf32>
    %805 = vector.shape_cast %804 : vector<1x7x128xf32> to vector<7x128xf32>
    %806 = vector.broadcast %762 : f32 to vector<7x128xf32>
    %807 = arith.mulf %806, %805 : vector<7x128xf32>
    %808 = arith.addf %803, %807 : vector<7x128xf32>
    %c4_579 = arith.constant 4 : index
    %c1_580 = arith.constant 1 : index
    %c0_581 = arith.constant 0 : index
    %809 = vector.load %arg1[%c4_579, %c1_580, %c0_581] : memref<8x8x128xf32, #tpu.memory_space<vmem>>, vector<1x7x128xf32>
    %810 = vector.shape_cast %809 : vector<1x7x128xf32> to vector<7x128xf32>
    %811 = vector.broadcast %763 : f32 to vector<7x128xf32>
    %812 = arith.mulf %811, %810 : vector<7x128xf32>
    %813 = arith.addf %808, %812 : vector<7x128xf32>
    %c6_582 = arith.constant 6 : index
    %c0_583 = arith.constant 0 : index
    %c0_584 = arith.constant 0 : index
    %814 = vector.load %arg1[%c6_582, %c0_583, %c0_584] : memref<8x8x128xf32, #tpu.memory_space<vmem>>, vector<1x7x128xf32>
    %815 = vector.shape_cast %814 : vector<1x7x128xf32> to vector<7x128xf32>
    %816 = vector.broadcast %764 : f32 to vector<7x128xf32>
    %817 = arith.mulf %816, %815 : vector<7x128xf32>
    %818 = arith.addf %813, %817 : vector<7x128xf32>
    %c7_585 = arith.constant 7 : index
    %c0_586 = arith.constant 0 : index
    %c0_587 = arith.constant 0 : index
    %819 = vector.load %arg1[%c7_585, %c0_586, %c0_587] : memref<8x8x128xf32, #tpu.memory_space<vmem>>, vector<1x7x128xf32>
    %820 = vector.shape_cast %819 : vector<1x7x128xf32> to vector<7x128xf32>
    %821 = vector.broadcast %765 : f32 to vector<7x128xf32>
    %822 = arith.mulf %821, %820 : vector<7x128xf32>
    %823 = arith.addf %818, %822 : vector<7x128xf32>
    %c6_588 = arith.constant 6 : index
    %c1_589 = arith.constant 1 : index
    %c0_590 = arith.constant 0 : index
    %824 = vector.load %arg1[%c6_588, %c1_589, %c0_590] : memref<8x8x128xf32, #tpu.memory_space<vmem>>, vector<1x7x128xf32>
    %825 = vector.shape_cast %824 : vector<1x7x128xf32> to vector<7x128xf32>
    %826 = vector.broadcast %766 : f32 to vector<7x128xf32>
    %827 = arith.mulf %826, %825 : vector<7x128xf32>
    %828 = arith.addf %823, %827 : vector<7x128xf32>
    %c7_591 = arith.constant 7 : index
    %c0_592 = arith.constant 0 : index
    %c0_593 = arith.constant 0 : index
    %829 = vector.load %arg3[%c7_591, %c0_592, %c0_593] : memref<8x7x128xf32, #tpu.memory_space<vmem>>, vector<1x7x128xf32>
    %830 = vector.shape_cast %829 : vector<1x7x128xf32> to vector<7x128xf32>
    %831 = vector.shape_cast %828 : vector<7x128xf32> to vector<1x7x128xf32>
    tpu.vector_store %arg3[%c7_591, %c0_592, %c0_593], %831 {strides = array<i32>} : memref<8x7x128xf32, #tpu.memory_space<vmem>>, vector<1x7x128xf32>,
    %832 = vector.shape_cast %828 : vector<7x128xf32> to vector<1x7x128xf32>
    %cst_594 = arith.constant dense<0.000000e+00> : vector<1xf32>
    %833 = vector.multi_reduction <add>, %832, %cst_594 [1, 2] : vector<1x7x128xf32> to vector<1xf32>
    %834 = vector.shape_cast %833 : vector<1xf32> to vector<1x1x1xf32>
    %835 = vector.extract %834[0, 0, 0] : f32 from vector<1x1x1xf32>
    %836 = vector.broadcast %835 : f32 to vector<1x1xf32>
    %837 = arith.addf %767, %836 : vector<1x1xf32>
    %838 = vector.broadcast %4 : f32 to vector<1x1xf32>
    %839 = arith.divf %837, %838 : vector<1x1xf32>
    %cst_595 = arith.constant 0.000000e+00 : f32
    %840 = vector.broadcast %cst_595 : f32 to vector<1x1xf32>
    %c7_596 = arith.constant 7 : index
    %c0_597 = arith.constant 0 : index
    %c0_598 = arith.constant 0 : index
    %841 = vector.load %arg3[%c7_596, %c0_597, %c0_598] : memref<8x7x128xf32, #tpu.memory_space<vmem>>, vector<1x7x128xf32>
    %842 = vector.shape_cast %841 : vector<1x7x128xf32> to vector<7x128xf32>
    %843 = vector.broadcast %839 : vector<1x1xf32> to vector<7x128xf32>
    %844 = arith.subf %842, %843 : vector<7x128xf32>
    %845 = arith.mulf %844, %844 : vector<7x128xf32>
    %846 = vector.shape_cast %845 : vector<7x128xf32> to vector<1x7x128xf32>
    %cst_599 = arith.constant dense<0.000000e+00> : vector<1xf32>
    %847 = vector.multi_reduction <add>, %846, %cst_599 [1, 2] : vector<1x7x128xf32> to vector<1xf32>
    %848 = vector.shape_cast %847 : vector<1xf32> to vector<1x1x1xf32>
    %849 = vector.extract %848[0, 0, 0] : f32 from vector<1x1x1xf32>
    %850 = vector.broadcast %849 : f32 to vector<1x1xf32>
    %851 = arith.addf %840, %850 : vector<1x1xf32>
    %852 = vector.broadcast %5 : f32 to vector<1x1xf32>
    %853 = arith.mulf %852, %839 : vector<1x1xf32>
    %854 = arith.mulf %853, %839 : vector<1x1xf32>
    %855 = arith.subf %851, %854 : vector<1x1xf32>
    %c0_600 = arith.constant 0 : index
    %c7_601 = arith.constant 7 : index
    %c0_602 = arith.constant 0 : index
    %856 = vector.load %arg4[%c0_600, %c7_601, %c0_602] : memref<1x8x2xf32, #tpu.memory_space<vmem>>, vector<1x1x1xf32>
    %857 = vector.shape_cast %856 : vector<1x1x1xf32> to vector<1x1xf32>
    %858 = vector.shape_cast %837 : vector<1x1xf32> to vector<1x1x1xf32>
    tpu.vector_store %arg4[%c0_600, %c7_601, %c0_602], %858 {strides = array<i32>} : memref<1x8x2xf32, #tpu.memory_space<vmem>>, vector<1x1x1xf32>,
    %c0_603 = arith.constant 0 : index
    %c7_604 = arith.constant 7 : index
    %c1_605 = arith.constant 1 : index
    %859 = vector.load %arg4[%c0_603, %c7_604, %c1_605] : memref<1x8x2xf32, #tpu.memory_space<vmem>>, vector<1x1x1xf32>
    %860 = vector.shape_cast %859 : vector<1x1x1xf32> to vector<1x1xf32>
    %861 = vector.shape_cast %855 : vector<1x1xf32> to vector<1x1x1xf32>
    tpu.vector_store %arg4[%c0_603, %c7_604, %c1_605], %861 {strides = array<i32>} : memref<1x8x2xf32, #tpu.memory_space<vmem>>, vector<1x1x1xf32>,
    return
  }
  func.func @transform_0(%arg0: i32) -> (i32, i32, i32) {
    %c0_i32 = arith.constant 0 : i32
    %c0_i32_0 = arith.constant 0 : i32
    %c0_i32_1 = arith.constant 0 : i32
    return %c0_i32, %c0_i32_0, %arg0 : i32, i32, i32
  }
  func.func @transform_1(%arg0: i32) -> (i32, i32) {
    %c0_i32 = arith.constant 0 : i32
    %c0_i32_0 = arith.constant 0 : i32
    %c0_i32_1 = arith.constant 0 : i32
    return %c0_i32, %c0_i32_0 : i32, i32
  }
  func.func @transform_2(%arg0: i32) -> (i32, i32, i32) {
    %c0_i32 = arith.constant 0 : i32
    %c0_i32_0 = arith.constant 0 : i32
    %c0_i32_1 = arith.constant 0 : i32
    return %c0_i32, %c0_i32_0, %arg0 : i32, i32, i32
  }
  func.func @transform_3(%arg0: i32) -> (i32, i32, i32) {
    %c0_i32 = arith.constant 0 : i32
    %c0_i32_0 = arith.constant 0 : i32
    %c0_i32_1 = arith.constant 0 : i32
    return %arg0, %c0_i32, %c0_i32_0 : i32, i32, i32
  }
}

</mosaic_0001>

<llo_original>
// kernel: squeeze.3
$region0: #{squeeze.3}
  %s0 = inlined_call_operand.vmem [shape: f32[8,4,3], index: 0, kind: input, shape index: {}]
  %s1 = inlined_call_operand.vmem [shape: f32[8,12], index: 1, kind: output, shape index: {}]
  $region1: #{squeeze.3} parent=0
    #allocation0 [shape = 'u8[16384]{0}', space=vmem, size = 0x4000, scoped, tag = 'scoped mem for input reshape']
    %s3 = sshll.u32 1, 4
    %s4 = ssub.s32 %s3, 1
    %s5 = smul.addr 4, 3
    %s6 = scalar_lea.vmem %s0, %s5
    %v7 = vld [vmem:[%s6] sm:%s4]
    %s8 = scalar_lea.vmem [#allocation0], 24
    %9 = vst [vmem:[%s8] sm:%s4] %v7
    %s10 = smul.addr 4, 2
    %s11 = scalar_lea.vmem %s0, %s10
    %v12 = vld [vmem:[%s11] sm:%s4]
    %s13 = scalar_lea.vmem [#allocation0], 16
    %14 = vst [vmem:[%s13] sm:%s4] %v12
    %s15 = scalar_lea.vmem %s0, 4
    %v16 = vld [vmem:[%s15] sm:%s4]
    %s17 = scalar_lea.vmem [#allocation0], 8
    %18 = vst [vmem:[%s17] sm:%s4] %v16
    %v19 = vld [vmem:[%s0] sm:%s4]
    %20 = vst [vmem:[#allocation0] sm:%s4] %v19
    %v21 = vld [vmem:[#allocation0] sm:$0x7]
    %vm22 = vcmask 64512
    %23 = vst.msk [vmem:[%s1] sm:$0x7] %vm22, %v21
    %s24 = scalar_lea.vmem [#allocation0], 8
    %v25 = vld [vmem:[%s24] sm:$0x7]
    %vm26 = vcmask 64512
    %s27 = scalar_lea.vmem %s1, 3
    %28 = vst.msk [vmem:[%s27] sm:$0x7] %vm26, %v25
    %s29 = scalar_lea.vmem [#allocation0], 16
    %v30 = vld [vmem:[%s29] sm:$0x7]
    %vm31 = vcmask 64512
    %s32 = scalar_lea.vmem %s1, 6
    %33 = vst.msk [vmem:[%s32] sm:$0x7] %vm31, %v30
    %s34 = scalar_lea.vmem [#allocation0], 24
    %v35 = vld [vmem:[%s34] sm:$0x7]
    %vm36 = vcmask 64512
    %s37 = scalar_lea.vmem %s1, 9
    %38 = vst.msk [vmem:[%s37] sm:$0x7] %vm36, %v35

// kernel: spatial_block.1
$region0: #{spatial_block.1}
  #allocation0 [shape = 'u32[]', space=smem, size = 0x4, offset = 0x4, fixed_abs, tag = 'smem constant byte address 0x4 - core index']
  #allocation1 [shape = 'u32[144,128]{1,0:T(1,128)}', space=vmem, size = 0x12000, scoped, tag = 'internal scratch']
  %s0 = inlined_call_operand.vmem [shape: f32[8,8,256], index: 0, kind: input, shape index: {}]
  %s1 = inlined_call_operand.vmem [shape: f32[8,12], index: 1, kind: input, shape index: {}]
  %s2 = inlined_call_operand.vmem [shape: f32[8,7,256], index: 2, kind: output, shape index: {0}]
  %s3 = inlined_call_operand.vmem [shape: f32[2,8,2], index: 3, kind: output, shape index: {1}]
  %4 = xla_tuple %s2, %s3
  %s5 = sld [smem:[#allocation0]]
  $region125: #{spatial_block.1} parent=0
    _
  %s7 = ssub.s32 1, %s5
  %s8 = scalar_select 0, %s7, %s5
  $region1: #{spatial_block.1} parent=0
    #allocation2 [shape = 'u8[65536]{0}', space=vmem, size = 0x10000, scoped, tag = 'input window, operand 0']
    #allocation3 [shape = 'u8[4096]{0}', space=smem, size = 0x1000, scoped, tag = 'input window, operand 1, single buffered']
    #allocation4 [shape = 's32[2]{0}', space=sflag, size = 0x8, scoped, tag = 'scoped memory for spatial_block.1']
    #allocation5 [shape = 'u8[65536]{0}', space=vmem, size = 0x10000, scoped, tag = 'output window, operand 0']
    %9 = vsyncpa [#allocation4], 0
    loop: start=0, step=1, limit=4
    $region2: #{spatial_block.1} parent=1 // loop_pre_header
      _
    $region3: #{spatial_block.1} parent=1 // loop_header
      %s11 = sphi 0, %s15
      %p12 = scmp.ge.s32.totalorder %s11, 4
      %s21 = sphi 0, %s23
      %s24 = sphi 0, %s21
      %s25 = sphi 0, %s24
      %s41 = sphi 0, %s25
      %s45 = sphi 0, %s45
      %s47 = sphi 0, %s45
      %s48 = sphi 0, %s47
      %s62 = sphi 0, %s48
      %s68 = sphi 0, %s70
      %s71 = sphi 0, %s68
      %s72 = sphi 0, %s71
      %s88 = sphi 0, %s72
      %s94 = sphi 0, %s96
      %s97 = sphi 0, %s94
      %s98 = sphi 0, %s97
      %s114 = sphi 0, %s98
    $region4: #{spatial_block.1} parent=1 // loop_header_branch
      %14 = sbr.rel (%p12) target = $region8
    $region5: #{spatial_block.1} parent=1 // loop_body
      %s16 = ssub.s32 %s11, 1
      %s17 = ssub.s32 %s11, 2
      %s18 = sadd.s32 %s11, 1
      %s19 = ssub.s32 %s11, %s18
      %p20 = scmp.eq.s32.totalorder %s19, 0
      %s22 = sadd.s32 %s21, 1
      %s23 = scalar_select %p20, %s21, %s22
      %p26 = pneg %p20
      %p27 = scmp.eq.s32.totalorder %s11, 1
      %p28 = por %p26, %p27
      %p29 = scmp.ne.s32.totalorder %s21, %s24
      %p30 = scmp.eq.s32.totalorder %s11, 0
      %p31 = por %p29, %p30
      %p32 = scmp.ne.s32.totalorder %s21, %s24
      %p33 = scmp.eq.s32.totalorder %s16, 1
      %p34 = por %p32, %p33
      %p35 = scmp.ne.s32.totalorder %s24, %s25
      %p36 = scmp.eq.s32.totalorder %s16, 0
      %p37 = por %p35, %p36
      %p38 = scmp.ne.s32.totalorder %s24, %s25
      %p39 = scmp.eq.s32.totalorder %s17, 1
      %p40 = por %p38, %p39
      %p42 = scmp.ne.s32.totalorder %s25, %s41
      %p43 = scmp.eq.s32.totalorder %s17, 0
      %p44 = por %p42, %p43
      %s46 = sadd.s32 %s45, 1
      %p49 = scmp.eq.s32.totalorder %s11, 1
      %p50 = scmp.ne.s32.totalorder %s45, %s47
      %p51 = scmp.eq.s32.totalorder %s11, 0
      %p52 = por %p50, %p51
      %p53 = scmp.ne.s32.totalorder %s45, %s47
      %p54 = scmp.eq.s32.totalorder %s16, 1
      %p55 = por %p53, %p54
      %p56 = scmp.ne.s32.totalorder %s47, %s48
      %p57 = scmp.eq.s32.totalorder %s16, 0
      %p58 = por %p56, %p57
      %p59 = scmp.ne.s32.totalorder %s47, %s48
      %p60 = scmp.eq.s32.totalorder %s17, 1
      %p61 = por %p59, %p60
      %p63 = scmp.ne.s32.totalorder %s48, %s62
      %p64 = scmp.eq.s32.totalorder %s17, 0
      %p65 = por %p63, %p64
      %s66 = ssub.s32 %s11, %s18
      %p67 = scmp.eq.s32.totalorder %s66, 0
      %s69 = sadd.s32 %s68, 1
      %s70 = scalar_select %p67, %s68, %s69
      %p73 = pneg %p67
      %p74 = scmp.eq.s32.totalorder %s11, 1
      %p75 = por %p73, %p74
      %p76 = scmp.ne.s32.totalorder %s68, %s71
      %p77 = scmp.eq.s32.totalorder %s11, 0
      %p78 = por %p76, %p77
      %p79 = scmp.ne.s32.totalorder %s68, %s71
      %p80 = scmp.eq.s32.totalorder %s16, 1
      %p81 = por %p79, %p80
      %p82 = scmp.ne.s32.totalorder %s71, %s72
      %p83 = scmp.eq.s32.totalorder %s16, 0
      %p84 = por %p82, %p83
      %p85 = scmp.ne.s32.totalorder %s71, %s72
      %p86 = scmp.eq.s32.totalorder %s17, 1
      %p87 = por %p85, %p86
      %p89 = scmp.ne.s32.totalorder %s72, %s88
      %p90 = scmp.eq.s32.totalorder %s17, 0
      %p91 = por %p89, %p90
      %s92 = ssub.s32 %s11, %s18
      %p93 = scmp.eq.s32.totalorder %s92, 0
      %s95 = sadd.s32 %s94, 1
      %s96 = scalar_select %p93, %s94, %s95
      %p99 = pneg %p93
      %p100 = scmp.eq.s32.totalorder %s11, 1
      %p101 = por %p99, %p100
      %p102 = scmp.ne.s32.totalorder %s94, %s97
      %p103 = scmp.eq.s32.totalorder %s11, 0
      %p104 = por %p102, %p103
      %p105 = scmp.ne.s32.totalorder %s94, %s97
      %p106 = scmp.eq.s32.totalorder %s16, 1
      %p107 = por %p105, %p106
      %p108 = scmp.ne.s32.totalorder %s97, %s98
      %p109 = scmp.eq.s32.totalorder %s16, 0
      %p110 = por %p108, %p109
      %p111 = scmp.ne.s32.totalorder %s97, %s98
      %p112 = scmp.eq.s32.totalorder %s17, 1
      %p113 = por %p111, %p112
      %p115 = scmp.ne.s32.totalorder %s98, %s114
      %p116 = scmp.eq.s32.totalorder %s17, 0
      %p117 = por %p115, %p116
      %p118 = scmp.le.s32.totalorder 1, %s11
      %p119 = scmp.lt.s32.totalorder %s11, 3
      %p120 = pnand %p118, %p119
      %p121 = pneg %p120
      // Predicated region
      $region9: #{spatial_block.1} parent=5 // pred_check
        _
      $region10: #{spatial_block.1} parent=5 // pred_check_branch
        %123 = sbr.rel (%p120) target = $region12
      $region11: #{spatial_block.1} parent=5 // pred_region
        %s124 = ssub.s32 %s11, 1
        // Predicated region
        $region13: #{spatial_block.1} parent=11 // pred_check
          %p125 = pneg %p58
        $region14: #{spatial_block.1} parent=11 // pred_check_branch
          %127 = sbr.rel (%p125) target = $region16
        $region15: #{spatial_block.1} parent=11 // pred_region
          %s129 = ssub.s32 128, 128
          %130 = vsyncadd [#allocation4], %s129
          %s132 = sshll.u32 %s1, 4
          %s133 = int_to_ptr.vmem [resolvable:$true] %s132
          %135 = dma.vmem_to_smem %s133, 128, [#allocation3], [#allocation4]
        $region16: #{spatial_block.1} parent=11 // pred_fallthru
          _
      $region12: #{spatial_block.1} parent=5 // pred_fallthru
        _
      %p136 = scmp.lt.s32.totalorder %s11, 2
      // Predicated region
      $region17: #{spatial_block.1} parent=5 // pred_check
        %p137 = pneg %p136
      $region18: #{spatial_block.1} parent=5 // pred_check_branch
        %139 = sbr.rel (%p137) target = $region20
      $region19: #{spatial_block.1} parent=5 // pred_region
        // Predicated region
        $region21: #{spatial_block.1} parent=19 // pred_check
          %p140 = pneg %p31
        $region22: #{spatial_block.1} parent=19 // pred_check_branch
          %142 = sbr.rel (%p140) target = $region24
        $region23: #{spatial_block.1} parent=19 // pred_region
          %s143 = sand.u32 %s21, 1
          %s144 = sand.u32 %s21, 1
          %s145 = smul.addr %s144, 64
          %s146 = scalar_lea.vmem [#allocation2], %s145
          %s147 = smul.addr %s11, 8
          %s148 = scalar_lea.vmem %s0, %s147
          // Predicated region
          $region25: #{spatial_block.1} parent=23 // pred_check
            _
          $region26: #{spatial_block.1} parent=23 // pred_check_branch
            %150 = sbr.rel (0) target = $region28
          $region27: #{spatial_block.1} parent=23 // pred_region
            // Predicated region
            $region29: #{spatial_block.1} parent=27 // pred_check
              _
            $region30: #{spatial_block.1} parent=27 // pred_check_branch
              %152 = sbr.rel (0) target = $region32
            $region31: #{spatial_block.1} parent=27 // pred_region
              // Predicated region
              $region44: #{spatial_block.1} parent=31 // pred_check
                _
              $region45: #{spatial_block.1} parent=31 // pred_check_branch
                %182 = sbr.rel (0) target = $region47
              $region46: #{spatial_block.1} parent=31 // pred_region
                loop: start=0, step=1, limit=1
                $region48: #{spatial_block.1} parent=46 // loop_pre_header
                  _
                $region49: #{spatial_block.1} parent=46 // loop_header
                  %s184 = sphi 0, %s188
                  %p185 = scmp.ge.s32.totalorder %s184, 1
                  %s189 = sphi %s148, %s148
                  %s190 = sphi %s146, %s146
                $region50: #{spatial_block.1} parent=46 // loop_header_branch
                  %187 = sbr.rel (%p185) target = $region54
                $region51: #{spatial_block.1} parent=46 // loop_body
                  %v191 = vld [vmem:[%s189] sm:$0xff]
                  %192 = vst [vmem:[%s190] sm:$0xff] %v191
                  %v193 = vld [vmem:[%s189 + $0x10] sm:$0xff]
                  %194 = vst [vmem:[%s190 + $0x8] sm:$0xff] %v193
                  %v195 = vld [vmem:[%s189 + $0x20] sm:$0xff]
                  %196 = vst [vmem:[%s190 + $0x10] sm:$0xff] %v195
                  %v197 = vld [vmem:[%s189 + $0x30] sm:$0xff]
                  %198 = vst [vmem:[%s190 + $0x18] sm:$0xff] %v197
                  %v199 = vld [vmem:[%s189 + $0x40] sm:$0xff]
                  %200 = vst [vmem:[%s190 + $0x20] sm:$0xff] %v199
                  %v201 = vld [vmem:[%s189 + $0x50] sm:$0xff]
                  %202 = vst [vmem:[%s190 + $0x28] sm:$0xff] %v201
                  %v203 = vld [vmem:[%s189 + $0x60] sm:$0xff]
                  %204 = vst [vmem:[%s190 + $0x30] sm:$0xff] %v203
                  %v205 = vld [vmem:[%s189 + $0x70] sm:$0xff]
                  %206 = vst [vmem:[%s190 + $0x38] sm:$0xff] %v205
                $region52: #{spatial_block.1} parent=46 // loop_footer
                  %s188 = sadd.s32 1, %s184
                $region53: #{spatial_block.1} parent=46 // loop_footer_branch
                  %183 = sbr.rel target = $region49
                $region54: #{spatial_block.1} parent=46 // loop_exit
                  _
              $region47: #{spatial_block.1} parent=31 // pred_fallthru
                _
              // Predicated region
              $region55: #{spatial_block.1} parent=31 // pred_check
                _
              $region56: #{spatial_block.1} parent=31 // pred_check_branch
                %208 = sbr.rel target = $region58
              $region57: #{spatial_block.1} parent=31 // pred_region
                _
              $region58: #{spatial_block.1} parent=31 // pred_fallthru
                _
            $region32: #{spatial_block.1} parent=27 // pred_fallthru
              _
            // Predicated region
            $region33: #{spatial_block.1} parent=27 // pred_check
              _
            $region34: #{spatial_block.1} parent=27 // pred_check_branch
              %154 = sbr.rel target = $region36
            $region35: #{spatial_block.1} parent=27 // pred_region
              %s156 = ssub.s32 256, 1
              loop: start=0, step=1, limit=1
              $region37: #{spatial_block.1} parent=35 // loop_pre_header
                _
              $region38: #{spatial_block.1} parent=35 // loop_header
                %s158 = sphi 0, %s162
                %p159 = scmp.ge.s32.totalorder %s158, 1
                %s163 = sphi %s148, %s148
                %s164 = sphi %s146, %s146
              $region39: #{spatial_block.1} parent=35 // loop_header_branch
                %161 = sbr.rel (%p159) target = $region43
              $region40: #{spatial_block.1} parent=35 // loop_body
                %v165 = vld [vmem:[%s163] sm:%s156]
                %166 = vst [vmem:[%s164] sm:%s156] %v165
                %v167 = vld [vmem:[%s163 + $0x10] sm:%s156]
                %168 = vst [vmem:[%s164 + $0x8] sm:%s156] %v167
                %v169 = vld [vmem:[%s163 + $0x20] sm:%s156]
                %170 = vst [vmem:[%s164 + $0x10] sm:%s156] %v169
                %v171 = vld [vmem:[%s163 + $0x30] sm:%s156]
                %172 = vst [vmem:[%s164 + $0x18] sm:%s156] %v171
                %v173 = vld [vmem:[%s163 + $0x40] sm:%s156]
                %174 = vst [vmem:[%s164 + $0x20] sm:%s156] %v173
                %v175 = vld [vmem:[%s163 + $0x50] sm:%s156]
                %176 = vst [vmem:[%s164 + $0x28] sm:%s156] %v175
                %v177 = vld [vmem:[%s163 + $0x60] sm:%s156]
                %178 = vst [vmem:[%s164 + $0x30] sm:%s156] %v177
                %v179 = vld [vmem:[%s163 + $0x70] sm:%s156]
                %180 = vst [vmem:[%s164 + $0x38] sm:%s156] %v179
              $region41: #{spatial_block.1} parent=35 // loop_footer
                %s162 = sadd.s32 1, %s158
              $region42: #{spatial_block.1} parent=35 // loop_footer_branch
                %157 = sbr.rel target = $region38
              $region43: #{spatial_block.1} parent=35 // loop_exit
                _
            $region36: #{spatial_block.1} parent=27 // pred_fallthru
              _
          $region28: #{spatial_block.1} parent=23 // pred_fallthru
            _
          %209 = vnop
        $region24: #{spatial_block.1} parent=19 // pred_fallthru
          _
      $region20: #{spatial_block.1} parent=5 // pred_fallthru
        _
      %p210 = scmp.le.s32.totalorder 1, %s11
      %p211 = scmp.lt.s32.totalorder %s11, 3
      %p212 = pnand %p210, %p211
      %p213 = pneg %p212
      // Predicated region
      $region59: #{spatial_block.1} parent=5 // pred_check
        _
      $region60: #{spatial_block.1} parent=5 // pred_check_branch
        %215 = sbr.rel (%p212) target = $region62
      $region61: #{spatial_block.1} parent=5 // pred_region
        %s216 = ssub.s32 %s11, 1
        %s217 = sand.u32 %s24, 1
        %s218 = sand.u32 %s24, 1
        %s219 = smul.addr %s218, 64
        %s220 = scalar_lea.vmem [#allocation2], %s219
        // Predicated region
        $region63: #{spatial_block.1} parent=61 // pred_check
          %p221 = pneg %p37
        $region64: #{spatial_block.1} parent=61 // pred_check_branch
          %223 = sbr.rel (%p221) target = $region66
        $region65: #{spatial_block.1} parent=61 // pred_region
          _
        $region66: #{spatial_block.1} parent=61 // pred_fallthru
          _
        // Predicated region
        $region67: #{spatial_block.1} parent=61 // pred_check
          %p224 = pneg %p58
        $region68: #{spatial_block.1} parent=61 // pred_check_branch
          %226 = sbr.rel (%p224) target = $region70
        $region69: #{spatial_block.1} parent=61 // pred_region
          %227 = dma.done [#allocation4], 128
        $region70: #{spatial_block.1} parent=61 // pred_fallthru
          _
        %228 = sfence
        %s229 = sand.u32 %s24, 1
        %s230 = sand.u32 %s24, 1
        %s231 = smul.addr %s230, 64
        %s232 = scalar_lea.vmem [#allocation2], %s231
        %p233 = pneg %p37
        %p234 = pneg %p34
        %p235 = pneg %p58
        %p236 = pneg %p55
        %p237 = pneg %p84
        %p238 = pneg %p81
        %s239 = sand.u32 %s71, 1
        %s240 = sand.u32 %s71, 1
        %s241 = smul.addr %s240, 64
        %s242 = scalar_lea.vmem [#allocation5], %s241
        %p243 = pneg %p110
        %p244 = pneg %p107
        %p245 = scmp.lt.s32.totalorder %s16, 1
        %s246 = scalar_select %p245, %s16, 1
        %s247 = smul.addr %s246, 8
        %s248 = scalar_lea.vmem %s3, %s247
        %p249 = scmp.lt.s32.totalorder %s16, 1
        %s250 = scalar_select %p249, %s16, 1
        %s251 = smul.addr %s250, 8
        %s252 = scalar_lea.vmem %s3, %s251
        %s253 = smul.u32 %s16, 128
        %s254 = ssub.s32 144, %s253
        %p255 = scmp.lt.s32.totalorder %s254, 128
        %s256 = scalar_select %p255, %s254, 128
        %s257 = scvt.s32.f32 %s256
        %s258 = smul.f32 %s257, 7.0
        %s259 = ssub.f32 896.0, %s258
        %s260 = sld [smem:[#allocation3]]
        %s261 = sld [smem:[#allocation3 + $0x1]]
        %s262 = sld [smem:[#allocation3 + $0x2]]
        %s263 = sld [smem:[#allocation3 + $0x3]]
        %s264 = sld [smem:[#allocation3 + $0x4]]
        %s265 = sld [smem:[#allocation3 + $0x5]]
        %s266 = sld [smem:[#allocation3 + $0x6]]
        %s267 = sld [smem:[#allocation3 + $0x7]]
        %s268 = sld [smem:[#allocation3 + $0x8]]
        %s269 = sld [smem:[#allocation3 + $0x9]]
        %s270 = sld [smem:[#allocation3 + $0xa]]
        %s271 = sld [smem:[#allocation3 + $0xb]]
        %v272 = vld [vmem:[%s220] sm:$0x7f]
        %v273 = vstv %s260
        %v274 = vmul.f32 %v273, %v272
        %v275 = vadd.f32 %v274, 0.0
        %s276 = scalar_lea.vmem %s220, 8 [#allocation2]
        %v277 = vld [vmem:[%s276] sm:$0x7f]
        %v278 = vstv %s261
        %v279 = vmul.f32 %v278, %v277
        %v280 = vadd.f32 %v275, %v279
        %v281 = vld [vmem:[%s220 + $0x1] sm:$0x7f]
        %v282 = vstv %s262
        %v283 = vmul.f32 %v282, %v281
        %v284 = vadd.f32 %v280, %v283
        %s285 = scalar_lea.vmem %s220, 16 [#allocation2]
        %v286 = vld [vmem:[%s285] sm:$0x7f]
        %v287 = vstv %s263
        %v288 = vmul.f32 %v287, %v286
        %v289 = vadd.f32 %v284, %v288
        %s290 = scalar_lea.vmem %s220, 24 [#allocation2]
        %v291 = vld [vmem:[%s290] sm:$0x7f]
        %v292 = vstv %s264
        %v293 = vmul.f32 %v292, %v291
        %v294 = vadd.f32 %v289, %v293
        %v295 = vld [vmem:[%s285 + $0x1] sm:$0x7f]
        %v296 = vstv %s265
        %v297 = vmul.f32 %v296, %v295
        %v298 = vadd.f32 %v294, %v297
        %s299 = scalar_lea.vmem %s220, 32 [#allocation2]
        %v300 = vld [vmem:[%s299] sm:$0x7f]
        %v301 = vstv %s266
        %v302 = vmul.f32 %v301, %v300
        %v303 = vadd.f32 %v298, %v302
        %s304 = scalar_lea.vmem %s220, 40 [#allocation2]
        %v305 = vld [vmem:[%s304] sm:$0x7f]
        %v306 = vstv %s267
        %v307 = vmul.f32 %v306, %v305
        %v308 = vadd.f32 %v303, %v307
        %v309 = vld [vmem:[%s299 + $0x1] sm:$0x7f]
        %v310 = vstv %s268
        %v311 = vmul.f32 %v310, %v309
        %v312 = vadd.f32 %v308, %v311
        %s313 = scalar_lea.vmem %s220, 48 [#allocation2]
        %v314 = vld [vmem:[%s313] sm:$0x7f]
        %v315 = vstv %s269
        %v316 = vmul.f32 %v315, %v314
        %v317 = vadd.f32 %v312, %v316
        %s318 = scalar_lea.vmem %s220, 56 [#allocation2]
        %v319 = vld [vmem:[%s318] sm:$0x7f]
        %v320 = vstv %s270
        %v321 = vmul.f32 %v320, %v319
        %v322 = vadd.f32 %v317, %v321
        %v323 = vld [vmem:[%s313 + $0x1] sm:$0x7f]
        %v324 = vstv %s271
        %v325 = vmul.f32 %v324, %v323
        %v326 = vadd.f32 %v322, %v325
        %327 = vst [vmem:[%s242] sm:$0x7f] %v326
        %vm328 = vcmask 1046528
        %v329 = vsel %vm328, %v326, 0.0
        %330 = vadd.xlane.f32.xlu0 %v329
        %v331 = vpop.xlane.xlu0 %330
        %v332 = vrot.slane %v331, 4
        %v333 = vadd.f32 %v331, %v332
        %v334 = vrot.slane %v333, 2
        %v335 = vadd.f32 %v333, %v334
        %v336 = vrot.slane %v335, 1
        %v337 = vadd.f32 %v335, %v336
        %s338 = vtos %v337
        %v339 = vstv %s338
        %v340 = vadd.f32 %v339, 0.0
        %v341 = vstv %s258
        %v342 = vrcp.pop %v341
        %v343 = vmul.f32 %v340, %v342
        %v344 = vld [vmem:[%s242] sm:$0x7f]
        %v345 = vsub.f32 %v344, %v343
        %v346 = vmul.f32 %v345, %v345
        %v347 = vsel %vm328, %v346, 0.0
        %348 = vadd.xlane.f32.xlu0 %v347
        %v349 = vpop.xlane.xlu0 %348
        %v350 = vrot.slane %v349, 4
        %v351 = vadd.f32 %v349, %v350
        %v352 = vrot.slane %v351, 2
        %v353 = vadd.f32 %v351, %v352
        %v354 = vrot.slane %v353, 1
        %v355 = vadd.f32 %v353, %v354
        %s356 = vtos %v355
        %v357 = vstv %s356
        %v358 = vadd.f32 %v357, 0.0
        %v359 = vstv %s259
        %v360 = vmul.f32 %v359, %v343
        %v361 = vmul.f32 %v360, %v343
        %v362 = vsub.f32 %v358, %v361
        %vm363 = vcmask 0
        %364 = vst.msk [vmem:[%s252] sm:$0x1] %vm363, %v340
        %vm365 = vcmask 8200
        %366 = vst.msk [vmem:[%s252] sm:$0x1] %vm365, %v362
        %s367 = sld [smem:[#allocation3 + $0x80]]
        %s368 = sld [smem:[#allocation3 + $0x81]]
        %s369 = sld [smem:[#allocation3 + $0x82]]
        %s370 = sld [smem:[#allocation3 + $0x83]]
        %s371 = sld [smem:[#allocation3 + $0x84]]
        %s372 = sld [smem:[#allocation3 + $0x85]]
        %s373 = sld [smem:[#allocation3 + $0x86]]
        %s374 = sld [smem:[#allocation3 + $0x87]]
        %s375 = sld [smem:[#allocation3 + $0x88]]
        %s376 = sld [smem:[#allocation3 + $0x89]]
        %s377 = sld [smem:[#allocation3 + $0x8a]]
        %s378 = sld [smem:[#allocation3 + $0x8b]]
        %v379 = vld [vmem:[%s220] sm:$0x7f]
        %v380 = vstv %s367
        %v381 = vmul.f32 %v380, %v379
        %v382 = vadd.f32 %v381, 0.0
        %v383 = vld [vmem:[%s276] sm:$0x7f]
        %v384 = vstv %s368
        %v385 = vmul.f32 %v384, %v383
        %v386 = vadd.f32 %v382, %v385
        %v387 = vld [vmem:[%s220 + $0x1] sm:$0x7f]
        %v388 = vstv %s369
        %v389 = vmul.f32 %v388, %v387
        %v390 = vadd.f32 %v386, %v389
        %v391 = vld [vmem:[%s285] sm:$0x7f]
        %v392 = vstv %s370
        %v393 = vmul.f32 %v392, %v391
        %v394 = vadd.f32 %v390, %v393
        %v395 = vld [vmem:[%s290] sm:$0x7f]
        %v396 = vstv %s371
        %v397 = vmul.f32 %v396, %v395
        %v398 = vadd.f32 %v394, %v397
        %v399 = vld [vmem:[%s285 + $0x1] sm:$0x7f]
        %v400 = vstv %s372
        %v401 = vmul.f32 %v400, %v399
        %v402 = vadd.f32 %v398, %v401
        %v403 = vld [vmem:[%s299] sm:$0x7f]
        %v404 = vstv %s373
        %v405 = vmul.f32 %v404, %v403
        %v406 = vadd.f32 %v402, %v405
        %v407 = vld [vmem:[%s304] sm:$0x7f]
        %v408 = vstv %s374
        %v409 = vmul.f32 %v408, %v407
        %v410 = vadd.f32 %v406, %v409
        %v411 = vld [vmem:[%s299 + $0x1] sm:$0x7f]
        %v412 = vstv %s375
        %v413 = vmul.f32 %v412, %v411
        %v414 = vadd.f32 %v410, %v413
        %v415 = vld [vmem:[%s313] sm:$0x7f]
        %v416 = vstv %s376
        %v417 = vmul.f32 %v416, %v415
        %v418 = vadd.f32 %v414, %v417
        %v419 = vld [vmem:[%s318] sm:$0x7f]
        %v420 = vstv %s377
        %v421 = vmul.f32 %v420, %v419
        %v422 = vadd.f32 %v418, %v421
        %v423 = vld [vmem:[%s313 + $0x1] sm:$0x7f]
        %v424 = vstv %s378
        %v425 = vmul.f32 %v424, %v423
        %v426 = vadd.f32 %v422, %v425
        %s427 = scalar_lea.vmem %s242, 8 [#allocation5]
        %428 = vst [vmem:[%s427] sm:$0x7f] %v426
        %v429 = vsel %vm328, %v426, 0.0
        %430 = vadd.xlane.f32.xlu0 %v429
        %v431 = vpop.xlane.xlu0 %430
        %v432 = vrot.slane %v431, 4
        %v433 = vadd.f32 %v431, %v432
        %v434 = vrot.slane %v433, 2
        %v435 = vadd.f32 %v433, %v434
        %v436 = vrot.slane %v435, 1
        %v437 = vadd.f32 %v435, %v436
        %s438 = vtos %v437
        %v439 = vstv %s438
        %v440 = vadd.f32 %v439, 0.0
        %v441 = vmul.f32 %v440, %v342
        %v442 = vld [vmem:[%s427] sm:$0x7f]
        %v443 = vsub.f32 %v442, %v441
        %v444 = vmul.f32 %v443, %v443
        %v445 = vsel %vm328, %v444, 0.0
        %446 = vadd.xlane.f32.xlu0 %v445
        %v447 = vpop.xlane.xlu0 %446
        %v448 = vrot.slane %v447, 4
        %v449 = vadd.f32 %v447, %v448
        %v450 = vrot.slane %v449, 2
        %v451 = vadd.f32 %v449, %v450
        %v452 = vrot.slane %v451, 1
        %v453 = vadd.f32 %v451, %v452
        %s454 = vtos %v453
        %v455 = vstv %s454
        %v456 = vadd.f32 %v455, 0.0
        %v457 = vmul.f32 %v359, %v441
        %v458 = vmul.f32 %v457, %v441
        %v459 = vsub.f32 %v456, %v458
        %460 = vst.msk [vmem:[%s252 + $0x1] sm:$0x1] %vm363, %v440
        %461 = vst.msk [vmem:[%s252 + $0x1] sm:$0x1] %vm365, %v459
        %s462 = sld [smem:[#allocation3 + $0x100]]
        %s463 = sld [smem:[#allocation3 + $0x101]]
        %s464 = sld [smem:[#allocation3 + $0x102]]
        %s465 = sld [smem:[#allocation3 + $0x103]]
        %s466 = sld [smem:[#allocation3 + $0x104]]
        %s467 = sld [smem:[#allocation3 + $0x105]]
        %s468 = sld [smem:[#allocation3 + $0x106]]
        %s469 = sld [smem:[#allocation3 + $0x107]]
        %s470 = sld [smem:[#allocation3 + $0x108]]
        %s471 = sld [smem:[#allocation3 + $0x109]]
        %s472 = sld [smem:[#allocation3 + $0x10a]]
        %s473 = sld [smem:[#allocation3 + $0x10b]]
        %v474 = vld [vmem:[%s220] sm:$0x7f]
        %v475 = vstv %s462
        %v476 = vmul.f32 %v475, %v474
        %v477 = vadd.f32 %v476, 0.0
        %v478 = vld [vmem:[%s276] sm:$0x7f]
        %v479 = vstv %s463
        %v480 = vmul.f32 %v479, %v478
        %v481 = vadd.f32 %v477, %v480
        %v482 = vld [vmem:[%s220 + $0x1] sm:$0x7f]
        %v483 = vstv %s464
        %v484 = vmul.f32 %v483, %v482
        %v485 = vadd.f32 %v481, %v484
        %v486 = vld [vmem:[%s285] sm:$0x7f]
        %v487 = vstv %s465
        %v488 = vmul.f32 %v487, %v486
        %v489 = vadd.f32 %v485, %v488
        %v490 = vld [vmem:[%s290] sm:$0x7f]
        %v491 = vstv %s466
        %v492 = vmul.f32 %v491, %v490
        %v493 = vadd.f32 %v489, %v492
        %v494 = vld [vmem:[%s285 + $0x1] sm:$0x7f]
        %v495 = vstv %s467
        %v496 = vmul.f32 %v495, %v494
        %v497 = vadd.f32 %v493, %v496
        %v498 = vld [vmem:[%s299] sm:$0x7f]
        %v499 = vstv %s468
        %v500 = vmul.f32 %v499, %v498
        %v501 = vadd.f32 %v497, %v500
        %v502 = vld [vmem:[%s304] sm:$0x7f]
        %v503 = vstv %s469
        %v504 = vmul.f32 %v503, %v502
        %v505 = vadd.f32 %v501, %v504
        %v506 = vld [vmem:[%s299 + $0x1] sm:$0x7f]
        %v507 = vstv %s470
        %v508 = vmul.f32 %v507, %v506
        %v509 = vadd.f32 %v505, %v508
        %v510 = vld [vmem:[%s313] sm:$0x7f]
        %v511 = vstv %s471
        %v512 = vmul.f32 %v511, %v510
        %v513 = vadd.f32 %v509, %v512
        %v514 = vld [vmem:[%s318] sm:$0x7f]
        %v515 = vstv %s472
        %v516 = vmul.f32 %v515, %v514
        %v517 = vadd.f32 %v513, %v516
        %v518 = vld [vmem:[%s313 + $0x1] sm:$0x7f]
        %v519 = vstv %s473
        %v520 = vmul.f32 %v519, %v518
        %v521 = vadd.f32 %v517, %v520
        %s522 = scalar_lea.vmem %s242, 16 [#allocation5]
        %523 = vst [vmem:[%s522] sm:$0x7f] %v521
        %v524 = vsel %vm328, %v521, 0.0
        %525 = vadd.xlane.f32.xlu0 %v524
        %v526 = vpop.xlane.xlu0 %525
        %v527 = vrot.slane %v526, 4
        %v528 = vadd.f32 %v526, %v527
        %v529 = vrot.slane %v528, 2
        %v530 = vadd.f32 %v528, %v529
        %v531 = vrot.slane %v530, 1
        %v532 = vadd.f32 %v530, %v531
        %s533 = vtos %v532
        %v534 = vstv %s533
        %v535 = vadd.f32 %v534, 0.0
        %v536 = vmul.f32 %v535, %v342
        %v537 = vld [vmem:[%s522] sm:$0x7f]
        %v538 = vsub.f32 %v537, %v536
        %v539 = vmul.f32 %v538, %v538
        %v540 = vsel %vm328, %v539, 0.0
        %541 = vadd.xlane.f32.xlu0 %v540
        %v542 = vpop.xlane.xlu0 %541
        %v543 = vrot.slane %v542, 4
        %v544 = vadd.f32 %v542, %v543
        %v545 = vrot.slane %v544, 2
        %v546 = vadd.f32 %v544, %v545
        %v547 = vrot.slane %v546, 1
        %v548 = vadd.f32 %v546, %v547
        %s549 = vtos %v548
        %v550 = vstv %s549
        %v551 = vadd.f32 %v550, 0.0
        %v552 = vmul.f32 %v359, %v536
        %v553 = vmul.f32 %v552, %v536
        %v554 = vsub.f32 %v551, %v553
        %555 = vst.msk [vmem:[%s252 + $0x2] sm:$0x1] %vm363, %v535
        %556 = vst.msk [vmem:[%s252 + $0x2] sm:$0x1] %vm365, %v554
        %s557 = sld [smem:[#allocation3 + $0x180]]
        %s558 = sld [smem:[#allocation3 + $0x181]]
        %s559 = sld [smem:[#allocation3 + $0x182]]
        %s560 = sld [smem:[#allocation3 + $0x183]]
        %s561 = sld [smem:[#allocation3 + $0x184]]
        %s562 = sld [smem:[#allocation3 + $0x185]]
        %s563 = sld [smem:[#allocation3 + $0x186]]
        %s564 = sld [smem:[#allocation3 + $0x187]]
        %s565 = sld [smem:[#allocation3 + $0x188]]
        %s566 = sld [smem:[#allocation3 + $0x189]]
        %s567 = sld [smem:[#allocation3 + $0x18a]]
        %s568 = sld [smem:[#allocation3 + $0x18b]]
        %v569 = vld [vmem:[%s220] sm:$0x7f]
        %v570 = vstv %s557
        %v571 = vmul.f32 %v570, %v569
        %v572 = vadd.f32 %v571, 0.0
        %v573 = vld [vmem:[%s276] sm:$0x7f]
        %v574 = vstv %s558
        %v575 = vmul.f32 %v574, %v573
        %v576 = vadd.f32 %v572, %v575
        %v577 = vld [vmem:[%s220 + $0x1] sm:$0x7f]
        %v578 = vstv %s559
        %v579 = vmul.f32 %v578, %v577
        %v580 = vadd.f32 %v576, %v579
        %v581 = vld [vmem:[%s285] sm:$0x7f]
        %v582 = vstv %s560
        %v583 = vmul.f32 %v582, %v581
        %v584 = vadd.f32 %v580, %v583
        %v585 = vld [vmem:[%s290] sm:$0x7f]
        %v586 = vstv %s561
        %v587 = vmul.f32 %v586, %v585
        %v588 = vadd.f32 %v584, %v587
        %v589 = vld [vmem:[%s285 + $0x1] sm:$0x7f]
        %v590 = vstv %s562
        %v591 = vmul.f32 %v590, %v589
        %v592 = vadd.f32 %v588, %v591
        %v593 = vld [vmem:[%s299] sm:$0x7f]
        %v594 = vstv %s563
        %v595 = vmul.f32 %v594, %v593
        %v596 = vadd.f32 %v592, %v595
        %v597 = vld [vmem:[%s304] sm:$0x7f]
        %v598 = vstv %s564
        %v599 = vmul.f32 %v598, %v597
        %v600 = vadd.f32 %v596, %v599
        %v601 = vld [vmem:[%s299 + $0x1] sm:$0x7f]
        %v602 = vstv %s565
        %v603 = vmul.f32 %v602, %v601
        %v604 = vadd.f32 %v600, %v603
        %v605 = vld [vmem:[%s313] sm:$0x7f]
        %v606 = vstv %s566
        %v607 = vmul.f32 %v606, %v605
        %v608 = vadd.f32 %v604, %v607
        %v609 = vld [vmem:[%s318] sm:$0x7f]
        %v610 = vstv %s567
        %v611 = vmul.f32 %v610, %v609
        %v612 = vadd.f32 %v608, %v611
        %v613 = vld [vmem:[%s313 + $0x1] sm:$0x7f]
        %v614 = vstv %s568
        %v615 = vmul.f32 %v614, %v613
        %v616 = vadd.f32 %v612, %v615
        %s617 = scalar_lea.vmem %s242, 24 [#allocation5]
        %618 = vst [vmem:[%s617] sm:$0x7f] %v616
        %v619 = vsel %vm328, %v616, 0.0
        %620 = vadd.xlane.f32.xlu0 %v619
        %v621 = vpop.xlane.xlu0 %620
        %v622 = vrot.slane %v621, 4
        %v623 = vadd.f32 %v621, %v622
        %v624 = vrot.slane %v623, 2
        %v625 = vadd.f32 %v623, %v624
        %v626 = vrot.slane %v625, 1
        %v627 = vadd.f32 %v625, %v626
        %s628 = vtos %v627
        %v629 = vstv %s628
        %v630 = vadd.f32 %v629, 0.0
        %v631 = vmul.f32 %v630, %v342
        %v632 = vld [vmem:[%s617] sm:$0x7f]
        %v633 = vsub.f32 %v632, %v631
        %v634 = vmul.f32 %v633, %v633
        %v635 = vsel %vm328, %v634, 0.0
        %636 = vadd.xlane.f32.xlu0 %v635
        %v637 = vpop.xlane.xlu0 %636
        %v638 = vrot.slane %v637, 4
        %v639 = vadd.f32 %v637, %v638
        %v640 = vrot.slane %v639, 2
        %v641 = vadd.f32 %v639, %v640
        %v642 = vrot.slane %v641, 1
        %v643 = vadd.f32 %v641, %v642
        %s644 = vtos %v643
        %v645 = vstv %s644
        %v646 = vadd.f32 %v645, 0.0
        %v647 = vmul.f32 %v359, %v631
        %v648 = vmul.f32 %v647, %v631
        %v649 = vsub.f32 %v646, %v648
        %650 = vst.msk [vmem:[%s252 + $0x3] sm:$0x1] %vm363, %v630
        %651 = vst.msk [vmem:[%s252 + $0x3] sm:$0x1] %vm365, %v649
        %s652 = sld [smem:[#allocation3 + $0x200]]
        %s653 = sld [smem:[#allocation3 + $0x201]]
        %s654 = sld [smem:[#allocation3 + $0x202]]
        %s655 = sld [smem:[#allocation3 + $0x203]]
        %s656 = sld [smem:[#allocation3 + $0x204]]
        %s657 = sld [smem:[#allocation3 + $0x205]]
        %s658 = sld [smem:[#allocation3 + $0x206]]
        %s659 = sld [smem:[#allocation3 + $0x207]]
        %s660 = sld [smem:[#allocation3 + $0x208]]
        %s661 = sld [smem:[#allocation3 + $0x209]]
        %s662 = sld [smem:[#allocation3 + $0x20a]]
        %s663 = sld [smem:[#allocation3 + $0x20b]]
        %v664 = vld [vmem:[%s220] sm:$0x7f]
        %v665 = vstv %s652
        %v666 = vmul.f32 %v665, %v664
        %v667 = vadd.f32 %v666, 0.0
        %v668 = vld [vmem:[%s276] sm:$0x7f]
        %v669 = vstv %s653
        %v670 = vmul.f32 %v669, %v668
        %v671 = vadd.f32 %v667, %v670
        %v672 = vld [vmem:[%s220 + $0x1] sm:$0x7f]
        %v673 = vstv %s654
        %v674 = vmul.f32 %v673, %v672
        %v675 = vadd.f32 %v671, %v674
        %v676 = vld [vmem:[%s285] sm:$0x7f]
        %v677 = vstv %s655
        %v678 = vmul.f32 %v677, %v676
        %v679 = vadd.f32 %v675, %v678
        %v680 = vld [vmem:[%s290] sm:$0x7f]
        %v681 = vstv %s656
        %v682 = vmul.f32 %v681, %v680
        %v683 = vadd.f32 %v679, %v682
        %v684 = vld [vmem:[%s285 + $0x1] sm:$0x7f]
        %v685 = vstv %s657
        %v686 = vmul.f32 %v685, %v684
        %v687 = vadd.f32 %v683, %v686
        %v688 = vld [vmem:[%s299] sm:$0x7f]
        %v689 = vstv %s658
        %v690 = vmul.f32 %v689, %v688
        %v691 = vadd.f32 %v687, %v690
        %v692 = vld [vmem:[%s304] sm:$0x7f]
        %v693 = vstv %s659
        %v694 = vmul.f32 %v693, %v692
        %v695 = vadd.f32 %v691, %v694
        %v696 = vld [vmem:[%s299 + $0x1] sm:$0x7f]
        %v697 = vstv %s660
        %v698 = vmul.f32 %v697, %v696
        %v699 = vadd.f32 %v695, %v698
        %v700 = vld [vmem:[%s313] sm:$0x7f]
        %v701 = vstv %s661
        %v702 = vmul.f32 %v701, %v700
        %v703 = vadd.f32 %v699, %v702
        %v704 = vld [vmem:[%s318] sm:$0x7f]
        %v705 = vstv %s662
        %v706 = vmul.f32 %v705, %v704
        %v707 = vadd.f32 %v703, %v706
        %v708 = vld [vmem:[%s313 + $0x1] sm:$0x7f]
        %v709 = vstv %s663
        %v710 = vmul.f32 %v709, %v708
        %v711 = vadd.f32 %v707, %v710
        %s712 = scalar_lea.vmem %s242, 32 [#allocation5]
        %713 = vst [vmem:[%s712] sm:$0x7f] %v711
        %v714 = vsel %vm328, %v711, 0.0
        %715 = vadd.xlane.f32.xlu0 %v714
        %v716 = vpop.xlane.xlu0 %715
        %v717 = vrot.slane %v716, 4
        %v718 = vadd.f32 %v716, %v717
        %v719 = vrot.slane %v718, 2
        %v720 = vadd.f32 %v718, %v719
        %v721 = vrot.slane %v720, 1
        %v722 = vadd.f32 %v720, %v721
        %s723 = vtos %v722
        %v724 = vstv %s723
        %v725 = vadd.f32 %v724, 0.0
        %v726 = vmul.f32 %v725, %v342
        %v727 = vld [vmem:[%s712] sm:$0x7f]
        %v728 = vsub.f32 %v727, %v726
        %v729 = vmul.f32 %v728, %v728
        %v730 = vsel %vm328, %v729, 0.0
        %731 = vadd.xlane.f32.xlu0 %v730
        %v732 = vpop.xlane.xlu0 %731
        %v733 = vrot.slane %v732, 4
        %v734 = vadd.f32 %v732, %v733
        %v735 = vrot.slane %v734, 2
        %v736 = vadd.f32 %v734, %v735
        %v737 = vrot.slane %v736, 1
        %v738 = vadd.f32 %v736, %v737
        %s739 = vtos %v738
        %v740 = vstv %s739
        %v741 = vadd.f32 %v740, 0.0
        %v742 = vmul.f32 %v359, %v726
        %v743 = vmul.f32 %v742, %v726
        %v744 = vsub.f32 %v741, %v743
        %745 = vst.msk [vmem:[%s252 + $0x4] sm:$0x1] %vm363, %v725
        %746 = vst.msk [vmem:[%s252 + $0x4] sm:$0x1] %vm365, %v744
        %s747 = sld [smem:[#allocation3 + $0x280]]
        %s748 = sld [smem:[#allocation3 + $0x281]]
        %s749 = sld [smem:[#allocation3 + $0x282]]
        %s750 = sld [smem:[#allocation3 + $0x283]]
        %s751 = sld [smem:[#allocation3 + $0x284]]
        %s752 = sld [smem:[#allocation3 + $0x285]]
        %s753 = sld [smem:[#allocation3 + $0x286]]
        %s754 = sld [smem:[#allocation3 + $0x287]]
        %s755 = sld [smem:[#allocation3 + $0x288]]
        %s756 = sld [smem:[#allocation3 + $0x289]]
        %s757 = sld [smem:[#allocation3 + $0x28a]]
        %s758 = sld [smem:[#allocation3 + $0x28b]]
        %v759 = vld [vmem:[%s220] sm:$0x7f]
        %v760 = vstv %s747
        %v761 = vmul.f32 %v760, %v759
        %v762 = vadd.f32 %v761, 0.0
        %v763 = vld [vmem:[%s276] sm:$0x7f]
        %v764 = vstv %s748
        %v765 = vmul.f32 %v764, %v763
        %v766 = vadd.f32 %v762, %v765
        %v767 = vld [vmem:[%s220 + $0x1] sm:$0x7f]
        %v768 = vstv %s749
        %v769 = vmul.f32 %v768, %v767
        %v770 = vadd.f32 %v766, %v769
        %v771 = vld [vmem:[%s285] sm:$0x7f]
        %v772 = vstv %s750
        %v773 = vmul.f32 %v772, %v771
        %v774 = vadd.f32 %v770, %v773
        %v775 = vld [vmem:[%s290] sm:$0x7f]
        %v776 = vstv %s751
        %v777 = vmul.f32 %v776, %v775
        %v778 = vadd.f32 %v774, %v777
        %v779 = vld [vmem:[%s285 + $0x1] sm:$0x7f]
        %v780 = vstv %s752
        %v781 = vmul.f32 %v780, %v779
        %v782 = vadd.f32 %v778, %v781
        %v783 = vld [vmem:[%s299] sm:$0x7f]
        %v784 = vstv %s753
        %v785 = vmul.f32 %v784, %v783
        %v786 = vadd.f32 %v782, %v785
        %v787 = vld [vmem:[%s304] sm:$0x7f]
        %v788 = vstv %s754
        %v789 = vmul.f32 %v788, %v787
        %v790 = vadd.f32 %v786, %v789
        %v791 = vld [vmem:[%s299 + $0x1] sm:$0x7f]
        %v792 = vstv %s755
        %v793 = vmul.f32 %v792, %v791
        %v794 = vadd.f32 %v790, %v793
        %v795 = vld [vmem:[%s313] sm:$0x7f]
        %v796 = vstv %s756
        %v797 = vmul.f32 %v796, %v795
        %v798 = vadd.f32 %v794, %v797
        %v799 = vld [vmem:[%s318] sm:$0x7f]
        %v800 = vstv %s757
        %v801 = vmul.f32 %v800, %v799
        %v802 = vadd.f32 %v798, %v801
        %v803 = vld [vmem:[%s313 + $0x1] sm:$0x7f]
        %v804 = vstv %s758
        %v805 = vmul.f32 %v804, %v803
        %v806 = vadd.f32 %v802, %v805
        %s807 = scalar_lea.vmem %s242, 40 [#allocation5]
        %808 = vst [vmem:[%s807] sm:$0x7f] %v806
        %v809 = vsel %vm328, %v806, 0.0
        %810 = vadd.xlane.f32.xlu0 %v809
        %v811 = vpop.xlane.xlu0 %810
        %v812 = vrot.slane %v811, 4
        %v813 = vadd.f32 %v811, %v812
        %v814 = vrot.slane %v813, 2
        %v815 = vadd.f32 %v813, %v814
        %v816 = vrot.slane %v815, 1
        %v817 = vadd.f32 %v815, %v816
        %s818 = vtos %v817
        %v819 = vstv %s818
        %v820 = vadd.f32 %v819, 0.0
        %v821 = vmul.f32 %v820, %v342
        %v822 = vld [vmem:[%s807] sm:$0x7f]
        %v823 = vsub.f32 %v822, %v821
        %v824 = vmul.f32 %v823, %v823
        %v825 = vsel %vm328, %v824, 0.0
        %826 = vadd.xlane.f32.xlu0 %v825
        %v827 = vpop.xlane.xlu0 %826
        %v828 = vrot.slane %v827, 4
        %v829 = vadd.f32 %v827, %v828
        %v830 = vrot.slane %v829, 2
        %v831 = vadd.f32 %v829, %v830
        %v832 = vrot.slane %v831, 1
        %v833 = vadd.f32 %v831, %v832
        %s834 = vtos %v833
        %v835 = vstv %s834
        %v836 = vadd.f32 %v835, 0.0
        %v837 = vmul.f32 %v359, %v821
        %v838 = vmul.f32 %v837, %v821
        %v839 = vsub.f32 %v836, %v838
        %840 = vst.msk [vmem:[%s252 + $0x5] sm:$0x1] %vm363, %v820
        %841 = vst.msk [vmem:[%s252 + $0x5] sm:$0x1] %vm365, %v839
        %s842 = sld [smem:[#allocation3 + $0x300]]
        %s843 = sld [smem:[#allocation3 + $0x301]]
        %s844 = sld [smem:[#allocation3 + $0x302]]
        %s845 = sld [smem:[#allocation3 + $0x303]]
        %s846 = sld [smem:[#allocation3 + $0x304]]
        %s847 = sld [smem:[#allocation3 + $0x305]]
        %s848 = sld [smem:[#allocation3 + $0x306]]
        %s849 = sld [smem:[#allocation3 + $0x307]]
        %s850 = sld [smem:[#allocation3 + $0x308]]
        %s851 = sld [smem:[#allocation3 + $0x309]]
        %s852 = sld [smem:[#allocation3 + $0x30a]]
        %s853 = sld [smem:[#allocation3 + $0x30b]]
        %v854 = vld [vmem:[%s220] sm:$0x7f]
        %v855 = vstv %s842
        %v856 = vmul.f32 %v855, %v854
        %v857 = vadd.f32 %v856, 0.0
        %v858 = vld [vmem:[%s276] sm:$0x7f]
        %v859 = vstv %s843
        %v860 = vmul.f32 %v859, %v858
        %v861 = vadd.f32 %v857, %v860
        %v862 = vld [vmem:[%s220 + $0x1] sm:$0x7f]
        %v863 = vstv %s844
        %v864 = vmul.f32 %v863, %v862
        %v865 = vadd.f32 %v861, %v864
        %v866 = vld [vmem:[%s285] sm:$0x7f]
        %v867 = vstv %s845
        %v868 = vmul.f32 %v867, %v866
        %v869 = vadd.f32 %v865, %v868
        %v870 = vld [vmem:[%s290] sm:$0x7f]
        %v871 = vstv %s846
        %v872 = vmul.f32 %v871, %v870
        %v873 = vadd.f32 %v869, %v872
        %v874 = vld [vmem:[%s285 + $0x1] sm:$0x7f]
        %v875 = vstv %s847
        %v876 = vmul.f32 %v875, %v874
        %v877 = vadd.f32 %v873, %v876
        %v878 = vld [vmem:[%s299] sm:$0x7f]
        %v879 = vstv %s848
        %v880 = vmul.f32 %v879, %v878
        %v881 = vadd.f32 %v877, %v880
        %v882 = vld [vmem:[%s304] sm:$0x7f]
        %v883 = vstv %s849
        %v884 = vmul.f32 %v883, %v882
        %v885 = vadd.f32 %v881, %v884
        %v886 = vld [vmem:[%s299 + $0x1] sm:$0x7f]
        %v887 = vstv %s850
        %v888 = vmul.f32 %v887, %v886
        %v889 = vadd.f32 %v885, %v888
        %v890 = vld [vmem:[%s313] sm:$0x7f]
        %v891 = vstv %s851
        %v892 = vmul.f32 %v891, %v890
        %v893 = vadd.f32 %v889, %v892
        %v894 = vld [vmem:[%s318] sm:$0x7f]
        %v895 = vstv %s852
        %v896 = vmul.f32 %v895, %v894
        %v897 = vadd.f32 %v893, %v896
        %v898 = vld [vmem:[%s313 + $0x1] sm:$0x7f]
        %v899 = vstv %s853
        %v900 = vmul.f32 %v899, %v898
        %v901 = vadd.f32 %v897, %v900
        %s902 = scalar_lea.vmem %s242, 48 [#allocation5]
        %903 = vst [vmem:[%s902] sm:$0x7f] %v901
        %v904 = vsel %vm328, %v901, 0.0
        %905 = vadd.xlane.f32.xlu0 %v904
        %v906 = vpop.xlane.xlu0 %905
        %v907 = vrot.slane %v906, 4
        %v908 = vadd.f32 %v906, %v907
        %v909 = vrot.slane %v908, 2
        %v910 = vadd.f32 %v908, %v909
        %v911 = vrot.slane %v910, 1
        %v912 = vadd.f32 %v910, %v911
        %s913 = vtos %v912
        %v914 = vstv %s913
        %v915 = vadd.f32 %v914, 0.0
        %v916 = vmul.f32 %v915, %v342
        %v917 = vld [vmem:[%s902] sm:$0x7f]
        %v918 = vsub.f32 %v917, %v916
        %v919 = vmul.f32 %v918, %v918
        %v920 = vsel %vm328, %v919, 0.0
        %921 = vadd.xlane.f32.xlu0 %v920
        %v922 = vpop.xlane.xlu0 %921
        %v923 = vrot.slane %v922, 4
        %v924 = vadd.f32 %v922, %v923
        %v925 = vrot.slane %v924, 2
        %v926 = vadd.f32 %v924, %v925
        %v927 = vrot.slane %v926, 1
        %v928 = vadd.f32 %v926, %v927
        %s929 = vtos %v928
        %v930 = vstv %s929
        %v931 = vadd.f32 %v930, 0.0
        %v932 = vmul.f32 %v359, %v916
        %v933 = vmul.f32 %v932, %v916
        %v934 = vsub.f32 %v931, %v933
        %935 = vst.msk [vmem:[%s252 + $0x6] sm:$0x1] %vm363, %v915
        %936 = vst.msk [vmem:[%s252 + $0x6] sm:$0x1] %vm365, %v934
        %s937 = sld [smem:[#allocation3 + $0x380]]
        %s938 = sld [smem:[#allocation3 + $0x381]]
        %s939 = sld [smem:[#allocation3 + $0x382]]
        %s940 = sld [smem:[#allocation3 + $0x383]]
        %s941 = sld [smem:[#allocation3 + $0x384]]
        %s942 = sld [smem:[#allocation3 + $0x385]]
        %s943 = sld [smem:[#allocation3 + $0x386]]
        %s944 = sld [smem:[#allocation3 + $0x387]]
        %s945 = sld [smem:[#allocation3 + $0x388]]
        %s946 = sld [smem:[#allocation3 + $0x389]]
        %s947 = sld [smem:[#allocation3 + $0x38a]]
        %s948 = sld [smem:[#allocation3 + $0x38b]]
        %v949 = vld [vmem:[%s220] sm:$0x7f]
        %v950 = vstv %s937
        %v951 = vmul.f32 %v950, %v949
        %v952 = vadd.f32 %v951, 0.0
        %v953 = vld [vmem:[%s276] sm:$0x7f]
        %v954 = vstv %s938
        %v955 = vmul.f32 %v954, %v953
        %v956 = vadd.f32 %v952, %v955
        %v957 = vld [vmem:[%s220 + $0x1] sm:$0x7f]
        %v958 = vstv %s939
        %v959 = vmul.f32 %v958, %v957
        %v960 = vadd.f32 %v956, %v959
        %v961 = vld [vmem:[%s285] sm:$0x7f]
        %v962 = vstv %s940
        %v963 = vmul.f32 %v962, %v961
        %v964 = vadd.f32 %v960, %v963
        %v965 = vld [vmem:[%s290] sm:$0x7f]
        %v966 = vstv %s941
        %v967 = vmul.f32 %v966, %v965
        %v968 = vadd.f32 %v964, %v967
        %v969 = vld [vmem:[%s285 + $0x1] sm:$0x7f]
        %v970 = vstv %s942
        %v971 = vmul.f32 %v970, %v969
        %v972 = vadd.f32 %v968, %v971
        %v973 = vld [vmem:[%s299] sm:$0x7f]
        %v974 = vstv %s943
        %v975 = vmul.f32 %v974, %v973
        %v976 = vadd.f32 %v972, %v975
        %v977 = vld [vmem:[%s304] sm:$0x7f]
        %v978 = vstv %s944
        %v979 = vmul.f32 %v978, %v977
        %v980 = vadd.f32 %v976, %v979
        %v981 = vld [vmem:[%s299 + $0x1] sm:$0x7f]
        %v982 = vstv %s945
        %v983 = vmul.f32 %v982, %v981
        %v984 = vadd.f32 %v980, %v983
        %v985 = vld [vmem:[%s313] sm:$0x7f]
        %v986 = vstv %s946
        %v987 = vmul.f32 %v986, %v985
        %v988 = vadd.f32 %v984, %v987
        %v989 = vld [vmem:[%s318] sm:$0x7f]
        %v990 = vstv %s947
        %v991 = vmul.f32 %v990, %v989
        %v992 = vadd.f32 %v988, %v991
        %v993 = vld [vmem:[%s313 + $0x1] sm:$0x7f]
        %v994 = vstv %s948
        %v995 = vmul.f32 %v994, %v993
        %v996 = vadd.f32 %v992, %v995
        %s997 = scalar_lea.vmem %s242, 56 [#allocation5]
        %998 = vst [vmem:[%s997] sm:$0x7f] %v996
        %v999 = vsel %vm328, %v996, 0.0
        %1000 = vadd.xlane.f32.xlu0 %v999
        %v1001 = vpop.xlane.xlu0 %1000
        %v1002 = vrot.slane %v1001, 4
        %v1003 = vadd.f32 %v1001, %v1002
        %v1004 = vrot.slane %v1003, 2
        %v1005 = vadd.f32 %v1003, %v1004
        %v1006 = vrot.slane %v1005, 1
        %v1007 = vadd.f32 %v1005, %v1006
        %s1008 = vtos %v1007
        %v1009 = vstv %s1008
        %v1010 = vadd.f32 %v1009, 0.0
        %v1011 = vmul.f32 %v1010, %v342
        %v1012 = vld [vmem:[%s997] sm:$0x7f]
        %v1013 = vsub.f32 %v1012, %v1011
        %v1014 = vmul.f32 %v1013, %v1013
        %v1015 = vsel %vm328, %v1014, 0.0
        %1016 = vadd.xlane.f32.xlu0 %v1015
        %v1017 = vpop.xlane.xlu0 %1016
        %v1018 = vrot.slane %v1017, 4
        %v1019 = vadd.f32 %v1017, %v1018
        %v1020 = vrot.slane %v1019, 2
        %v1021 = vadd.f32 %v1019, %v1020
        %v1022 = vrot.slane %v1021, 1
        %v1023 = vadd.f32 %v1021, %v1022
        %s1024 = vtos %v1023
        %v1025 = vstv %s1024
        %v1026 = vadd.f32 %v1025, 0.0
        %v1027 = vmul.f32 %v359, %v1011
        %v1028 = vmul.f32 %v1027, %v1011
        %v1029 = vsub.f32 %v1026, %v1028
        %1030 = vst.msk [vmem:[%s252 + $0x7] sm:$0x1] %vm363, %v1010
        %1031 = vst.msk [vmem:[%s252 + $0x7] sm:$0x1] %vm365, %v1029
        %s1032 = sand.u32 %s71, 1
        %s1033 = sand.u32 %s71, 1
        %s1034 = smul.addr %s1033, 64
        %s1035 = scalar_lea.vmem [#allocation5], %s1034
        %p1036 = scmp.lt.s32.totalorder %s16, 1
        %s1037 = scalar_select %p1036, %s16, 1
        %s1038 = smul.addr %s1037, 8
        %s1039 = scalar_lea.vmem %s3, %s1038
        // Predicated region
        $region71: #{spatial_block.1} parent=61 // pred_check
          %p1040 = pneg %p81
        $region72: #{spatial_block.1} parent=61 // pred_check_branch
          %1042 = sbr.rel (%p1040) target = $region74
        $region73: #{spatial_block.1} parent=61 // pred_region
          %s1043 = smul.addr %s16, 8
          %s1044 = scalar_lea.vmem %s2, %s1043
          // Predicated region
          $region75: #{spatial_block.1} parent=73 // pred_check
            _
          $region76: #{spatial_block.1} parent=73 // pred_check_branch
            %1046 = sbr.rel (0) target = $region78
          $region77: #{spatial_block.1} parent=73 // pred_region
            // Predicated region
            $region79: #{spatial_block.1} parent=77 // pred_check
              _
            $region80: #{spatial_block.1} parent=77 // pred_check_branch
              %1048 = sbr.rel (0) target = $region82
            $region81: #{spatial_block.1} parent=77 // pred_region
              // Predicated region
              $region94: #{spatial_block.1} parent=81 // pred_check
                _
              $region95: #{spatial_block.1} parent=81 // pred_check_branch
                %1078 = sbr.rel (0) target = $region97
              $region96: #{spatial_block.1} parent=81 // pred_region
                loop: start=0, step=1, limit=1
                $region98: #{spatial_block.1} parent=96 // loop_pre_header
                  _
                $region99: #{spatial_block.1} parent=96 // loop_header
                  %s1080 = sphi 0, %s1084
                  %p1081 = scmp.ge.s32.totalorder %s1080, 1
                  %s1085 = sphi %s1035, %s1035
                  %s1086 = sphi %s1044, %s1044
                $region100: #{spatial_block.1} parent=96 // loop_header_branch
                  %1083 = sbr.rel (%p1081) target = $region104
                $region101: #{spatial_block.1} parent=96 // loop_body
                  %v1087 = vld [vmem:[%s1085] sm:$0xff]
                  %1088 = vst [vmem:[%s1086] sm:$0xff] %v1087
                  %v1089 = vld [vmem:[%s1085 + $0x8] sm:$0xff]
                  %1090 = vst [vmem:[%s1086 + $0x10] sm:$0xff] %v1089
                  %v1091 = vld [vmem:[%s1085 + $0x10] sm:$0xff]
                  %1092 = vst [vmem:[%s1086 + $0x20] sm:$0xff] %v1091
                  %v1093 = vld [vmem:[%s1085 + $0x18] sm:$0xff]
                  %1094 = vst [vmem:[%s1086 + $0x30] sm:$0xff] %v1093
                  %v1095 = vld [vmem:[%s1085 + $0x20] sm:$0xff]
                  %1096 = vst [vmem:[%s1086 + $0x40] sm:$0xff] %v1095
                  %v1097 = vld [vmem:[%s1085 + $0x28] sm:$0xff]
                  %1098 = vst [vmem:[%s1086 + $0x50] sm:$0xff] %v1097
                  %v1099 = vld [vmem:[%s1085 + $0x30] sm:$0xff]
                  %1100 = vst [vmem:[%s1086 + $0x60] sm:$0xff] %v1099
                  %v1101 = vld [vmem:[%s1085 + $0x38] sm:$0xff]
                  %1102 = vst [vmem:[%s1086 + $0x70] sm:$0xff] %v1101
                $region102: #{spatial_block.1} parent=96 // loop_footer
                  %s1084 = sadd.s32 1, %s1080
                $region103: #{spatial_block.1} parent=96 // loop_footer_branch
                  %1079 = sbr.rel target = $region99
                $region104: #{spatial_block.1} parent=96 // loop_exit
                  _
              $region97: #{spatial_block.1} parent=81 // pred_fallthru
                _
              // Predicated region
              $region105: #{spatial_block.1} parent=81 // pred_check
                _
              $region106: #{spatial_block.1} parent=81 // pred_check_branch
                %1104 = sbr.rel target = $region108
              $region107: #{spatial_block.1} parent=81 // pred_region
                _
              $region108: #{spatial_block.1} parent=81 // pred_fallthru
                _
            $region82: #{spatial_block.1} parent=77 // pred_fallthru
              _
            // Predicated region
            $region83: #{spatial_block.1} parent=77 // pred_check
              _
            $region84: #{spatial_block.1} parent=77 // pred_check_branch
              %1050 = sbr.rel target = $region86
            $region85: #{spatial_block.1} parent=77 // pred_region
              %s1052 = ssub.s32 256, 1
              loop: start=0, step=1, limit=1
              $region87: #{spatial_block.1} parent=85 // loop_pre_header
                _
              $region88: #{spatial_block.1} parent=85 // loop_header
                %s1054 = sphi 0, %s1058
                %p1055 = scmp.ge.s32.totalorder %s1054, 1
                %s1059 = sphi %s1035, %s1035
                %s1060 = sphi %s1044, %s1044
              $region89: #{spatial_block.1} parent=85 // loop_header_branch
                %1057 = sbr.rel (%p1055) target = $region93
              $region90: #{spatial_block.1} parent=85 // loop_body
                %v1061 = vld [vmem:[%s1059] sm:%s1052]
                %1062 = vst [vmem:[%s1060] sm:%s1052] %v1061
                %v1063 = vld [vmem:[%s1059 + $0x8] sm:%s1052]
                %1064 = vst [vmem:[%s1060 + $0x10] sm:%s1052] %v1063
                %v1065 = vld [vmem:[%s1059 + $0x10] sm:%s1052]
                %1066 = vst [vmem:[%s1060 + $0x20] sm:%s1052] %v1065
                %v1067 = vld [vmem:[%s1059 + $0x18] sm:%s1052]
                %1068 = vst [vmem:[%s1060 + $0x30] sm:%s1052] %v1067
                %v1069 = vld [vmem:[%s1059 + $0x20] sm:%s1052]
                %1070 = vst [vmem:[%s1060 + $0x40] sm:%s1052] %v1069
                %v1071 = vld [vmem:[%s1059 + $0x28] sm:%s1052]
                %1072 = vst [vmem:[%s1060 + $0x50] sm:%s1052] %v1071
                %v1073 = vld [vmem:[%s1059 + $0x30] sm:%s1052]
                %1074 = vst [vmem:[%s1060 + $0x60] sm:%s1052] %v1073
                %v1075 = vld [vmem:[%s1059 + $0x38] sm:%s1052]
                %1076 = vst [vmem:[%s1060 + $0x70] sm:%s1052] %v1075
              $region91: #{spatial_block.1} parent=85 // loop_footer
                %s1058 = sadd.s32 1, %s1054
              $region92: #{spatial_block.1} parent=85 // loop_footer_branch
                %1053 = sbr.rel target = $region88
              $region93: #{spatial_block.1} parent=85 // loop_exit
                _
            $region86: #{spatial_block.1} parent=77 // pred_fallthru
              _
          $region78: #{spatial_block.1} parent=73 // pred_fallthru
            _
          %1105 = vnop
        $region74: #{spatial_block.1} parent=61 // pred_fallthru
          _
        // Predicated region
        $region109: #{spatial_block.1} parent=61 // pred_check
          %p1106 = pneg %p107
        $region110: #{spatial_block.1} parent=61 // pred_check_branch
          %1108 = sbr.rel (%p1106) target = $region112
        $region111: #{spatial_block.1} parent=61 // pred_region
          _
        $region112: #{spatial_block.1} parent=61 // pred_fallthru
          _
      $region62: #{spatial_block.1} parent=5 // pred_fallthru
        _
      %p1109 = scmp.le.s32.totalorder 2, %s11
      // Predicated region
      $region113: #{spatial_block.1} parent=5 // pred_check
        %p1110 = pneg %p1109
      $region114: #{spatial_block.1} parent=5 // pred_check_branch
        %1112 = sbr.rel (%p1110) target = $region116
      $region115: #{spatial_block.1} parent=5 // pred_region
        %s1113 = ssub.s32 %s11, 2
        // Predicated region
        $region117: #{spatial_block.1} parent=115 // pred_check
          %p1114 = pneg %p87
        $region118: #{spatial_block.1} parent=115 // pred_check_branch
          %1116 = sbr.rel (%p1114) target = $region120
        $region119: #{spatial_block.1} parent=115 // pred_region
          %s1117 = sand.u32 %s72, 1
          %s1118 = sand.u32 %s72, 1
          %s1119 = smul.addr %s1118, 64
          %s1120 = scalar_lea.vmem [#allocation5], %s1119
        $region120: #{spatial_block.1} parent=115 // pred_fallthru
          _
        // Predicated region
        $region121: #{spatial_block.1} parent=115 // pred_check
          %p1121 = pneg %p113
        $region122: #{spatial_block.1} parent=115 // pred_check_branch
          %1123 = sbr.rel (%p1121) target = $region124
        $region123: #{spatial_block.1} parent=115 // pred_region
          %p1124 = scmp.lt.s32.totalorder %s17, 1
          %s1125 = scalar_select %p1124, %s17, 1
          %s1126 = smul.addr %s1125, 8
          %s1127 = scalar_lea.vmem %s3, %s1126
        $region124: #{spatial_block.1} parent=115 // pred_fallthru
          _
      $region116: #{spatial_block.1} parent=5 // pred_fallthru
        _
    $region6: #{spatial_block.1} parent=1 // loop_footer
      %s15 = sadd.s32 1, %s11
    $region7: #{spatial_block.1} parent=1 // loop_footer_branch
      %10 = sbr.rel target = $region3
    $region8: #{spatial_block.1} parent=1 // loop_exit
      _
    %1128 = vsyncpa [#allocation4], 1
    %s1129 = scalar_lea.sflag [#allocation4], 1
    %1130 = vsyncpa %s1129, 1

</llo_original>
